<compile_context>
chip_gen: v7x
topology: tpu7x:2x2x1
jax: 0.10.0
libtpu: 0.0.40
codegen_flags: <defaults>
</compile_context>

<pallas_src>
import jax
import jax.numpy as jnp
from jax.experimental import pallas as pl
from jax.experimental.pallas import tpu as pltpu

CIN = 256
COUT = 256
KH = KW = 3


def _round_up(x, m):
    return (x + m - 1) // m * m


def _pick_tile_h(H, Wk, budget_bytes=40 * 1024 * 1024):
    # Rough VMEM per tile row: xsh slab (1536 B/px) + double-buffered bf16 input (1 KB/px)
    # + double-buffered f32 output (2 KB/px) + f32 matmul temporaries (~2 KB/px).
    per_row = Wk * 6656
    th = int(max(8, budget_bytes // per_row))
    return int(min(H, th, 128))


def conv3x3_kernel(x_ref, hal_ref, w_ref, b_ref, o_ref, xsh_ref):
    # x_ref:   (TH, W, CIN)        bf16  TH image rows of one batch element (NHWC)
    # hal_ref: (2, W, CIN)         bf16  [0] = row above the tile, [1] = row below
    #                                    (zeros at the image border)
    # w_ref:   (KH, KW*CIN, COUT)  bf16  w_ref[ky] = concat over kx of (CIN, COUT)
    # b_ref:   (1, COUT)           f32
    # o_ref:   (TH, W, COUT)       f32
    # xsh_ref: (TH+2, W, KW*CIN)   bf16 scratch; row r == padded image row (tile_start + r);
    #                              lanes [kx*CIN:(kx+1)*CIN] hold that row shifted left by
    #                              kx along W (conv zero-padding realized in-scratch).
    TH, W, cin = x_ref.shape
    cout = o_ref.shape[-1]

    top = hal_ref[0]
    bot = hal_ref[1]
    zcol = jnp.zeros((TH + 2, 1, cin), xsh_ref.dtype)

    # ---- Build the three width-shifted slots.  Every element of xsh is written. ----
    # center slot (kx=1): xpad columns 1..W == data columns 0..W-1 (no pad column).
    xsh_ref[pl.ds(1, TH), :, pl.ds(cin, cin)] = x_ref[...]
    xsh_ref[pl.ds(0, 1), :, pl.ds(cin, cin)] = top.reshape(1, W, cin)
    xsh_ref[pl.ds(TH + 1, 1), :, pl.ds(cin, cin)] = bot.reshape(1, W, cin)

    # left slot (kx=0): xpad columns 0..W-1 -> output col 0 sees the conv left pad (zero).
    xsh_ref[pl.ds(1, TH), pl.ds(1, W - 1), pl.ds(0, cin)] = x_ref[:, : W - 1, :]
    xsh_ref[pl.ds(0, 1), pl.ds(1, W - 1), pl.ds(0, cin)] = top[: W - 1, :].reshape(1, W - 1, cin)
    xsh_ref[pl.ds(TH + 1, 1), pl.ds(1, W - 1), pl.ds(0, cin)] = bot[: W - 1, :].reshape(1, W - 1, cin)
    xsh_ref[:, pl.ds(0, 1), pl.ds(0, cin)] = zcol

    # right slot (kx=2): xpad columns 2..W+1 -> output col W-1 sees the conv right pad.
    xsh_ref[pl.ds(1, TH), pl.ds(0, W - 1), pl.ds(2 * cin, cin)] = x_ref[:, 1:, :]
    xsh_ref[pl.ds(0, 1), pl.ds(0, W - 1), pl.ds(2 * cin, cin)] = top[1:, :].reshape(1, W - 1, cin)
    xsh_ref[pl.ds(TH + 1, 1), pl.ds(0, W - 1), pl.ds(2 * cin, cin)] = bot[1:, :].reshape(1, W - 1, cin)
    xsh_ref[:, pl.ds(W - 1, 1), pl.ds(2 * cin, cin)] = zcol

    # ---- One K = 3*CIN bf16 matmul per kernel row, summed in a single f32 expression ----
    # (bias fused, result stored once; no f32 accumulator scratch round-trip).
    # W is a multiple of 16, so these slab reshapes are layout-free and feed zero junk rows.
    s0 = xsh_ref[pl.ds(0, TH), :, :].reshape(TH * W, KW * cin)
    s1 = xsh_ref[pl.ds(1, TH), :, :].reshape(TH * W, KW * cin)
    s2 = xsh_ref[pl.ds(2, TH), :, :].reshape(TH * W, KW * cin)
    out = (
        jnp.dot(s0, w_ref[0], preferred_element_type=jnp.float32)
        + jnp.dot(s1, w_ref[1], preferred_element_type=jnp.float32)
        + jnp.dot(s2, w_ref[2], preferred_element_type=jnp.float32)
        + b_ref[...]
    )
    o_ref[...] = out.reshape(TH, W, cout).astype(o_ref.dtype)


def custom_conv_block(x_nchw, weight, bias, *, tile_h=None):
    """x_nchw: (N, 256, H, W) f32; weight: (256, 256, 3, 3) OIHW; bias: (256,)."""
    N, C, H, W = x_nchw.shape
    assert C == CIN

    # NCHW -> NHWC + bf16 cast (single wrapper pass).
    x_nhwc = jnp.transpose(x_nchw, (0, 2, 3, 1)).astype(jnp.bfloat16)

    # Pad W to a multiple of 16 (bf16 sublane tile): slab reshapes stay free and the extra
    # zero columns produce outputs that are exactly sliced off (conv with zero padding is
    # unchanged for the first W columns).
    Wk = _round_up(W, 16)
    if Wk != W:
        x_nhwc = jnp.pad(x_nhwc, ((0, 0), (0, 0), (0, Wk - W), (0, 0)))

    # H tiling: TH rows per grid step, H padded to a multiple of TH (extra zero rows are
    # likewise sliced off and do not perturb the first H output rows).
    TH = tile_h if tile_h is not None else _pick_tile_h(H, Wk)
    Hk = _round_up(H, TH)
    if Hk != H:
        x_nhwc = jnp.pad(x_nhwc, ((0, 0), (0, Hk - H), (0, 0), (0, 0)))
    n_th = Hk // TH

    # Halo rows for each H tile: the image row just above / just below the tile
    # (zeros at the top/bottom image border).  Shape (N, n_th, 2, Wk, CIN).
    zrow = jnp.zeros((N, 1, Wk, CIN), jnp.bfloat16)
    halo_top = jnp.concatenate([zrow, x_nhwc[:, TH - 1 :: TH][:, : n_th - 1]], axis=1)
    halo_bot = jnp.concatenate([x_nhwc[:, TH::TH][:, : n_th - 1], zrow], axis=1)
    x_halo = jnp.stack([halo_top, halo_bot], axis=2)

    # OIHW -> (ky, kx*Cin, Cout) bf16 so each ky is one K=3*Cin matmul.
    w_cat = jnp.transpose(weight, (2, 3, 1, 0)).reshape(KH, KW * CIN, COUT).astype(jnp.bfloat16)
    b2d = bias.reshape(1, COUT).astype(jnp.float32)

    out_nhwc = pl.pallas_call(
        conv3x3_kernel,
        out_shape=jax.ShapeDtypeStruct((N, Hk, Wk, COUT), x_nchw.dtype),
        grid_spec=pltpu.PrefetchScalarGridSpec(
            num_scalar_prefetch=0,
            grid=(N, n_th),
            in_specs=[
                pl.BlockSpec((None, TH, Wk, CIN), lambda n, t: (n, t, 0, 0)),
                pl.BlockSpec((None, None, 2, Wk, CIN), lambda n, t: (n, t, 0, 0, 0)),
                pl.BlockSpec((KH, KW * CIN, COUT), lambda n, t: (0, 0, 0)),
                pl.BlockSpec((1, COUT), lambda n, t: (0, 0)),
            ],
            out_specs=pl.BlockSpec((None, TH, Wk, COUT), lambda n, t: (n, t, 0, 0)),
            scratch_shapes=[
                pltpu.VMEM((TH + 2, Wk, KW * CIN), jnp.bfloat16),
            ],
        ),
        compiler_params=pltpu.CompilerParams(
            dimension_semantics=("parallel", "parallel"),
            # 48 MiB: below v7x's 64 MiB physical VMEM, above v5e/v6e scoped defaults.
            vmem_limit_bytes=48 * 1024 * 1024,
        ),
    )(x_nhwc, x_halo, w_cat, b2d)

    # Drop alignment padding, NHWC -> NCHW to match the PyTorch output convention.
    return jnp.transpose(out_nhwc[:, :H, :W, :], (0, 3, 1, 2))


if __name__ == "__main__":
    key = jax.random.PRNGKey(0)
    kx, kw, kb = jax.random.split(key, 3)

    N, H, W = 2, 16, 16
    x = jax.random.normal(kx, (N, CIN, H, W), jnp.float32)

    # Deterministic parameter init (same shapes as nn.Conv2d(256, 256, 3, padding=1)).
    fan_in = CIN * KH * KW
    bound = 1.0 / jnp.sqrt(fan_in)
    weight = jax.random.uniform(kw, (COUT, CIN, KH, KW), jnp.float32, -bound, bound)
    bias = jax.random.uniform(kb, (COUT,), jnp.float32, -bound, bound)

    conv_fn = jax.jit(custom_conv_block)
    out = jax.block_until_ready(conv_fn(x, weight, bias))
    assert out.shape == (N, COUT, H, W)
    assert out.dtype == jnp.float32

    # Reference 1: bf16 inputs / f32 accumulation — same arithmetic as the kernel, so this
    # isolates layout/indexing bugs from the intentional bf16 cast.
    ref_bf16 = jax.lax.conv_general_dilated(
        x.astype(jnp.bfloat16), weight.astype(jnp.bfloat16),
        window_strides=(1, 1), padding=((1, 1), (1, 1)),
        dimension_numbers=("NCHW", "OIHW", "NCHW"),
        preferred_element_type=jnp.float32,
    ) + bias.reshape(1, COUT, 1, 1)
    ref_bf16 = jax.block_until_ready(ref_bf16)
    assert jnp.allclose(out, ref_bf16, rtol=2e-3, atol=2e-3)

    # Reference 2: full-f32 conv (module semantics); relaxed tolerance covers the bf16 cast.
    ref_f32 = jax.lax.conv_general_dilated(
        x, weight, window_strides=(1, 1), padding=((1, 1), (1, 1)),
        dimension_numbers=("NCHW", "OIHW", "NCHW"),
        precision=jax.lax.Precision.HIGHEST,
    ) + bias.reshape(1, COUT, 1, 1)
    ref_f32 = jax.block_until_ready(ref_f32)
    assert jnp.allclose(out, ref_f32, rtol=2e-2, atol=2e-2)

    print("KERNEL_OK")
</pallas_src>

<mosaic_0001>
module attributes {stable_mosaic.version = 11 : i64} {
  func.func @conv3x3_kernel(%arg0: i32, %arg1: i32, %arg2: memref<1x16x16x256xbf16, #tpu.memory_space<vmem>>, %arg3: memref<1x1x2x16x256xbf16, #tpu.memory_space<vmem>>, %arg4: memref<3x768x256xbf16, #tpu.memory_space<vmem>>, %arg5: memref<1x256xf32, #tpu.memory_space<vmem>>, %arg6: memref<1x16x16x256xf32, #tpu.memory_space<vmem>>, %arg7: memref<18x16x768xbf16, #tpu.memory_space<vmem>>) attributes {dimension_semantics = [#tpu.dimension_semantics<parallel>, #tpu.dimension_semantics<parallel>], iteration_bounds = array<i64: 2, 1>, scalar_prefetch = 0 : i64, scratch_operands = 1 : i64, tpu.core_type = #tpu.core_type<tc>, window_params = [{transform_indices = @transform_0, window_bounds = array<i64: 1, 16, 16, 256>}, {transform_indices = @transform_1, window_bounds = array<i64: 1, 1, 2, 16, 256>}, {pipeline_mode = #tpu.pipeline_mode<synchronous>, transform_indices = @transform_2, window_bounds = array<i64: 3, 768, 256>}, {pipeline_mode = #tpu.pipeline_mode<synchronous>, transform_indices = @transform_3, window_bounds = array<i64: 1, 256>}, {transform_indices = @transform_4, window_bounds = array<i64: 1, 16, 16, 256>}]} {
    %c0 = arith.constant 0 : index
    %c0_0 = arith.constant 0 : index
    %c0_1 = arith.constant 0 : index
    %c0_2 = arith.constant 0 : index
    %c0_3 = arith.constant 0 : index
    %0 = vector.load %arg3[%c0, %c0_0, %c0_1, %c0_2, %c0_3] : memref<1x1x2x16x256xbf16, #tpu.memory_space<vmem>>, vector<1x1x1x16x256xbf16>
    %1 = vector.shape_cast %0 : vector<1x1x1x16x256xbf16> to vector<16x256xbf16>
    %c0_4 = arith.constant 0 : index
    %c0_5 = arith.constant 0 : index
    %c1 = arith.constant 1 : index
    %c0_6 = arith.constant 0 : index
    %c0_7 = arith.constant 0 : index
    %2 = vector.load %arg3[%c0_4, %c0_5, %c1, %c0_6, %c0_7] : memref<1x1x2x16x256xbf16, #tpu.memory_space<vmem>>, vector<1x1x1x16x256xbf16>
    %3 = vector.shape_cast %2 : vector<1x1x1x16x256xbf16> to vector<16x256xbf16>
    %cst = arith.constant 0.000000e+00 : bf16
    %4 = vector.broadcast %cst : bf16 to vector<18x1x256xbf16>
    %c0_8 = arith.constant 0 : index
    %c0_9 = arith.constant 0 : index
    %c0_10 = arith.constant 0 : index
    %c0_11 = arith.constant 0 : index
    %5 = vector.load %arg2[%c0_8, %c0_9, %c0_10, %c0_11] : memref<1x16x16x256xbf16, #tpu.memory_space<vmem>>, vector<1x16x16x256xbf16>
    %6 = vector.shape_cast %5 : vector<1x16x16x256xbf16> to vector<16x16x256xbf16>
    %c1_12 = arith.constant 1 : index
    %c0_13 = arith.constant 0 : index
    %c256 = arith.constant 256 : index
    %7 = vector.load %arg7[%c1_12, %c0_13, %c256] : memref<18x16x768xbf16, #tpu.memory_space<vmem>>, vector<16x16x256xbf16>
    tpu.vector_store %arg7[%c1_12, %c0_13, %c256], %6 {strides = array<i32>} : memref<18x16x768xbf16, #tpu.memory_space<vmem>>, vector<16x16x256xbf16>,
    %8 = vector.shape_cast %1 : vector<16x256xbf16> to vector<1x16x256xbf16>
    %c0_14 = arith.constant 0 : index
    %c0_15 = arith.constant 0 : index
    %c256_16 = arith.constant 256 : index
    %9 = vector.load %arg7[%c0_14, %c0_15, %c256_16] : memref<18x16x768xbf16, #tpu.memory_space<vmem>>, vector<1x16x256xbf16>
    tpu.vector_store %arg7[%c0_14, %c0_15, %c256_16], %8 {strides = array<i32>} : memref<18x16x768xbf16, #tpu.memory_space<vmem>>, vector<1x16x256xbf16>,
    %10 = vector.shape_cast %3 : vector<16x256xbf16> to vector<1x16x256xbf16>
    %c17 = arith.constant 17 : index
    %c0_17 = arith.constant 0 : index
    %c256_18 = arith.constant 256 : index
    %11 = vector.load %arg7[%c17, %c0_17, %c256_18] : memref<18x16x768xbf16, #tpu.memory_space<vmem>>, vector<1x16x256xbf16>
    tpu.vector_store %arg7[%c17, %c0_17, %c256_18], %10 {strides = array<i32>} : memref<18x16x768xbf16, #tpu.memory_space<vmem>>, vector<1x16x256xbf16>,
    %c0_19 = arith.constant 0 : index
    %c0_20 = arith.constant 0 : index
    %c0_21 = arith.constant 0 : index
    %c0_22 = arith.constant 0 : index
    %12 = vector.load %arg2[%c0_19, %c0_20, %c0_21, %c0_22] : memref<1x16x16x256xbf16, #tpu.memory_space<vmem>>, vector<1x16x15x256xbf16>
    %13 = vector.shape_cast %12 : vector<1x16x15x256xbf16> to vector<16x15x256xbf16>
    %c1_23 = arith.constant 1 : index
    %c1_24 = arith.constant 1 : index
    %c0_25 = arith.constant 0 : index
    %14 = vector.load %arg7[%c1_23, %c1_24, %c0_25] : memref<18x16x768xbf16, #tpu.memory_space<vmem>>, vector<16x15x256xbf16>
    tpu.vector_store %arg7[%c1_23, %c1_24, %c0_25], %13 {strides = array<i32>} : memref<18x16x768xbf16, #tpu.memory_space<vmem>>, vector<16x15x256xbf16>,
    %15 = vector.extract_strided_slice %1 {offsets = [0, 0], sizes = [15, 256], strides = [1, 1]} : vector<16x256xbf16> to vector<15x256xbf16>
    %16 = vector.shape_cast %15 : vector<15x256xbf16> to vector<1x15x256xbf16>
    %c0_26 = arith.constant 0 : index
    %c1_27 = arith.constant 1 : index
    %c0_28 = arith.constant 0 : index
    %17 = vector.load %arg7[%c0_26, %c1_27, %c0_28] : memref<18x16x768xbf16, #tpu.memory_space<vmem>>, vector<1x15x256xbf16>
    tpu.vector_store %arg7[%c0_26, %c1_27, %c0_28], %16 {strides = array<i32>} : memref<18x16x768xbf16, #tpu.memory_space<vmem>>, vector<1x15x256xbf16>,
    %18 = vector.extract_strided_slice %3 {offsets = [0, 0], sizes = [15, 256], strides = [1, 1]} : vector<16x256xbf16> to vector<15x256xbf16>
    %19 = vector.shape_cast %18 : vector<15x256xbf16> to vector<1x15x256xbf16>
    %c17_29 = arith.constant 17 : index
    %c1_30 = arith.constant 1 : index
    %c0_31 = arith.constant 0 : index
    %20 = vector.load %arg7[%c17_29, %c1_30, %c0_31] : memref<18x16x768xbf16, #tpu.memory_space<vmem>>, vector<1x15x256xbf16>
    tpu.vector_store %arg7[%c17_29, %c1_30, %c0_31], %19 {strides = array<i32>} : memref<18x16x768xbf16, #tpu.memory_space<vmem>>, vector<1x15x256xbf16>,
    %c0_32 = arith.constant 0 : index
    %c0_33 = arith.constant 0 : index
    %c0_34 = arith.constant 0 : index
    %21 = vector.load %arg7[%c0_32, %c0_33, %c0_34] : memref<18x16x768xbf16, #tpu.memory_space<vmem>>, vector<18x1x256xbf16>
    tpu.vector_store %arg7[%c0_32, %c0_33, %c0_34], %4 {strides = array<i32>} : memref<18x16x768xbf16, #tpu.memory_space<vmem>>, vector<18x1x256xbf16>,
    %c0_35 = arith.constant 0 : index
    %c0_36 = arith.constant 0 : index
    %c1_37 = arith.constant 1 : index
    %c0_38 = arith.constant 0 : index
    %22 = vector.load %arg2[%c0_35, %c0_36, %c1_37, %c0_38] : memref<1x16x16x256xbf16, #tpu.memory_space<vmem>>, vector<1x16x15x256xbf16>
    %23 = vector.shape_cast %22 : vector<1x16x15x256xbf16> to vector<16x15x256xbf16>
    %c1_39 = arith.constant 1 : index
    %c0_40 = arith.constant 0 : index
    %c512 = arith.constant 512 : index
    %24 = vector.load %arg7[%c1_39, %c0_40, %c512] : memref<18x16x768xbf16, #tpu.memory_space<vmem>>, vector<16x15x256xbf16>
    tpu.vector_store %arg7[%c1_39, %c0_40, %c512], %23 {strides = array<i32>} : memref<18x16x768xbf16, #tpu.memory_space<vmem>>, vector<16x15x256xbf16>,
    %25 = vector.extract_strided_slice %1 {offsets = [1, 0], sizes = [15, 256], strides = [1, 1]} : vector<16x256xbf16> to vector<15x256xbf16>
    %26 = vector.shape_cast %25 : vector<15x256xbf16> to vector<1x15x256xbf16>
    %c0_41 = arith.constant 0 : index
    %c0_42 = arith.constant 0 : index
    %c512_43 = arith.constant 512 : index
    %27 = vector.load %arg7[%c0_41, %c0_42, %c512_43] : memref<18x16x768xbf16, #tpu.memory_space<vmem>>, vector<1x15x256xbf16>
    tpu.vector_store %arg7[%c0_41, %c0_42, %c512_43], %26 {strides = array<i32>} : memref<18x16x768xbf16, #tpu.memory_space<vmem>>, vector<1x15x256xbf16>,
    %28 = vector.extract_strided_slice %3 {offsets = [1, 0], sizes = [15, 256], strides = [1, 1]} : vector<16x256xbf16> to vector<15x256xbf16>
    %29 = vector.shape_cast %28 : vector<15x256xbf16> to vector<1x15x256xbf16>
    %c17_44 = arith.constant 17 : index
    %c0_45 = arith.constant 0 : index
    %c512_46 = arith.constant 512 : index
    %30 = vector.load %arg7[%c17_44, %c0_45, %c512_46] : memref<18x16x768xbf16, #tpu.memory_space<vmem>>, vector<1x15x256xbf16>
    tpu.vector_store %arg7[%c17_44, %c0_45, %c512_46], %29 {strides = array<i32>} : memref<18x16x768xbf16, #tpu.memory_space<vmem>>, vector<1x15x256xbf16>,
    %c0_47 = arith.constant 0 : index
    %c15 = arith.constant 15 : index
    %c512_48 = arith.constant 512 : index
    %31 = vector.load %arg7[%c0_47, %c15, %c512_48] : memref<18x16x768xbf16, #tpu.memory_space<vmem>>, vector<18x1x256xbf16>
    tpu.vector_store %arg7[%c0_47, %c15, %c512_48], %4 {strides = array<i32>} : memref<18x16x768xbf16, #tpu.memory_space<vmem>>, vector<18x1x256xbf16>,
    %c0_49 = arith.constant 0 : index
    %c0_50 = arith.constant 0 : index
    %c0_51 = arith.constant 0 : index
    %32 = vector.load %arg7[%c0_49, %c0_50, %c0_51] : memref<18x16x768xbf16, #tpu.memory_space<vmem>>, vector<16x16x768xbf16>
    %33 = vector.shape_cast %32 : vector<16x16x768xbf16> to vector<256x768xbf16>
    %c1_52 = arith.constant 1 : index
    %c0_53 = arith.constant 0 : index
    %c0_54 = arith.constant 0 : index
    %34 = vector.load %arg7[%c1_52, %c0_53, %c0_54] : memref<18x16x768xbf16, #tpu.memory_space<vmem>>, vector<16x16x768xbf16>
    %35 = vector.shape_cast %34 : vector<16x16x768xbf16> to vector<256x768xbf16>
    %c2 = arith.constant 2 : index
    %c0_55 = arith.constant 0 : index
    %c0_56 = arith.constant 0 : index
    %36 = vector.load %arg7[%c2, %c0_55, %c0_56] : memref<18x16x768xbf16, #tpu.memory_space<vmem>>, vector<16x16x768xbf16>
    %37 = vector.shape_cast %36 : vector<16x16x768xbf16> to vector<256x768xbf16>
    %c0_57 = arith.constant 0 : index
    %c0_58 = arith.constant 0 : index
    %c0_59 = arith.constant 0 : index
    %38 = vector.load %arg4[%c0_57, %c0_58, %c0_59] : memref<3x768x256xbf16, #tpu.memory_space<vmem>>, vector<1x768x256xbf16>
    %39 = vector.shape_cast %38 : vector<1x768x256xbf16> to vector<768x256xbf16>
    %cst_60 = arith.constant dense<0.000000e+00> : vector<256x256xf32>
    %40 = tpu.matmul %33, %39, %cst_60 {dimension_numbers = #tpu.dot_dimension_numbers<[1], [0], [0], [1], [0, 0, 1, 1], [], []>} : vector<256x768xbf16>, vector<768x256xbf16>, vector<256x256xf32> -> vector<256x256xf32>
    %c1_61 = arith.constant 1 : index
    %c0_62 = arith.constant 0 : index
    %c0_63 = arith.constant 0 : index
    %41 = vector.load %arg4[%c1_61, %c0_62, %c0_63] : memref<3x768x256xbf16, #tpu.memory_space<vmem>>, vector<1x768x256xbf16>
    %42 = vector.shape_cast %41 : vector<1x768x256xbf16> to vector<768x256xbf16>
    %cst_64 = arith.constant dense<0.000000e+00> : vector<256x256xf32>
    %43 = tpu.matmul %35, %42, %cst_64 {dimension_numbers = #tpu.dot_dimension_numbers<[1], [0], [0], [1], [0, 0, 1, 1], [], []>} : vector<256x768xbf16>, vector<768x256xbf16>, vector<256x256xf32> -> vector<256x256xf32>
    %44 = arith.addf %40, %43 : vector<256x256xf32>
    %c2_65 = arith.constant 2 : index
    %c0_66 = arith.constant 0 : index
    %c0_67 = arith.constant 0 : index
    %45 = vector.load %arg4[%c2_65, %c0_66, %c0_67] : memref<3x768x256xbf16, #tpu.memory_space<vmem>>, vector<1x768x256xbf16>
    %46 = vector.shape_cast %45 : vector<1x768x256xbf16> to vector<768x256xbf16>
    %cst_68 = arith.constant dense<0.000000e+00> : vector<256x256xf32>
    %47 = tpu.matmul %37, %46, %cst_68 {dimension_numbers = #tpu.dot_dimension_numbers<[1], [0], [0], [1], [0, 0, 1, 1], [], []>} : vector<256x768xbf16>, vector<768x256xbf16>, vector<256x256xf32> -> vector<256x256xf32>
    %48 = arith.addf %44, %47 : vector<256x256xf32>
    %c0_69 = arith.constant 0 : index
    %c0_70 = arith.constant 0 : index
    %49 = vector.load %arg5[%c0_69, %c0_70] : memref<1x256xf32, #tpu.memory_space<vmem>>, vector<1x256xf32>
    %50 = vector.broadcast %49 : vector<1x256xf32> to vector<256x256xf32>
    %51 = arith.addf %48, %50 : vector<256x256xf32>
    %52 = vector.shape_cast %51 : vector<256x256xf32> to vector<16x16x256xf32>
    %c0_71 = arith.constant 0 : index
    %c0_72 = arith.constant 0 : index
    %c0_73 = arith.constant 0 : index
    %c0_74 = arith.constant 0 : index
    %53 = vector.load %arg6[%c0_71, %c0_72, %c0_73, %c0_74] : memref<1x16x16x256xf32, #tpu.memory_space<vmem>>, vector<1x16x16x256xf32>
    %54 = vector.shape_cast %53 : vector<1x16x16x256xf32> to vector<16x16x256xf32>
    %55 = vector.shape_cast %52 : vector<16x16x256xf32> to vector<1x16x16x256xf32>
    tpu.vector_store %arg6[%c0_71, %c0_72, %c0_73, %c0_74], %55 {strides = array<i32>} : memref<1x16x16x256xf32, #tpu.memory_space<vmem>>, vector<1x16x16x256xf32>,
    return
  }
  func.func @transform_0(%arg0: i32, %arg1: i32) -> (i32, i32, i32, i32) {
    %c0_i32 = arith.constant 0 : i32
    %c0_i32_0 = arith.constant 0 : i32
    %c0_i32_1 = arith.constant 0 : i32
    return %arg0, %arg1, %c0_i32, %c0_i32_0 : i32, i32, i32, i32
  }
  func.func @transform_1(%arg0: i32, %arg1: i32) -> (i32, i32, i32, i32, i32) {
    %c0_i32 = arith.constant 0 : i32
    %c0_i32_0 = arith.constant 0 : i32
    %c0_i32_1 = arith.constant 0 : i32
    %c0_i32_2 = arith.constant 0 : i32
    return %arg0, %arg1, %c0_i32, %c0_i32_0, %c0_i32_1 : i32, i32, i32, i32, i32
  }
  func.func @transform_2(%arg0: i32, %arg1: i32) -> (i32, i32, i32) {
    %c0_i32 = arith.constant 0 : i32
    %c0_i32_0 = arith.constant 0 : i32
    %c0_i32_1 = arith.constant 0 : i32
    %c0_i32_2 = arith.constant 0 : i32
    return %c0_i32, %c0_i32_0, %c0_i32_1 : i32, i32, i32
  }
  func.func @transform_3(%arg0: i32, %arg1: i32) -> (i32, i32) {
    %c0_i32 = arith.constant 0 : i32
    %c0_i32_0 = arith.constant 0 : i32
    %c0_i32_1 = arith.constant 0 : i32
    return %c0_i32, %c0_i32_0 : i32, i32
  }
  func.func @transform_4(%arg0: i32, %arg1: i32) -> (i32, i32, i32, i32) {
    %c0_i32 = arith.constant 0 : i32
    %c0_i32_0 = arith.constant 0 : i32
    %c0_i32_1 = arith.constant 0 : i32
    return %arg0, %arg1, %c0_i32, %c0_i32_0 : i32, i32, i32, i32
  }
}

</mosaic_0001>

<llo_original>
// kernel: custom_conv_block.1
$region0: #{custom_conv_block.1}
  #allocation0 [shape = 'u32[]', space=smem, size = 0x4, offset = 0x4, fixed_abs, tag = 'smem constant byte address 0x4 - core index']
  #allocation1 [shape = 'u32[144,128]{1,0:T(1,128)}', space=vmem, size = 0x12000, scoped, tag = 'internal scratch']
  #allocation2 [shape = 'bf16[18,16,768]{2,1,0:T(16,128)(2,1)}', space=vmem, size = 0x6c000, scoped, tag = 'scratch operand']
  %s0 = inlined_call_operand.vmem [shape: bf16[2,16,16,256], index: 0, kind: input, shape index: {}]
  %s1 = inlined_call_operand.vmem [shape: bf16[2,1,2,16,256], index: 1, kind: input, shape index: {}]
  %s2 = inlined_call_operand.vmem [shape: bf16[3,768,256], index: 2, kind: input, shape index: {}]
  %s3 = inlined_call_operand.vmem [shape: f32[1,256], index: 3, kind: input, shape index: {}]
  %s4 = inlined_call_operand.hbm [shape: f32[2,16,16,256], index: 4, kind: output, shape index: {}]
  %s5 = sld [smem:[#allocation0]]
  $region49: #{custom_conv_block.1} parent=0
    _
  %s7 = ssub.s32 1, %s5
  %s8 = scalar_select 0, %s7, %s5
  $region1: #{custom_conv_block.1} parent=0
    #allocation3 [shape = 'u8[524288]{0}', space=vmem, size = 0x80000, scoped, tag = 'output window, operand 0']
    #allocation4 [shape = 's32[2]{0}', space=sflag, size = 0x8, scoped, tag = 'scoped memory for custom_conv_block.1']
    %9 = vsyncpa [#allocation4], 0
    %s10 = scalar_lea.sflag [#allocation4], 1
    %11 = vsyncpa %s10, 0
    loop: start=0, step=1, limit=4
    $region2: #{custom_conv_block.1} parent=1 // loop_pre_header
      _
    $region3: #{custom_conv_block.1} parent=1 // loop_header
      %s13 = sphi 0, %s17
      %p14 = scmp.ge.s32.totalorder %s13, 4
      %s20 = sphi 0, %s32
      %s21 = sphi 0, %s28
      %s22 = sphi 0, %s20
      %s23 = sphi 0, %s21
      %s24 = sphi 0, %s22
      %s25 = sphi 0, %s23
      %s37 = sphi 0, %s39
      %s40 = sphi 0, %s37
      %s41 = sphi 0, %s40
      %s57 = sphi 0, %s41
      %s65 = sphi 0, %s67
      %s68 = sphi 0, %s65
      %s69 = sphi 0, %s68
      %s85 = sphi 0, %s69
      %s89 = sphi 0, %s89
      %s91 = sphi 0, %s89
      %s92 = sphi 0, %s91
      %s106 = sphi 0, %s92
      %s110 = sphi 0, %s110
      %s112 = sphi 0, %s110
      %s113 = sphi 0, %s112
      %s127 = sphi 0, %s113
      %s135 = sphi 0, %s137
      %s138 = sphi 0, %s135
      %s139 = sphi 0, %s138
      %s155 = sphi 0, %s139
    $region4: #{custom_conv_block.1} parent=1 // loop_header_branch
      %16 = sbr.rel (%p14) target = $region8
    $region5: #{custom_conv_block.1} parent=1 // loop_body
      %s18 = ssub.s32 %s13, 1
      %s19 = ssub.s32 %s13, 2
      %s26 = sadd.s32 1, %s21
      %p27 = scmp.ge.s32.totalorder %s26, 1
      %s28 = scalar_select %p27, 0, %s26
      %s29 = sadd.s32 1, %s20
      %s30 = scalar_select %p27, %s29, %s20
      %p31 = scmp.ge.s32.totalorder %s30, 2
      %s32 = scalar_select %p31, 0, %s30
      %s33 = ssub.s32 %s20, %s32
      %s34 = ssub.s32 %s21, %s28
      %s35 = sor.u32 %s33, %s34
      %p36 = scmp.eq.s32.totalorder %s35, 0
      %s38 = sadd.s32 %s37, 1
      %s39 = scalar_select %p36, %s37, %s38
      %p42 = pneg %p36
      %p43 = scmp.eq.s32.totalorder %s13, 1
      %p44 = por %p42, %p43
      %p45 = scmp.ne.s32.totalorder %s37, %s40
      %p46 = scmp.eq.s32.totalorder %s13, 0
      %p47 = por %p45, %p46
      %p48 = scmp.ne.s32.totalorder %s37, %s40
      %p49 = scmp.eq.s32.totalorder %s18, 1
      %p50 = por %p48, %p49
      %p51 = scmp.ne.s32.totalorder %s40, %s41
      %p52 = scmp.eq.s32.totalorder %s18, 0
      %p53 = por %p51, %p52
      %p54 = scmp.ne.s32.totalorder %s40, %s41
      %p55 = scmp.eq.s32.totalorder %s19, 1
      %p56 = por %p54, %p55
      %p58 = scmp.ne.s32.totalorder %s41, %s57
      %p59 = scmp.eq.s32.totalorder %s19, 0
      %p60 = por %p58, %p59
      %s61 = ssub.s32 %s20, %s32
      %s62 = ssub.s32 %s21, %s28
      %s63 = sor.u32 %s61, %s62
      %p64 = scmp.eq.s32.totalorder %s63, 0
      %s66 = sadd.s32 %s65, 1
      %s67 = scalar_select %p64, %s65, %s66
      %p70 = pneg %p64
      %p71 = scmp.eq.s32.totalorder %s13, 1
      %p72 = por %p70, %p71
      %p73 = scmp.ne.s32.totalorder %s65, %s68
      %p74 = scmp.eq.s32.totalorder %s13, 0
      %p75 = por %p73, %p74
      %p76 = scmp.ne.s32.totalorder %s65, %s68
      %p77 = scmp.eq.s32.totalorder %s18, 1
      %p78 = por %p76, %p77
      %p79 = scmp.ne.s32.totalorder %s68, %s69
      %p80 = scmp.eq.s32.totalorder %s18, 0
      %p81 = por %p79, %p80
      %p82 = scmp.ne.s32.totalorder %s68, %s69
      %p83 = scmp.eq.s32.totalorder %s19, 1
      %p84 = por %p82, %p83
      %p86 = scmp.ne.s32.totalorder %s69, %s85
      %p87 = scmp.eq.s32.totalorder %s19, 0
      %p88 = por %p86, %p87
      %s90 = sadd.s32 %s89, 1
      %p93 = scmp.eq.s32.totalorder %s13, 1
      %p94 = scmp.ne.s32.totalorder %s89, %s91
      %p95 = scmp.eq.s32.totalorder %s13, 0
      %p96 = por %p94, %p95
      %p97 = scmp.ne.s32.totalorder %s89, %s91
      %p98 = scmp.eq.s32.totalorder %s18, 1
      %p99 = por %p97, %p98
      %p100 = scmp.ne.s32.totalorder %s91, %s92
      %p101 = scmp.eq.s32.totalorder %s18, 0
      %p102 = por %p100, %p101
      %p103 = scmp.ne.s32.totalorder %s91, %s92
      %p104 = scmp.eq.s32.totalorder %s19, 1
      %p105 = por %p103, %p104
      %p107 = scmp.ne.s32.totalorder %s92, %s106
      %p108 = scmp.eq.s32.totalorder %s19, 0
      %p109 = por %p107, %p108
      %s111 = sadd.s32 %s110, 1
      %p114 = scmp.eq.s32.totalorder %s13, 1
      %p115 = scmp.ne.s32.totalorder %s110, %s112
      %p116 = scmp.eq.s32.totalorder %s13, 0
      %p117 = por %p115, %p116
      %p118 = scmp.ne.s32.totalorder %s110, %s112
      %p119 = scmp.eq.s32.totalorder %s18, 1
      %p120 = por %p118, %p119
      %p121 = scmp.ne.s32.totalorder %s112, %s113
      %p122 = scmp.eq.s32.totalorder %s18, 0
      %p123 = por %p121, %p122
      %p124 = scmp.ne.s32.totalorder %s112, %s113
      %p125 = scmp.eq.s32.totalorder %s19, 1
      %p126 = por %p124, %p125
      %p128 = scmp.ne.s32.totalorder %s113, %s127
      %p129 = scmp.eq.s32.totalorder %s19, 0
      %p130 = por %p128, %p129
      %s131 = ssub.s32 %s20, %s32
      %s132 = ssub.s32 %s21, %s28
      %s133 = sor.u32 %s131, %s132
      %p134 = scmp.eq.s32.totalorder %s133, 0
      %s136 = sadd.s32 %s135, 1
      %s137 = scalar_select %p134, %s135, %s136
      %p140 = pneg %p134
      %p141 = scmp.eq.s32.totalorder %s13, 1
      %p142 = por %p140, %p141
      %p143 = scmp.ne.s32.totalorder %s135, %s138
      %p144 = scmp.eq.s32.totalorder %s13, 0
      %p145 = por %p143, %p144
      %p146 = scmp.ne.s32.totalorder %s135, %s138
      %p147 = scmp.eq.s32.totalorder %s18, 1
      %p148 = por %p146, %p147
      %p149 = scmp.ne.s32.totalorder %s138, %s139
      %p150 = scmp.eq.s32.totalorder %s18, 0
      %p151 = por %p149, %p150
      %p152 = scmp.ne.s32.totalorder %s138, %s139
      %p153 = scmp.eq.s32.totalorder %s19, 1
      %p154 = por %p152, %p153
      %p156 = scmp.ne.s32.totalorder %s139, %s155
      %p157 = scmp.eq.s32.totalorder %s19, 0
      %p158 = por %p156, %p157
      %p159 = scmp.le.s32.totalorder 1, %s13
      %p160 = scmp.lt.s32.totalorder %s13, 3
      %p161 = pnand %p159, %p160
      %p162 = pneg %p161
      // Predicated region
      $region9: #{custom_conv_block.1} parent=5 // pred_check
        _
      $region10: #{custom_conv_block.1} parent=5 // pred_check_branch
        %164 = sbr.rel (%p161) target = $region12
      $region11: #{custom_conv_block.1} parent=5 // pred_region
        %s165 = ssub.s32 %s13, 1
        // Predicated region
        $region13: #{custom_conv_block.1} parent=11 // pred_check
          %p166 = pneg %p102
        $region14: #{custom_conv_block.1} parent=11 // pred_check_branch
          %168 = sbr.rel (%p166) target = $region16
        $region15: #{custom_conv_block.1} parent=11 // pred_region
          _
        $region16: #{custom_conv_block.1} parent=11 // pred_fallthru
          _
        // Predicated region
        $region17: #{custom_conv_block.1} parent=11 // pred_check
          %p169 = pneg %p123
        $region18: #{custom_conv_block.1} parent=11 // pred_check_branch
          %171 = sbr.rel (%p169) target = $region20
        $region19: #{custom_conv_block.1} parent=11 // pred_region
          _
        $region20: #{custom_conv_block.1} parent=11 // pred_fallthru
          _
      $region12: #{custom_conv_block.1} parent=5 // pred_fallthru
        _
      %p172 = scmp.lt.s32.totalorder %s13, 2
      // Predicated region
      $region21: #{custom_conv_block.1} parent=5 // pred_check
        %p173 = pneg %p172
      $region22: #{custom_conv_block.1} parent=5 // pred_check_branch
        %175 = sbr.rel (%p173) target = $region24
      $region23: #{custom_conv_block.1} parent=5 // pred_region
        // Predicated region
        $region25: #{custom_conv_block.1} parent=23 // pred_check
          %p176 = pneg %p47
        $region26: #{custom_conv_block.1} parent=23 // pred_check_branch
          %178 = sbr.rel (%p176) target = $region28
        $region27: #{custom_conv_block.1} parent=23 // pred_region
          %s179 = smul.u32 16, %s21
          %p180 = scmp.lt.s32.totalorder %s20, 1
          %s181 = scalar_select %p180, %s20, 1
          %p182 = scmp.lt.s32.totalorder %s179, 15
          %s183 = scalar_select %p182, %s179, 15
          %s184 = smul.addr %s183, 4
          %s185 = smul.addr %s181, 64
          %s186 = sadd.s32 %s184, %s185
          %s187 = smul.addr %s186, 4
          %s188 = scalar_lea.vmem %s0, %s187
          %s189 = smul.u32 16, %s21
        $region28: #{custom_conv_block.1} parent=23 // pred_fallthru
          _
        // Predicated region
        $region29: #{custom_conv_block.1} parent=23 // pred_check
          %p190 = pneg %p75
        $region30: #{custom_conv_block.1} parent=23 // pred_check_branch
          %192 = sbr.rel (%p190) target = $region32
        $region31: #{custom_conv_block.1} parent=23 // pred_region
          %p193 = scmp.lt.s32.totalorder %s20, 1
          %s194 = scalar_select %p193, %s20, 1
          %p195 = scmp.lt.s32.totalorder %s21, 0
          %s196 = scalar_select %p195, %s21, 0
          %s197 = smul.addr %s196, 8
          %s198 = smul.addr %s194, 8
          %s199 = sadd.s32 %s197, %s198
          %s200 = smul.addr %s199, 4
          %s201 = scalar_lea.vmem %s1, %s200
        $region32: #{custom_conv_block.1} parent=23 // pred_fallthru
          _
      $region24: #{custom_conv_block.1} parent=5 // pred_fallthru
        _
      %p202 = scmp.le.s32.totalorder 1, %s13
      %p203 = scmp.lt.s32.totalorder %s13, 3
      %p204 = pnand %p202, %p203
      %p205 = pneg %p204
      // Predicated region
      $region33: #{custom_conv_block.1} parent=5 // pred_check
        _
      $region34: #{custom_conv_block.1} parent=5 // pred_check_branch
        %207 = sbr.rel (%p204) target = $region36
      $region35: #{custom_conv_block.1} parent=5 // pred_region
        %s208 = ssub.s32 %s13, 1
        %s209 = smul.u32 16, %s23
        %p210 = scmp.lt.s32.totalorder %s22, 1
        %s211 = scalar_select %p210, %s22, 1
        %p212 = scmp.lt.s32.totalorder %s209, 15
        %s213 = scalar_select %p212, %s209, 15
        %s214 = smul.addr %s213, 4
        %s215 = smul.addr %s211, 64
        %s216 = sadd.s32 %s214, %s215
        %s217 = smul.addr %s216, 4
        %s218 = scalar_lea.vmem %s0, %s217
        %p219 = pneg %p53
        %p220 = pneg %p50
        %p221 = scmp.lt.s32.totalorder %s22, 1
        %s222 = scalar_select %p221, %s22, 1
        %p223 = scmp.lt.s32.totalorder %s23, 0
        %s224 = scalar_select %p223, %s23, 0
        %s225 = smul.addr %s224, 8
        %s226 = smul.addr %s222, 8
        %s227 = sadd.s32 %s225, %s226
        %s228 = smul.addr %s227, 4
        %s229 = scalar_lea.vmem %s1, %s228
        %p230 = pneg %p81
        %p231 = pneg %p78
        %p232 = pneg %p102
        %p233 = pneg %p99
        %p234 = pneg %p123
        %p235 = pneg %p120
        %p236 = pneg %p151
        %p237 = pneg %p148
        %s238 = sand.u32 %s138, 1
        %s239 = scalar_lea.sflag [#allocation4], %s238
        %s240 = sand.u32 %s138, 1
        %s241 = smul.addr %s240, 512
        %s242 = scalar_lea.vmem [#allocation3], %s241
        %s243 = smul.u32 16, %s23
        %p244 = scmp.lt.s32.totalorder %s22, 1
        %s245 = scalar_select %p244, %s22, 1
        %p246 = scmp.lt.s32.totalorder %s243, 15
        %s247 = scalar_select %p246, %s243, 15
        %s248 = smul.addr %s247, 4
        %s249 = smul.addr %s245, 64
        %s250 = sadd.s32 %s248, %s249
        %s251 = smul.addr %s250, 4
        %s252 = scalar_lea.vmem %s0, %s251
        %s253 = smul.u32 16, %s23
        %p254 = scmp.lt.s32.totalorder %s22, 1
        %s255 = scalar_select %p254, %s22, 1
        %p256 = scmp.lt.s32.totalorder %s23, 0
        %s257 = scalar_select %p256, %s23, 0
        %s258 = smul.addr %s257, 8
        %s259 = smul.addr %s255, 8
        %s260 = sadd.s32 %s258, %s259
        %s261 = smul.addr %s260, 4
        %s262 = scalar_lea.vmem %s1, %s261
        %s263 = smul.u32 16, %s23
        %v265 = vld [vmem:[%s262] sm:$0xff]
        %v266 = vld [vmem:[%s262 + $0x8] sm:$0xff]
        %s267 = scalar_lea.vmem %s262, 16
        %v268 = vld [vmem:[%s267] sm:$0xff]
        %v269 = vld [vmem:[%s267 + $0x8] sm:$0xff]
        %v270 = vld [vmem:[%s252] sm:$0xff]
        %v271 = vld [vmem:[%s252 + $0x8] sm:$0xff]
        %v272 = vld [vmem:[%s252 + $0x10] sm:$0xff]
        %v273 = vld [vmem:[%s252 + $0x18] sm:$0xff]
        %v274 = vld [vmem:[%s252 + $0x20] sm:$0xff]
        %v275 = vld [vmem:[%s252 + $0x28] sm:$0xff]
        %v276 = vld [vmem:[%s252 + $0x30] sm:$0xff]
        %v277 = vld [vmem:[%s252 + $0x38] sm:$0xff]
        %v278 = vld [vmem:[%s252 + $0x40] sm:$0xff]
        %v279 = vld [vmem:[%s252 + $0x48] sm:$0xff]
        %v280 = vld [vmem:[%s252 + $0x50] sm:$0xff]
        %v281 = vld [vmem:[%s252 + $0x58] sm:$0xff]
        %v282 = vld [vmem:[%s252 + $0x60] sm:$0xff]
        %v283 = vld [vmem:[%s252 + $0x68] sm:$0xff]
        %v284 = vld [vmem:[%s252 + $0x70] sm:$0xff]
        %v285 = vld [vmem:[%s252 + $0x78] sm:$0xff]
        %v286 = vld [vmem:[%s252 + $0x80] sm:$0xff]
        %v287 = vld [vmem:[%s252 + $0x88] sm:$0xff]
        %v288 = vld [vmem:[%s252 + $0x90] sm:$0xff]
        %v289 = vld [vmem:[%s252 + $0x98] sm:$0xff]
        %v290 = vld [vmem:[%s252 + $0xa0] sm:$0xff]
        %v291 = vld [vmem:[%s252 + $0xa8] sm:$0xff]
        %v292 = vld [vmem:[%s252 + $0xb0] sm:$0xff]
        %v293 = vld [vmem:[%s252 + $0xb8] sm:$0xff]
        %v294 = vld [vmem:[%s252 + $0xc0] sm:$0xff]
        %v295 = vld [vmem:[%s252 + $0xc8] sm:$0xff]
        %v296 = vld [vmem:[%s252 + $0xd0] sm:$0xff]
        %v297 = vld [vmem:[%s252 + $0xd8] sm:$0xff]
        %v298 = vld [vmem:[%s252 + $0xe0] sm:$0xff]
        %v299 = vld [vmem:[%s252 + $0xe8] sm:$0xff]
        %v300 = vld [vmem:[%s252 + $0xf0] sm:$0xff]
        %v301 = vld [vmem:[%s252 + $0xf8] sm:$0xff]
        %v334 = vunpack.c.l.b16 %v270
        %v335 = vunpack.c.h.b16 %v270
        %v336 = vunpack.c.l.b16 %v271
        %v337 = vunpack.c.h.b16 %v271
        %v338 = vunpack.c.l.b16 %v272
        %v339 = vunpack.c.h.b16 %v272
        %v340 = vunpack.c.l.b16 %v273
        %v341 = vunpack.c.h.b16 %v273
        %v342 = vunpack.c.l.b16 %v274
        %v343 = vunpack.c.h.b16 %v274
        %v344 = vunpack.c.l.b16 %v275
        %v345 = vunpack.c.h.b16 %v275
        %v346 = vunpack.c.l.b16 %v276
        %v347 = vunpack.c.h.b16 %v276
        %v348 = vunpack.c.l.b16 %v277
        %v349 = vunpack.c.h.b16 %v277
        %v350 = vunpack.c.l.b16 %v278
        %v351 = vunpack.c.h.b16 %v278
        %v352 = vunpack.c.l.b16 %v279
        %v353 = vunpack.c.h.b16 %v279
        %v354 = vunpack.c.l.b16 %v280
        %v355 = vunpack.c.h.b16 %v280
        %v356 = vunpack.c.l.b16 %v281
        %v357 = vunpack.c.h.b16 %v281
        %v358 = vunpack.c.l.b16 %v282
        %v359 = vunpack.c.h.b16 %v282
        %v360 = vunpack.c.l.b16 %v283
        %v361 = vunpack.c.h.b16 %v283
        %v362 = vunpack.c.l.b16 %v284
        %v363 = vunpack.c.h.b16 %v284
        %v364 = vunpack.c.l.b16 %v285
        %v365 = vunpack.c.h.b16 %v285
        %v366 = vunpack.c.l.b16 %v286
        %v367 = vunpack.c.h.b16 %v286
        %v368 = vunpack.c.l.b16 %v287
        %v369 = vunpack.c.h.b16 %v287
        %v370 = vunpack.c.l.b16 %v288
        %v371 = vunpack.c.h.b16 %v288
        %v372 = vunpack.c.l.b16 %v289
        %v373 = vunpack.c.h.b16 %v289
        %v374 = vunpack.c.l.b16 %v290
        %v375 = vunpack.c.h.b16 %v290
        %v376 = vunpack.c.l.b16 %v291
        %v377 = vunpack.c.h.b16 %v291
        %v378 = vunpack.c.l.b16 %v292
        %v379 = vunpack.c.h.b16 %v292
        %v380 = vunpack.c.l.b16 %v293
        %v381 = vunpack.c.h.b16 %v293
        %v382 = vunpack.c.l.b16 %v294
        %v383 = vunpack.c.h.b16 %v294
        %v384 = vunpack.c.l.b16 %v295
        %v385 = vunpack.c.h.b16 %v295
        %v386 = vunpack.c.l.b16 %v296
        %v387 = vunpack.c.h.b16 %v296
        %v388 = vunpack.c.l.b16 %v297
        %v389 = vunpack.c.h.b16 %v297
        %v390 = vunpack.c.l.b16 %v298
        %v391 = vunpack.c.h.b16 %v298
        %v392 = vunpack.c.l.b16 %v299
        %v393 = vunpack.c.h.b16 %v299
        %v394 = vunpack.c.l.b16 %v300
        %v395 = vunpack.c.h.b16 %v300
        %v396 = vunpack.c.l.b16 %v301
        %v397 = vunpack.c.h.b16 %v301
        %v398 = vpack.c.b16 %v336, %v334
        %v399 = vpack.c.b16 %v337, %v335
        %v400 = vpack.c.b16 %v340, %v338
        %v401 = vpack.c.b16 %v341, %v339
        %v402 = vpack.c.b16 %v344, %v342
        %v403 = vpack.c.b16 %v345, %v343
        %v404 = vpack.c.b16 %v348, %v346
        %v405 = vpack.c.b16 %v349, %v347
        %v406 = vpack.c.b16 %v352, %v350
        %v407 = vpack.c.b16 %v353, %v351
        %v408 = vpack.c.b16 %v356, %v354
        %v409 = vpack.c.b16 %v357, %v355
        %v410 = vpack.c.b16 %v360, %v358
        %v411 = vpack.c.b16 %v361, %v359
        %v412 = vpack.c.b16 %v364, %v362
        %v413 = vpack.c.b16 %v365, %v363
        %v414 = vpack.c.b16 %v368, %v366
        %v415 = vpack.c.b16 %v369, %v367
        %v416 = vpack.c.b16 %v372, %v370
        %v417 = vpack.c.b16 %v373, %v371
        %v418 = vpack.c.b16 %v376, %v374
        %v419 = vpack.c.b16 %v377, %v375
        %v420 = vpack.c.b16 %v380, %v378
        %v421 = vpack.c.b16 %v381, %v379
        %v422 = vpack.c.b16 %v384, %v382
        %v423 = vpack.c.b16 %v385, %v383
        %v424 = vpack.c.b16 %v388, %v386
        %v425 = vpack.c.b16 %v389, %v387
        %v426 = vpack.c.b16 %v392, %v390
        %v427 = vpack.c.b16 %v393, %v391
        %v428 = vpack.c.b16 %v396, %v394
        %v429 = vpack.c.b16 %v397, %v395
        %s462 = scalar_lea.vmem [#allocation2], 48
        %463 = vst [vmem:[%s462 + $0x10] sm:$0xff] %v398
        %464 = vst [vmem:[%s462 + $0x18] sm:$0xff] %v399
        %465 = vst [vmem:[%s462 + $0x40] sm:$0xff] %v400
        %466 = vst [vmem:[%s462 + $0x48] sm:$0xff] %v401
        %467 = vst [vmem:[%s462 + $0x70] sm:$0xff] %v402
        %468 = vst [vmem:[%s462 + $0x78] sm:$0xff] %v403
        %469 = vst [vmem:[%s462 + $0xa0] sm:$0xff] %v404
        %470 = vst [vmem:[%s462 + $0xa8] sm:$0xff] %v405
        %471 = vst [vmem:[%s462 + $0xd0] sm:$0xff] %v406
        %472 = vst [vmem:[%s462 + $0xd8] sm:$0xff] %v407
        %473 = vst [vmem:[%s462 + $0x100] sm:$0xff] %v408
        %474 = vst [vmem:[%s462 + $0x108] sm:$0xff] %v409
        %475 = vst [vmem:[%s462 + $0x130] sm:$0xff] %v410
        %476 = vst [vmem:[%s462 + $0x138] sm:$0xff] %v411
        %477 = vst [vmem:[%s462 + $0x160] sm:$0xff] %v412
        %478 = vst [vmem:[%s462 + $0x168] sm:$0xff] %v413
        %479 = vst [vmem:[%s462 + $0x190] sm:$0xff] %v414
        %480 = vst [vmem:[%s462 + $0x198] sm:$0xff] %v415
        %481 = vst [vmem:[%s462 + $0x1c0] sm:$0xff] %v416
        %482 = vst [vmem:[%s462 + $0x1c8] sm:$0xff] %v417
        %483 = vst [vmem:[%s462 + $0x1f0] sm:$0xff] %v418
        %484 = vst [vmem:[%s462 + $0x1f8] sm:$0xff] %v419
        %485 = vst [vmem:[%s462 + $0x220] sm:$0xff] %v420
        %486 = vst [vmem:[%s462 + $0x228] sm:$0xff] %v421
        %487 = vst [vmem:[%s462 + $0x250] sm:$0xff] %v422
        %488 = vst [vmem:[%s462 + $0x258] sm:$0xff] %v423
        %489 = vst [vmem:[%s462 + $0x280] sm:$0xff] %v424
        %490 = vst [vmem:[%s462 + $0x288] sm:$0xff] %v425
        %491 = vst [vmem:[%s462 + $0x2b0] sm:$0xff] %v426
        %492 = vst [vmem:[%s462 + $0x2b8] sm:$0xff] %v427
        %493 = vst [vmem:[%s462 + $0x2e0] sm:$0xff] %v428
        %494 = vst [vmem:[%s462 + $0x2e8] sm:$0xff] %v429
        %v497 = vunpack.c.l.b16 %v265
        %v498 = vunpack.c.h.b16 %v265
        %v499 = vunpack.c.l.b16 %v266
        %v500 = vunpack.c.h.b16 %v266
        %v501 = vpack.c.b16 %v499, %v497
        %v502 = vpack.c.b16 %v500, %v498
        %505 = vst [vmem:[#allocation2 + $0x10] sm:$0xff] %v501
        %506 = vst [vmem:[#allocation2 + $0x18] sm:$0xff] %v502
        %v509 = vunpack.c.l.b16 %v268
        %v510 = vunpack.c.h.b16 %v268
        %v511 = vunpack.c.l.b16 %v269
        %v512 = vunpack.c.h.b16 %v269
        %v513 = vpack.c.b16 %v511, %v509
        %v514 = vpack.c.b16 %v512, %v510
        %s517 = scalar_lea.vmem [#allocation2], 816
        %518 = vst [vmem:[%s517 + $0x10] sm:$0xff] %v513
        %519 = vst [vmem:[%s517 + $0x18] sm:$0xff] %v514
        %v520 = vld [vmem:[%s252] sm:$0xff]
        %v521 = vld [vmem:[%s252 + $0x8] sm:$0xff]
        %v522 = vld [vmem:[%s252 + $0x10] sm:$0xff]
        %v523 = vld [vmem:[%s252 + $0x18] sm:$0xff]
        %v524 = vld [vmem:[%s252 + $0x20] sm:$0xff]
        %v525 = vld [vmem:[%s252 + $0x28] sm:$0xff]
        %v526 = vld [vmem:[%s252 + $0x30] sm:$0xff]
        %v527 = vld [vmem:[%s252 + $0x38] sm:$0xff]
        %v528 = vld [vmem:[%s252 + $0x40] sm:$0xff]
        %v529 = vld [vmem:[%s252 + $0x48] sm:$0xff]
        %v530 = vld [vmem:[%s252 + $0x50] sm:$0xff]
        %v531 = vld [vmem:[%s252 + $0x58] sm:$0xff]
        %v532 = vld [vmem:[%s252 + $0x60] sm:$0xff]
        %v533 = vld [vmem:[%s252 + $0x68] sm:$0xff]
        %v534 = vld [vmem:[%s252 + $0x70] sm:$0xff]
        %v535 = vld [vmem:[%s252 + $0x78] sm:$0xff]
        %v536 = vld [vmem:[%s252 + $0x80] sm:$0xff]
        %v537 = vld [vmem:[%s252 + $0x88] sm:$0xff]
        %v538 = vld [vmem:[%s252 + $0x90] sm:$0xff]
        %v539 = vld [vmem:[%s252 + $0x98] sm:$0xff]
        %v540 = vld [vmem:[%s252 + $0xa0] sm:$0xff]
        %v541 = vld [vmem:[%s252 + $0xa8] sm:$0xff]
        %v542 = vld [vmem:[%s252 + $0xb0] sm:$0xff]
        %v543 = vld [vmem:[%s252 + $0xb8] sm:$0xff]
        %v544 = vld [vmem:[%s252 + $0xc0] sm:$0xff]
        %v545 = vld [vmem:[%s252 + $0xc8] sm:$0xff]
        %v546 = vld [vmem:[%s252 + $0xd0] sm:$0xff]
        %v547 = vld [vmem:[%s252 + $0xd8] sm:$0xff]
        %v548 = vld [vmem:[%s252 + $0xe0] sm:$0xff]
        %v549 = vld [vmem:[%s252 + $0xe8] sm:$0xff]
        %v550 = vld [vmem:[%s252 + $0xf0] sm:$0xff]
        %v551 = vld [vmem:[%s252 + $0xf8] sm:$0xff]
        %v584 = vunpack.c.l.b16 %v520
        %v585 = vunpack.c.h.b16 %v520
        %v586 = vunpack.c.l.b16 %v521
        %v587 = vunpack.c.h.b16 %v521
        %v588 = vunpack.c.l.b16 %v522
        %v589 = vunpack.c.h.b16 %v522
        %v590 = vunpack.c.l.b16 %v523
        %v591 = vunpack.c.h.b16 %v523
        %v592 = vunpack.c.l.b16 %v524
        %v593 = vunpack.c.h.b16 %v524
        %v594 = vunpack.c.l.b16 %v525
        %v595 = vunpack.c.h.b16 %v525
        %v596 = vunpack.c.l.b16 %v526
        %v597 = vunpack.c.h.b16 %v526
        %v598 = vunpack.c.l.b16 %v527
        %v599 = vunpack.c.h.b16 %v527
        %v600 = vunpack.c.l.b16 %v528
        %v601 = vunpack.c.h.b16 %v528
        %v602 = vunpack.c.l.b16 %v529
        %v603 = vunpack.c.h.b16 %v529
        %v604 = vunpack.c.l.b16 %v530
        %v605 = vunpack.c.h.b16 %v530
        %v606 = vunpack.c.l.b16 %v531
        %v607 = vunpack.c.h.b16 %v531
        %v608 = vunpack.c.l.b16 %v532
        %v609 = vunpack.c.h.b16 %v532
        %v610 = vunpack.c.l.b16 %v533
        %v611 = vunpack.c.h.b16 %v533
        %v612 = vunpack.c.l.b16 %v534
        %v613 = vunpack.c.h.b16 %v534
        %v614 = vunpack.c.l.b16 %v535
        %v615 = vunpack.c.h.b16 %v535
        %v616 = vunpack.c.l.b16 %v536
        %v617 = vunpack.c.h.b16 %v536
        %v618 = vunpack.c.l.b16 %v537
        %v619 = vunpack.c.h.b16 %v537
        %v620 = vunpack.c.l.b16 %v538
        %v621 = vunpack.c.h.b16 %v538
        %v622 = vunpack.c.l.b16 %v539
        %v623 = vunpack.c.h.b16 %v539
        %v624 = vunpack.c.l.b16 %v540
        %v625 = vunpack.c.h.b16 %v540
        %v626 = vunpack.c.l.b16 %v541
        %v627 = vunpack.c.h.b16 %v541
        %v628 = vunpack.c.l.b16 %v542
        %v629 = vunpack.c.h.b16 %v542
        %v630 = vunpack.c.l.b16 %v543
        %v631 = vunpack.c.h.b16 %v543
        %v632 = vunpack.c.l.b16 %v544
        %v633 = vunpack.c.h.b16 %v544
        %v634 = vunpack.c.l.b16 %v545
        %v635 = vunpack.c.h.b16 %v545
        %v636 = vunpack.c.l.b16 %v546
        %v637 = vunpack.c.h.b16 %v546
        %v638 = vunpack.c.l.b16 %v547
        %v639 = vunpack.c.h.b16 %v547
        %v640 = vunpack.c.l.b16 %v548
        %v641 = vunpack.c.h.b16 %v548
        %v642 = vunpack.c.l.b16 %v549
        %v643 = vunpack.c.h.b16 %v549
        %v644 = vunpack.c.l.b16 %v550
        %v645 = vunpack.c.h.b16 %v550
        %v646 = vunpack.c.l.b16 %v551
        %v647 = vunpack.c.h.b16 %v551
        %v648 = vpack.c.b16 %v586, %v584
        %v649 = vpack.c.b16 %v587, %v585
        %v650 = vpack.c.b16 %v590, %v588
        %v651 = vpack.c.b16 %v591, %v589
        %v652 = vpack.c.b16 %v594, %v592
        %v653 = vpack.c.b16 %v595, %v593
        %v654 = vpack.c.b16 %v598, %v596
        %v655 = vpack.c.b16 %v599, %v597
        %v656 = vpack.c.b16 %v602, %v600
        %v657 = vpack.c.b16 %v603, %v601
        %v658 = vpack.c.b16 %v606, %v604
        %v659 = vpack.c.b16 %v607, %v605
        %v660 = vpack.c.b16 %v610, %v608
        %v661 = vpack.c.b16 %v611, %v609
        %v662 = vpack.c.b16 %v614, %v612
        %v663 = vpack.c.b16 %v615, %v613
        %v664 = vpack.c.b16 %v618, %v616
        %v665 = vpack.c.b16 %v619, %v617
        %v666 = vpack.c.b16 %v622, %v620
        %v667 = vpack.c.b16 %v623, %v621
        %v668 = vpack.c.b16 %v626, %v624
        %v669 = vpack.c.b16 %v627, %v625
        %v670 = vpack.c.b16 %v630, %v628
        %v671 = vpack.c.b16 %v631, %v629
        %v672 = vpack.c.b16 %v634, %v632
        %v673 = vpack.c.b16 %v635, %v633
        %v674 = vpack.c.b16 %v638, %v636
        %v675 = vpack.c.b16 %v639, %v637
        %v676 = vpack.c.b16 %v642, %v640
        %v677 = vpack.c.b16 %v643, %v641
        %v678 = vpack.c.b16 %v646, %v644
        %v679 = vpack.c.b16 %v647, %v645
        %v681 = vshrl.u32 %v648, 16
        %v683 = vrot.slane %v681, 7
        %v684 = vshll.u32 %v648, 16
        %v686 = vor.u32 %v683, %v684
        %v688 = vshrl.u32 %v649, 16
        %v690 = vrot.slane %v688, 7
        %v691 = vshll.u32 %v649, 16
        %v693 = vor.u32 %v690, %v691
        %v695 = vshrl.u32 %v650, 16
        %v697 = vrot.slane %v695, 7
        %v698 = vshll.u32 %v650, 16
        %v700 = vor.u32 %v697, %v698
        %v702 = vshrl.u32 %v651, 16
        %v704 = vrot.slane %v702, 7
        %v705 = vshll.u32 %v651, 16
        %v707 = vor.u32 %v704, %v705
        %v709 = vshrl.u32 %v652, 16
        %v711 = vrot.slane %v709, 7
        %v712 = vshll.u32 %v652, 16
        %v714 = vor.u32 %v711, %v712
        %v716 = vshrl.u32 %v653, 16
        %v718 = vrot.slane %v716, 7
        %v719 = vshll.u32 %v653, 16
        %v721 = vor.u32 %v718, %v719
        %v723 = vshrl.u32 %v654, 16
        %v725 = vrot.slane %v723, 7
        %v726 = vshll.u32 %v654, 16
        %v728 = vor.u32 %v725, %v726
        %v730 = vshrl.u32 %v655, 16
        %v732 = vrot.slane %v730, 7
        %v733 = vshll.u32 %v655, 16
        %v735 = vor.u32 %v732, %v733
        %v737 = vshrl.u32 %v656, 16
        %v739 = vrot.slane %v737, 7
        %v740 = vshll.u32 %v656, 16
        %v742 = vor.u32 %v739, %v740
        %v744 = vshrl.u32 %v657, 16
        %v746 = vrot.slane %v744, 7
        %v747 = vshll.u32 %v657, 16
        %v749 = vor.u32 %v746, %v747
        %v751 = vshrl.u32 %v658, 16
        %v753 = vrot.slane %v751, 7
        %v754 = vshll.u32 %v658, 16
        %v756 = vor.u32 %v753, %v754
        %v758 = vshrl.u32 %v659, 16
        %v760 = vrot.slane %v758, 7
        %v761 = vshll.u32 %v659, 16
        %v763 = vor.u32 %v760, %v761
        %v765 = vshrl.u32 %v660, 16
        %v767 = vrot.slane %v765, 7
        %v768 = vshll.u32 %v660, 16
        %v770 = vor.u32 %v767, %v768
        %v772 = vshrl.u32 %v661, 16
        %v774 = vrot.slane %v772, 7
        %v775 = vshll.u32 %v661, 16
        %v777 = vor.u32 %v774, %v775
        %v779 = vshrl.u32 %v662, 16
        %v781 = vrot.slane %v779, 7
        %v782 = vshll.u32 %v662, 16
        %v784 = vor.u32 %v781, %v782
        %v786 = vshrl.u32 %v663, 16
        %v788 = vrot.slane %v786, 7
        %v789 = vshll.u32 %v663, 16
        %v791 = vor.u32 %v788, %v789
        %v793 = vshrl.u32 %v664, 16
        %v795 = vrot.slane %v793, 7
        %v796 = vshll.u32 %v664, 16
        %v798 = vor.u32 %v795, %v796
        %v800 = vshrl.u32 %v665, 16
        %v802 = vrot.slane %v800, 7
        %v803 = vshll.u32 %v665, 16
        %v805 = vor.u32 %v802, %v803
        %v807 = vshrl.u32 %v666, 16
        %v809 = vrot.slane %v807, 7
        %v810 = vshll.u32 %v666, 16
        %v812 = vor.u32 %v809, %v810
        %v814 = vshrl.u32 %v667, 16
        %v816 = vrot.slane %v814, 7
        %v817 = vshll.u32 %v667, 16
        %v819 = vor.u32 %v816, %v817
        %v821 = vshrl.u32 %v668, 16
        %v823 = vrot.slane %v821, 7
        %v824 = vshll.u32 %v668, 16
        %v826 = vor.u32 %v823, %v824
        %v828 = vshrl.u32 %v669, 16
        %v830 = vrot.slane %v828, 7
        %v831 = vshll.u32 %v669, 16
        %v833 = vor.u32 %v830, %v831
        %v835 = vshrl.u32 %v670, 16
        %v837 = vrot.slane %v835, 7
        %v838 = vshll.u32 %v670, 16
        %v840 = vor.u32 %v837, %v838
        %v842 = vshrl.u32 %v671, 16
        %v844 = vrot.slane %v842, 7
        %v845 = vshll.u32 %v671, 16
        %v847 = vor.u32 %v844, %v845
        %v849 = vshrl.u32 %v672, 16
        %v851 = vrot.slane %v849, 7
        %v852 = vshll.u32 %v672, 16
        %v854 = vor.u32 %v851, %v852
        %v856 = vshrl.u32 %v673, 16
        %v858 = vrot.slane %v856, 7
        %v859 = vshll.u32 %v673, 16
        %v861 = vor.u32 %v858, %v859
        %v863 = vshrl.u32 %v674, 16
        %v865 = vrot.slane %v863, 7
        %v866 = vshll.u32 %v674, 16
        %v868 = vor.u32 %v865, %v866
        %v870 = vshrl.u32 %v675, 16
        %v872 = vrot.slane %v870, 7
        %v873 = vshll.u32 %v675, 16
        %v875 = vor.u32 %v872, %v873
        %v877 = vshrl.u32 %v676, 16
        %v879 = vrot.slane %v877, 7
        %v880 = vshll.u32 %v676, 16
        %v882 = vor.u32 %v879, %v880
        %v884 = vshrl.u32 %v677, 16
        %v886 = vrot.slane %v884, 7
        %v887 = vshll.u32 %v677, 16
        %v889 = vor.u32 %v886, %v887
        %v891 = vshrl.u32 %v678, 16
        %v893 = vrot.slane %v891, 7
        %v894 = vshll.u32 %v678, 16
        %v896 = vor.u32 %v893, %v894
        %v898 = vshrl.u32 %v679, 16
        %v900 = vrot.slane %v898, 7
        %v901 = vshll.u32 %v679, 16
        %v903 = vor.u32 %v900, %v901
        %vm936 = vcmask 1047552
        %vm937 = vsmask.f32 7938
        %vm938 = vmand %vm936, %vm937
        %v939 = vld [vmem:[%s462] sm:$0xff]
        %v940 = vsel %vm938, %v686, %v939
        %941 = vst [vmem:[%s462] sm:$0xff] %v940
        %v942 = vld [vmem:[%s462 + $0x8] sm:$0xff]
        %v943 = vsel %vm938, %v693, %v942
        %944 = vst [vmem:[%s462 + $0x8] sm:$0xff] %v943
        %v945 = vld [vmem:[%s462 + $0x30] sm:$0xff]
        %v946 = vsel %vm938, %v700, %v945
        %947 = vst [vmem:[%s462 + $0x30] sm:$0xff] %v946
        %v948 = vld [vmem:[%s462 + $0x38] sm:$0xff]
        %v949 = vsel %vm938, %v707, %v948
        %950 = vst [vmem:[%s462 + $0x38] sm:$0xff] %v949
        %v951 = vld [vmem:[%s462 + $0x60] sm:$0xff]
        %v952 = vsel %vm938, %v714, %v951
        %953 = vst [vmem:[%s462 + $0x60] sm:$0xff] %v952
        %v954 = vld [vmem:[%s462 + $0x68] sm:$0xff]
        %v955 = vsel %vm938, %v721, %v954
        %956 = vst [vmem:[%s462 + $0x68] sm:$0xff] %v955
        %v957 = vld [vmem:[%s462 + $0x90] sm:$0xff]
        %v958 = vsel %vm938, %v728, %v957
        %959 = vst [vmem:[%s462 + $0x90] sm:$0xff] %v958
        %v960 = vld [vmem:[%s462 + $0x98] sm:$0xff]
        %v961 = vsel %vm938, %v735, %v960
        %962 = vst [vmem:[%s462 + $0x98] sm:$0xff] %v961
        %v963 = vld [vmem:[%s462 + $0xc0] sm:$0xff]
        %v964 = vsel %vm938, %v742, %v963
        %965 = vst [vmem:[%s462 + $0xc0] sm:$0xff] %v964
        %v966 = vld [vmem:[%s462 + $0xc8] sm:$0xff]
        %v967 = vsel %vm938, %v749, %v966
        %968 = vst [vmem:[%s462 + $0xc8] sm:$0xff] %v967
        %v969 = vld [vmem:[%s462 + $0xf0] sm:$0xff]
        %v970 = vsel %vm938, %v756, %v969
        %971 = vst [vmem:[%s462 + $0xf0] sm:$0xff] %v970
        %v972 = vld [vmem:[%s462 + $0xf8] sm:$0xff]
        %v973 = vsel %vm938, %v763, %v972
        %974 = vst [vmem:[%s462 + $0xf8] sm:$0xff] %v973
        %v975 = vld [vmem:[%s462 + $0x120] sm:$0xff]
        %v976 = vsel %vm938, %v770, %v975
        %977 = vst [vmem:[%s462 + $0x120] sm:$0xff] %v976
        %v978 = vld [vmem:[%s462 + $0x128] sm:$0xff]
        %v979 = vsel %vm938, %v777, %v978
        %980 = vst [vmem:[%s462 + $0x128] sm:$0xff] %v979
        %v981 = vld [vmem:[%s462 + $0x150] sm:$0xff]
        %v982 = vsel %vm938, %v784, %v981
        %983 = vst [vmem:[%s462 + $0x150] sm:$0xff] %v982
        %v984 = vld [vmem:[%s462 + $0x158] sm:$0xff]
        %v985 = vsel %vm938, %v791, %v984
        %986 = vst [vmem:[%s462 + $0x158] sm:$0xff] %v985
        %v987 = vld [vmem:[%s462 + $0x180] sm:$0xff]
        %v988 = vsel %vm938, %v798, %v987
        %989 = vst [vmem:[%s462 + $0x180] sm:$0xff] %v988
        %v990 = vld [vmem:[%s462 + $0x188] sm:$0xff]
        %v991 = vsel %vm938, %v805, %v990
        %992 = vst [vmem:[%s462 + $0x188] sm:$0xff] %v991
        %v993 = vld [vmem:[%s462 + $0x1b0] sm:$0xff]
        %v994 = vsel %vm938, %v812, %v993
        %995 = vst [vmem:[%s462 + $0x1b0] sm:$0xff] %v994
        %v996 = vld [vmem:[%s462 + $0x1b8] sm:$0xff]
        %v997 = vsel %vm938, %v819, %v996
        %998 = vst [vmem:[%s462 + $0x1b8] sm:$0xff] %v997
        %v999 = vld [vmem:[%s462 + $0x1e0] sm:$0xff]
        %v1000 = vsel %vm938, %v826, %v999
        %1001 = vst [vmem:[%s462 + $0x1e0] sm:$0xff] %v1000
        %v1002 = vld [vmem:[%s462 + $0x1e8] sm:$0xff]
        %v1003 = vsel %vm938, %v833, %v1002
        %1004 = vst [vmem:[%s462 + $0x1e8] sm:$0xff] %v1003
        %v1005 = vld [vmem:[%s462 + $0x210] sm:$0xff]
        %v1006 = vsel %vm938, %v840, %v1005
        %1007 = vst [vmem:[%s462 + $0x210] sm:$0xff] %v1006
        %v1008 = vld [vmem:[%s462 + $0x218] sm:$0xff]
        %v1009 = vsel %vm938, %v847, %v1008
        %1010 = vst [vmem:[%s462 + $0x218] sm:$0xff] %v1009
        %v1011 = vld [vmem:[%s462 + $0x240] sm:$0xff]
        %v1012 = vsel %vm938, %v854, %v1011
        %1013 = vst [vmem:[%s462 + $0x240] sm:$0xff] %v1012
        %v1014 = vld [vmem:[%s462 + $0x248] sm:$0xff]
        %v1015 = vsel %vm938, %v861, %v1014
        %1016 = vst [vmem:[%s462 + $0x248] sm:$0xff] %v1015
        %v1017 = vld [vmem:[%s462 + $0x270] sm:$0xff]
        %v1018 = vsel %vm938, %v868, %v1017
        %1019 = vst [vmem:[%s462 + $0x270] sm:$0xff] %v1018
        %v1020 = vld [vmem:[%s462 + $0x278] sm:$0xff]
        %v1021 = vsel %vm938, %v875, %v1020
        %1022 = vst [vmem:[%s462 + $0x278] sm:$0xff] %v1021
        %v1023 = vld [vmem:[%s462 + $0x2a0] sm:$0xff]
        %v1024 = vsel %vm938, %v882, %v1023
        %1025 = vst [vmem:[%s462 + $0x2a0] sm:$0xff] %v1024
        %v1026 = vld [vmem:[%s462 + $0x2a8] sm:$0xff]
        %v1027 = vsel %vm938, %v889, %v1026
        %1028 = vst [vmem:[%s462 + $0x2a8] sm:$0xff] %v1027
        %v1029 = vld [vmem:[%s462 + $0x2d0] sm:$0xff]
        %v1030 = vsel %vm938, %v896, %v1029
        %1031 = vst [vmem:[%s462 + $0x2d0] sm:$0xff] %v1030
        %v1032 = vld [vmem:[%s462 + $0x2d8] sm:$0xff]
        %v1033 = vsel %vm938, %v903, %v1032
        %1034 = vst [vmem:[%s462 + $0x2d8] sm:$0xff] %v1033
        %v1036 = vshrl.u32 %v501, 16
        %v1038 = vrot.slane %v1036, 7
        %v1039 = vshll.u32 %v501, 16
        %v1041 = vor.u32 %v1038, %v1039
        %v1043 = vshrl.u32 %v502, 16
        %v1045 = vrot.slane %v1043, 7
        %v1046 = vshll.u32 %v502, 16
        %v1048 = vor.u32 %v1045, %v1046
        %v1051 = vld [vmem:[#allocation2] sm:$0xff]
        %v1052 = vsel %vm938, %v1041, %v1051
        %1053 = vst [vmem:[#allocation2] sm:$0xff] %v1052
        %v1054 = vld [vmem:[#allocation2 + $0x8] sm:$0xff]
        %v1055 = vsel %vm938, %v1048, %v1054
        %1056 = vst [vmem:[#allocation2 + $0x8] sm:$0xff] %v1055
        %v1058 = vshrl.u32 %v513, 16
        %v1060 = vrot.slane %v1058, 7
        %v1061 = vshll.u32 %v513, 16
        %v1063 = vor.u32 %v1060, %v1061
        %v1065 = vshrl.u32 %v514, 16
        %v1067 = vrot.slane %v1065, 7
        %v1068 = vshll.u32 %v514, 16
        %v1070 = vor.u32 %v1067, %v1068
        %v1073 = vld [vmem:[%s517] sm:$0xff]
        %v1074 = vsel %vm938, %v1063, %v1073
        %1075 = vst [vmem:[%s517] sm:$0xff] %v1074
        %v1076 = vld [vmem:[%s517 + $0x8] sm:$0xff]
        %v1077 = vsel %vm938, %v1070, %v1076
        %1078 = vst [vmem:[%s517 + $0x8] sm:$0xff] %v1077
        %vm1079 = vcmask 1040384
        %vm1080 = vsmask.f32 256
        %vm1081 = vmand %vm1079, %vm1080
        %v1082 = vld [vmem:[#allocation2] sm:$0x1]
        %v1083 = vsel %vm1081, 0, %v1082
        %1084 = vst [vmem:[#allocation2] sm:$0x1] %v1083
        %v1085 = vld [vmem:[#allocation2 + $0x8] sm:$0x1]
        %v1086 = vsel %vm1081, 0, %v1085
        %1087 = vst [vmem:[#allocation2 + $0x8] sm:$0x1] %v1086
        %v1088 = vld [vmem:[#allocation2 + $0x30] sm:$0x1]
        %v1089 = vsel %vm1081, 0, %v1088
        %1090 = vst [vmem:[#allocation2 + $0x30] sm:$0x1] %v1089
        %v1091 = vld [vmem:[#allocation2 + $0x38] sm:$0x1]
        %v1092 = vsel %vm1081, 0, %v1091
        %1093 = vst [vmem:[#allocation2 + $0x38] sm:$0x1] %v1092
        %v1094 = vld [vmem:[#allocation2 + $0x60] sm:$0x1]
        %v1095 = vsel %vm1081, 0, %v1094
        %1096 = vst [vmem:[#allocation2 + $0x60] sm:$0x1] %v1095
        %v1097 = vld [vmem:[#allocation2 + $0x68] sm:$0x1]
        %v1098 = vsel %vm1081, 0, %v1097
        %1099 = vst [vmem:[#allocation2 + $0x68] sm:$0x1] %v1098
        %v1100 = vld [vmem:[#allocation2 + $0x90] sm:$0x1]
        %v1101 = vsel %vm1081, 0, %v1100
        %1102 = vst [vmem:[#allocation2 + $0x90] sm:$0x1] %v1101
        %v1103 = vld [vmem:[#allocation2 + $0x98] sm:$0x1]
        %v1104 = vsel %vm1081, 0, %v1103
        %1105 = vst [vmem:[#allocation2 + $0x98] sm:$0x1] %v1104
        %v1106 = vld [vmem:[#allocation2 + $0xc0] sm:$0x1]
        %v1107 = vsel %vm1081, 0, %v1106
        %1108 = vst [vmem:[#allocation2 + $0xc0] sm:$0x1] %v1107
        %v1109 = vld [vmem:[#allocation2 + $0xc8] sm:$0x1]
        %v1110 = vsel %vm1081, 0, %v1109
        %1111 = vst [vmem:[#allocation2 + $0xc8] sm:$0x1] %v1110
        %v1112 = vld [vmem:[#allocation2 + $0xf0] sm:$0x1]
        %v1113 = vsel %vm1081, 0, %v1112
        %1114 = vst [vmem:[#allocation2 + $0xf0] sm:$0x1] %v1113
        %v1115 = vld [vmem:[#allocation2 + $0xf8] sm:$0x1]
        %v1116 = vsel %vm1081, 0, %v1115
        %1117 = vst [vmem:[#allocation2 + $0xf8] sm:$0x1] %v1116
        %v1118 = vld [vmem:[#allocation2 + $0x120] sm:$0x1]
        %v1119 = vsel %vm1081, 0, %v1118
        %1120 = vst [vmem:[#allocation2 + $0x120] sm:$0x1] %v1119
        %v1121 = vld [vmem:[#allocation2 + $0x128] sm:$0x1]
        %v1122 = vsel %vm1081, 0, %v1121
        %1123 = vst [vmem:[#allocation2 + $0x128] sm:$0x1] %v1122
        %v1124 = vld [vmem:[#allocation2 + $0x150] sm:$0x1]
        %v1125 = vsel %vm1081, 0, %v1124
        %1126 = vst [vmem:[#allocation2 + $0x150] sm:$0x1] %v1125
        %v1127 = vld [vmem:[#allocation2 + $0x158] sm:$0x1]
        %v1128 = vsel %vm1081, 0, %v1127
        %1129 = vst [vmem:[#allocation2 + $0x158] sm:$0x1] %v1128
        %v1130 = vld [vmem:[#allocation2 + $0x180] sm:$0x1]
        %v1131 = vsel %vm1081, 0, %v1130
        %1132 = vst [vmem:[#allocation2 + $0x180] sm:$0x1] %v1131
        %v1133 = vld [vmem:[#allocation2 + $0x188] sm:$0x1]
        %v1134 = vsel %vm1081, 0, %v1133
        %1135 = vst [vmem:[#allocation2 + $0x188] sm:$0x1] %v1134
        %v1136 = vld [vmem:[#allocation2 + $0x1b0] sm:$0x1]
        %v1137 = vsel %vm1081, 0, %v1136
        %1138 = vst [vmem:[#allocation2 + $0x1b0] sm:$0x1] %v1137
        %v1139 = vld [vmem:[#allocation2 + $0x1b8] sm:$0x1]
        %v1140 = vsel %vm1081, 0, %v1139
        %1141 = vst [vmem:[#allocation2 + $0x1b8] sm:$0x1] %v1140
        %v1142 = vld [vmem:[#allocation2 + $0x1e0] sm:$0x1]
        %v1143 = vsel %vm1081, 0, %v1142
        %1144 = vst [vmem:[#allocation2 + $0x1e0] sm:$0x1] %v1143
        %v1145 = vld [vmem:[#allocation2 + $0x1e8] sm:$0x1]
        %v1146 = vsel %vm1081, 0, %v1145
        %1147 = vst [vmem:[#allocation2 + $0x1e8] sm:$0x1] %v1146
        %v1148 = vld [vmem:[#allocation2 + $0x210] sm:$0x1]
        %v1149 = vsel %vm1081, 0, %v1148
        %1150 = vst [vmem:[#allocation2 + $0x210] sm:$0x1] %v1149
        %v1151 = vld [vmem:[#allocation2 + $0x218] sm:$0x1]
        %v1152 = vsel %vm1081, 0, %v1151
        %1153 = vst [vmem:[#allocation2 + $0x218] sm:$0x1] %v1152
        %v1154 = vld [vmem:[#allocation2 + $0x240] sm:$0x1]
        %v1155 = vsel %vm1081, 0, %v1154
        %1156 = vst [vmem:[#allocation2 + $0x240] sm:$0x1] %v1155
        %v1157 = vld [vmem:[#allocation2 + $0x248] sm:$0x1]
        %v1158 = vsel %vm1081, 0, %v1157
        %1159 = vst [vmem:[#allocation2 + $0x248] sm:$0x1] %v1158
        %v1160 = vld [vmem:[#allocation2 + $0x270] sm:$0x1]
        %v1161 = vsel %vm1081, 0, %v1160
        %1162 = vst [vmem:[#allocation2 + $0x270] sm:$0x1] %v1161
        %v1163 = vld [vmem:[#allocation2 + $0x278] sm:$0x1]
        %v1164 = vsel %vm1081, 0, %v1163
        %1165 = vst [vmem:[#allocation2 + $0x278] sm:$0x1] %v1164
        %v1166 = vld [vmem:[#allocation2 + $0x2a0] sm:$0x1]
        %v1167 = vsel %vm1081, 0, %v1166
        %1168 = vst [vmem:[#allocation2 + $0x2a0] sm:$0x1] %v1167
        %v1169 = vld [vmem:[#allocation2 + $0x2a8] sm:$0x1]
        %v1170 = vsel %vm1081, 0, %v1169
        %1171 = vst [vmem:[#allocation2 + $0x2a8] sm:$0x1] %v1170
        %v1172 = vld [vmem:[#allocation2 + $0x2d0] sm:$0x1]
        %v1173 = vsel %vm1081, 0, %v1172
        %1174 = vst [vmem:[#allocation2 + $0x2d0] sm:$0x1] %v1173
        %v1175 = vld [vmem:[#allocation2 + $0x2d8] sm:$0x1]
        %v1176 = vsel %vm1081, 0, %v1175
        %1177 = vst [vmem:[#allocation2 + $0x2d8] sm:$0x1] %v1176
        %v1178 = vld [vmem:[#allocation2 + $0x300] sm:$0x1]
        %v1179 = vsel %vm1081, 0, %v1178
        %1180 = vst [vmem:[#allocation2 + $0x300] sm:$0x1] %v1179
        %v1181 = vld [vmem:[#allocation2 + $0x308] sm:$0x1]
        %v1182 = vsel %vm1081, 0, %v1181
        %1183 = vst [vmem:[#allocation2 + $0x308] sm:$0x1] %v1182
        %v1184 = vld [vmem:[#allocation2 + $0x330] sm:$0x1]
        %v1185 = vsel %vm1081, 0, %v1184
        %1186 = vst [vmem:[#allocation2 + $0x330] sm:$0x1] %v1185
        %v1187 = vld [vmem:[#allocation2 + $0x338] sm:$0x1]
        %v1188 = vsel %vm1081, 0, %v1187
        %1189 = vst [vmem:[#allocation2 + $0x338] sm:$0x1] %v1188
        %v1190 = vld [vmem:[%s252] sm:$0xff]
        %v1191 = vld [vmem:[%s252 + $0x8] sm:$0xff]
        %v1192 = vld [vmem:[%s252 + $0x10] sm:$0xff]
        %v1193 = vld [vmem:[%s252 + $0x18] sm:$0xff]
        %v1194 = vld [vmem:[%s252 + $0x20] sm:$0xff]
        %v1195 = vld [vmem:[%s252 + $0x28] sm:$0xff]
        %v1196 = vld [vmem:[%s252 + $0x30] sm:$0xff]
        %v1197 = vld [vmem:[%s252 + $0x38] sm:$0xff]
        %v1198 = vld [vmem:[%s252 + $0x40] sm:$0xff]
        %v1199 = vld [vmem:[%s252 + $0x48] sm:$0xff]
        %v1200 = vld [vmem:[%s252 + $0x50] sm:$0xff]
        %v1201 = vld [vmem:[%s252 + $0x58] sm:$0xff]
        %v1202 = vld [vmem:[%s252 + $0x60] sm:$0xff]
        %v1203 = vld [vmem:[%s252 + $0x68] sm:$0xff]
        %v1204 = vld [vmem:[%s252 + $0x70] sm:$0xff]
        %v1205 = vld [vmem:[%s252 + $0x78] sm:$0xff]
        %v1206 = vld [vmem:[%s252 + $0x80] sm:$0xff]
        %v1207 = vld [vmem:[%s252 + $0x88] sm:$0xff]
        %v1208 = vld [vmem:[%s252 + $0x90] sm:$0xff]
        %v1209 = vld [vmem:[%s252 + $0x98] sm:$0xff]
        %v1210 = vld [vmem:[%s252 + $0xa0] sm:$0xff]
        %v1211 = vld [vmem:[%s252 + $0xa8] sm:$0xff]
        %v1212 = vld [vmem:[%s252 + $0xb0] sm:$0xff]
        %v1213 = vld [vmem:[%s252 + $0xb8] sm:$0xff]
        %v1214 = vld [vmem:[%s252 + $0xc0] sm:$0xff]
        %v1215 = vld [vmem:[%s252 + $0xc8] sm:$0xff]
        %v1216 = vld [vmem:[%s252 + $0xd0] sm:$0xff]
        %v1217 = vld [vmem:[%s252 + $0xd8] sm:$0xff]
        %v1218 = vld [vmem:[%s252 + $0xe0] sm:$0xff]
        %v1219 = vld [vmem:[%s252 + $0xe8] sm:$0xff]
        %v1220 = vld [vmem:[%s252 + $0xf0] sm:$0xff]
        %v1221 = vld [vmem:[%s252 + $0xf8] sm:$0xff]
        %v1254 = vunpack.c.l.b16 %v1190
        %v1255 = vunpack.c.h.b16 %v1190
        %v1256 = vunpack.c.l.b16 %v1191
        %v1257 = vunpack.c.h.b16 %v1191
        %v1258 = vunpack.c.l.b16 %v1192
        %v1259 = vunpack.c.h.b16 %v1192
        %v1260 = vunpack.c.l.b16 %v1193
        %v1261 = vunpack.c.h.b16 %v1193
        %v1262 = vunpack.c.l.b16 %v1194
        %v1263 = vunpack.c.h.b16 %v1194
        %v1264 = vunpack.c.l.b16 %v1195
        %v1265 = vunpack.c.h.b16 %v1195
        %v1266 = vunpack.c.l.b16 %v1196
        %v1267 = vunpack.c.h.b16 %v1196
        %v1268 = vunpack.c.l.b16 %v1197
        %v1269 = vunpack.c.h.b16 %v1197
        %v1270 = vunpack.c.l.b16 %v1198
        %v1271 = vunpack.c.h.b16 %v1198
        %v1272 = vunpack.c.l.b16 %v1199
        %v1273 = vunpack.c.h.b16 %v1199
        %v1274 = vunpack.c.l.b16 %v1200
        %v1275 = vunpack.c.h.b16 %v1200
        %v1276 = vunpack.c.l.b16 %v1201
        %v1277 = vunpack.c.h.b16 %v1201
        %v1278 = vunpack.c.l.b16 %v1202
        %v1279 = vunpack.c.h.b16 %v1202
        %v1280 = vunpack.c.l.b16 %v1203
        %v1281 = vunpack.c.h.b16 %v1203
        %v1282 = vunpack.c.l.b16 %v1204
        %v1283 = vunpack.c.h.b16 %v1204
        %v1284 = vunpack.c.l.b16 %v1205
        %v1285 = vunpack.c.h.b16 %v1205
        %v1286 = vunpack.c.l.b16 %v1206
        %v1287 = vunpack.c.h.b16 %v1206
        %v1288 = vunpack.c.l.b16 %v1207
        %v1289 = vunpack.c.h.b16 %v1207
        %v1290 = vunpack.c.l.b16 %v1208
        %v1291 = vunpack.c.h.b16 %v1208
        %v1292 = vunpack.c.l.b16 %v1209
        %v1293 = vunpack.c.h.b16 %v1209
        %v1294 = vunpack.c.l.b16 %v1210
        %v1295 = vunpack.c.h.b16 %v1210
        %v1296 = vunpack.c.l.b16 %v1211
        %v1297 = vunpack.c.h.b16 %v1211
        %v1298 = vunpack.c.l.b16 %v1212
        %v1299 = vunpack.c.h.b16 %v1212
        %v1300 = vunpack.c.l.b16 %v1213
        %v1301 = vunpack.c.h.b16 %v1213
        %v1302 = vunpack.c.l.b16 %v1214
        %v1303 = vunpack.c.h.b16 %v1214
        %v1304 = vunpack.c.l.b16 %v1215
        %v1305 = vunpack.c.h.b16 %v1215
        %v1306 = vunpack.c.l.b16 %v1216
        %v1307 = vunpack.c.h.b16 %v1216
        %v1308 = vunpack.c.l.b16 %v1217
        %v1309 = vunpack.c.h.b16 %v1217
        %v1310 = vunpack.c.l.b16 %v1218
        %v1311 = vunpack.c.h.b16 %v1218
        %v1312 = vunpack.c.l.b16 %v1219
        %v1313 = vunpack.c.h.b16 %v1219
        %v1314 = vunpack.c.l.b16 %v1220
        %v1315 = vunpack.c.h.b16 %v1220
        %v1316 = vunpack.c.l.b16 %v1221
        %v1317 = vunpack.c.h.b16 %v1221
        %v1318 = vpack.c.b16 %v1256, %v1254
        %v1319 = vpack.c.b16 %v1257, %v1255
        %v1320 = vpack.c.b16 %v1260, %v1258
        %v1321 = vpack.c.b16 %v1261, %v1259
        %v1322 = vpack.c.b16 %v1264, %v1262
        %v1323 = vpack.c.b16 %v1265, %v1263
        %v1324 = vpack.c.b16 %v1268, %v1266
        %v1325 = vpack.c.b16 %v1269, %v1267
        %v1326 = vpack.c.b16 %v1272, %v1270
        %v1327 = vpack.c.b16 %v1273, %v1271
        %v1328 = vpack.c.b16 %v1276, %v1274
        %v1329 = vpack.c.b16 %v1277, %v1275
        %v1330 = vpack.c.b16 %v1280, %v1278
        %v1331 = vpack.c.b16 %v1281, %v1279
        %v1332 = vpack.c.b16 %v1284, %v1282
        %v1333 = vpack.c.b16 %v1285, %v1283
        %v1334 = vpack.c.b16 %v1288, %v1286
        %v1335 = vpack.c.b16 %v1289, %v1287
        %v1336 = vpack.c.b16 %v1292, %v1290
        %v1337 = vpack.c.b16 %v1293, %v1291
        %v1338 = vpack.c.b16 %v1296, %v1294
        %v1339 = vpack.c.b16 %v1297, %v1295
        %v1340 = vpack.c.b16 %v1300, %v1298
        %v1341 = vpack.c.b16 %v1301, %v1299
        %v1342 = vpack.c.b16 %v1304, %v1302
        %v1343 = vpack.c.b16 %v1305, %v1303
        %v1344 = vpack.c.b16 %v1308, %v1306
        %v1345 = vpack.c.b16 %v1309, %v1307
        %v1346 = vpack.c.b16 %v1312, %v1310
        %v1347 = vpack.c.b16 %v1313, %v1311
        %v1348 = vpack.c.b16 %v1316, %v1314
        %v1349 = vpack.c.b16 %v1317, %v1315
        %v1351 = vshrl.u32 %v1318, 16
        %v1353 = vshll.u32 %v1318, 16
        %v1355 = vrot.slane %v1353, 1
        %v1356 = vor.u32 %v1351, %v1355
        %v1358 = vshrl.u32 %v1319, 16
        %v1360 = vshll.u32 %v1319, 16
        %v1362 = vrot.slane %v1360, 1
        %v1363 = vor.u32 %v1358, %v1362
        %v1365 = vshrl.u32 %v1320, 16
        %v1367 = vshll.u32 %v1320, 16
        %v1369 = vrot.slane %v1367, 1
        %v1370 = vor.u32 %v1365, %v1369
        %v1372 = vshrl.u32 %v1321, 16
        %v1374 = vshll.u32 %v1321, 16
        %v1376 = vrot.slane %v1374, 1
        %v1377 = vor.u32 %v1372, %v1376
        %v1379 = vshrl.u32 %v1322, 16
        %v1381 = vshll.u32 %v1322, 16
        %v1383 = vrot.slane %v1381, 1
        %v1384 = vor.u32 %v1379, %v1383
        %v1386 = vshrl.u32 %v1323, 16
        %v1388 = vshll.u32 %v1323, 16
        %v1390 = vrot.slane %v1388, 1
        %v1391 = vor.u32 %v1386, %v1390
        %v1393 = vshrl.u32 %v1324, 16
        %v1395 = vshll.u32 %v1324, 16
        %v1397 = vrot.slane %v1395, 1
        %v1398 = vor.u32 %v1393, %v1397
        %v1400 = vshrl.u32 %v1325, 16
        %v1402 = vshll.u32 %v1325, 16
        %v1404 = vrot.slane %v1402, 1
        %v1405 = vor.u32 %v1400, %v1404
        %v1407 = vshrl.u32 %v1326, 16
        %v1409 = vshll.u32 %v1326, 16
        %v1411 = vrot.slane %v1409, 1
        %v1412 = vor.u32 %v1407, %v1411
        %v1414 = vshrl.u32 %v1327, 16
        %v1416 = vshll.u32 %v1327, 16
        %v1418 = vrot.slane %v1416, 1
        %v1419 = vor.u32 %v1414, %v1418
        %v1421 = vshrl.u32 %v1328, 16
        %v1423 = vshll.u32 %v1328, 16
        %v1425 = vrot.slane %v1423, 1
        %v1426 = vor.u32 %v1421, %v1425
        %v1428 = vshrl.u32 %v1329, 16
        %v1430 = vshll.u32 %v1329, 16
        %v1432 = vrot.slane %v1430, 1
        %v1433 = vor.u32 %v1428, %v1432
        %v1435 = vshrl.u32 %v1330, 16
        %v1437 = vshll.u32 %v1330, 16
        %v1439 = vrot.slane %v1437, 1
        %v1440 = vor.u32 %v1435, %v1439
        %v1442 = vshrl.u32 %v1331, 16
        %v1444 = vshll.u32 %v1331, 16
        %v1446 = vrot.slane %v1444, 1
        %v1447 = vor.u32 %v1442, %v1446
        %v1449 = vshrl.u32 %v1332, 16
        %v1451 = vshll.u32 %v1332, 16
        %v1453 = vrot.slane %v1451, 1
        %v1454 = vor.u32 %v1449, %v1453
        %v1456 = vshrl.u32 %v1333, 16
        %v1458 = vshll.u32 %v1333, 16
        %v1460 = vrot.slane %v1458, 1
        %v1461 = vor.u32 %v1456, %v1460
        %v1463 = vshrl.u32 %v1334, 16
        %v1465 = vshll.u32 %v1334, 16
        %v1467 = vrot.slane %v1465, 1
        %v1468 = vor.u32 %v1463, %v1467
        %v1470 = vshrl.u32 %v1335, 16
        %v1472 = vshll.u32 %v1335, 16
        %v1474 = vrot.slane %v1472, 1
        %v1475 = vor.u32 %v1470, %v1474
        %v1477 = vshrl.u32 %v1336, 16
        %v1479 = vshll.u32 %v1336, 16
        %v1481 = vrot.slane %v1479, 1
        %v1482 = vor.u32 %v1477, %v1481
        %v1484 = vshrl.u32 %v1337, 16
        %v1486 = vshll.u32 %v1337, 16
        %v1488 = vrot.slane %v1486, 1
        %v1489 = vor.u32 %v1484, %v1488
        %v1491 = vshrl.u32 %v1338, 16
        %v1493 = vshll.u32 %v1338, 16
        %v1495 = vrot.slane %v1493, 1
        %v1496 = vor.u32 %v1491, %v1495
        %v1498 = vshrl.u32 %v1339, 16
        %v1500 = vshll.u32 %v1339, 16
        %v1502 = vrot.slane %v1500, 1
        %v1503 = vor.u32 %v1498, %v1502
        %v1505 = vshrl.u32 %v1340, 16
        %v1507 = vshll.u32 %v1340, 16
        %v1509 = vrot.slane %v1507, 1
        %v1510 = vor.u32 %v1505, %v1509
        %v1512 = vshrl.u32 %v1341, 16
        %v1514 = vshll.u32 %v1341, 16
        %v1516 = vrot.slane %v1514, 1
        %v1517 = vor.u32 %v1512, %v1516
        %v1519 = vshrl.u32 %v1342, 16
        %v1521 = vshll.u32 %v1342, 16
        %v1523 = vrot.slane %v1521, 1
        %v1524 = vor.u32 %v1519, %v1523
        %v1526 = vshrl.u32 %v1343, 16
        %v1528 = vshll.u32 %v1343, 16
        %v1530 = vrot.slane %v1528, 1
        %v1531 = vor.u32 %v1526, %v1530
        %v1533 = vshrl.u32 %v1344, 16
        %v1535 = vshll.u32 %v1344, 16
        %v1537 = vrot.slane %v1535, 1
        %v1538 = vor.u32 %v1533, %v1537
        %v1540 = vshrl.u32 %v1345, 16
        %v1542 = vshll.u32 %v1345, 16
        %v1544 = vrot.slane %v1542, 1
        %v1545 = vor.u32 %v1540, %v1544
        %v1547 = vshrl.u32 %v1346, 16
        %v1549 = vshll.u32 %v1346, 16
        %v1551 = vrot.slane %v1549, 1
        %v1552 = vor.u32 %v1547, %v1551
        %v1554 = vshrl.u32 %v1347, 16
        %v1556 = vshll.u32 %v1347, 16
        %v1558 = vrot.slane %v1556, 1
        %v1559 = vor.u32 %v1554, %v1558
        %v1561 = vshrl.u32 %v1348, 16
        %v1563 = vshll.u32 %v1348, 16
        %v1565 = vrot.slane %v1563, 1
        %v1566 = vor.u32 %v1561, %v1565
        %v1568 = vshrl.u32 %v1349, 16
        %v1570 = vshll.u32 %v1349, 16
        %v1572 = vrot.slane %v1570, 1
        %v1573 = vor.u32 %v1568, %v1572
        %vm1606 = vsmask.f32 7424
        %vm1607 = vmand %vm936, %vm1606
        %v1608 = vld [vmem:[%s462 + $0x20] sm:$0xff]
        %v1609 = vsel %vm1607, %v1356, %v1608
        %1610 = vst [vmem:[%s462 + $0x20] sm:$0xff] %v1609
        %v1611 = vld [vmem:[%s462 + $0x28] sm:$0xff]
        %v1612 = vsel %vm1607, %v1363, %v1611
        %1613 = vst [vmem:[%s462 + $0x28] sm:$0xff] %v1612
        %v1614 = vld [vmem:[%s462 + $0x50] sm:$0xff]
        %v1615 = vsel %vm1607, %v1370, %v1614
        %1616 = vst [vmem:[%s462 + $0x50] sm:$0xff] %v1615
        %v1617 = vld [vmem:[%s462 + $0x58] sm:$0xff]
        %v1618 = vsel %vm1607, %v1377, %v1617
        %1619 = vst [vmem:[%s462 + $0x58] sm:$0xff] %v1618
        %v1620 = vld [vmem:[%s462 + $0x80] sm:$0xff]
        %v1621 = vsel %vm1607, %v1384, %v1620
        %1622 = vst [vmem:[%s462 + $0x80] sm:$0xff] %v1621
        %v1623 = vld [vmem:[%s462 + $0x88] sm:$0xff]
        %v1624 = vsel %vm1607, %v1391, %v1623
        %1625 = vst [vmem:[%s462 + $0x88] sm:$0xff] %v1624
        %v1626 = vld [vmem:[%s462 + $0xb0] sm:$0xff]
        %v1627 = vsel %vm1607, %v1398, %v1626
        %1628 = vst [vmem:[%s462 + $0xb0] sm:$0xff] %v1627
        %v1629 = vld [vmem:[%s462 + $0xb8] sm:$0xff]
        %v1630 = vsel %vm1607, %v1405, %v1629
        %1631 = vst [vmem:[%s462 + $0xb8] sm:$0xff] %v1630
        %v1632 = vld [vmem:[%s462 + $0xe0] sm:$0xff]
        %v1633 = vsel %vm1607, %v1412, %v1632
        %1634 = vst [vmem:[%s462 + $0xe0] sm:$0xff] %v1633
        %v1635 = vld [vmem:[%s462 + $0xe8] sm:$0xff]
        %v1636 = vsel %vm1607, %v1419, %v1635
        %1637 = vst [vmem:[%s462 + $0xe8] sm:$0xff] %v1636
        %v1638 = vld [vmem:[%s462 + $0x110] sm:$0xff]
        %v1639 = vsel %vm1607, %v1426, %v1638
        %1640 = vst [vmem:[%s462 + $0x110] sm:$0xff] %v1639
        %v1641 = vld [vmem:[%s462 + $0x118] sm:$0xff]
        %v1642 = vsel %vm1607, %v1433, %v1641
        %1643 = vst [vmem:[%s462 + $0x118] sm:$0xff] %v1642
        %v1644 = vld [vmem:[%s462 + $0x140] sm:$0xff]
        %v1645 = vsel %vm1607, %v1440, %v1644
        %1646 = vst [vmem:[%s462 + $0x140] sm:$0xff] %v1645
        %v1647 = vld [vmem:[%s462 + $0x148] sm:$0xff]
        %v1648 = vsel %vm1607, %v1447, %v1647
        %1649 = vst [vmem:[%s462 + $0x148] sm:$0xff] %v1648
        %v1650 = vld [vmem:[%s462 + $0x170] sm:$0xff]
        %v1651 = vsel %vm1607, %v1454, %v1650
        %1652 = vst [vmem:[%s462 + $0x170] sm:$0xff] %v1651
        %v1653 = vld [vmem:[%s462 + $0x178] sm:$0xff]
        %v1654 = vsel %vm1607, %v1461, %v1653
        %1655 = vst [vmem:[%s462 + $0x178] sm:$0xff] %v1654
        %v1656 = vld [vmem:[%s462 + $0x1a0] sm:$0xff]
        %v1657 = vsel %vm1607, %v1468, %v1656
        %1658 = vst [vmem:[%s462 + $0x1a0] sm:$0xff] %v1657
        %v1659 = vld [vmem:[%s462 + $0x1a8] sm:$0xff]
        %v1660 = vsel %vm1607, %v1475, %v1659
        %1661 = vst [vmem:[%s462 + $0x1a8] sm:$0xff] %v1660
        %v1662 = vld [vmem:[%s462 + $0x1d0] sm:$0xff]
        %v1663 = vsel %vm1607, %v1482, %v1662
        %1664 = vst [vmem:[%s462 + $0x1d0] sm:$0xff] %v1663
        %v1665 = vld [vmem:[%s462 + $0x1d8] sm:$0xff]
        %v1666 = vsel %vm1607, %v1489, %v1665
        %1667 = vst [vmem:[%s462 + $0x1d8] sm:$0xff] %v1666
        %v1668 = vld [vmem:[%s462 + $0x200] sm:$0xff]
        %v1669 = vsel %vm1607, %v1496, %v1668
        %1670 = vst [vmem:[%s462 + $0x200] sm:$0xff] %v1669
        %v1671 = vld [vmem:[%s462 + $0x208] sm:$0xff]
        %v1672 = vsel %vm1607, %v1503, %v1671
        %1673 = vst [vmem:[%s462 + $0x208] sm:$0xff] %v1672
        %v1674 = vld [vmem:[%s462 + $0x230] sm:$0xff]
        %v1675 = vsel %vm1607, %v1510, %v1674
        %1676 = vst [vmem:[%s462 + $0x230] sm:$0xff] %v1675
        %v1677 = vld [vmem:[%s462 + $0x238] sm:$0xff]
        %v1678 = vsel %vm1607, %v1517, %v1677
        %1679 = vst [vmem:[%s462 + $0x238] sm:$0xff] %v1678
        %v1680 = vld [vmem:[%s462 + $0x260] sm:$0xff]
        %v1681 = vsel %vm1607, %v1524, %v1680
        %1682 = vst [vmem:[%s462 + $0x260] sm:$0xff] %v1681
        %v1683 = vld [vmem:[%s462 + $0x268] sm:$0xff]
        %v1684 = vsel %vm1607, %v1531, %v1683
        %1685 = vst [vmem:[%s462 + $0x268] sm:$0xff] %v1684
        %v1686 = vld [vmem:[%s462 + $0x290] sm:$0xff]
        %v1687 = vsel %vm1607, %v1538, %v1686
        %1688 = vst [vmem:[%s462 + $0x290] sm:$0xff] %v1687
        %v1689 = vld [vmem:[%s462 + $0x298] sm:$0xff]
        %v1690 = vsel %vm1607, %v1545, %v1689
        %1691 = vst [vmem:[%s462 + $0x298] sm:$0xff] %v1690
        %v1692 = vld [vmem:[%s462 + $0x2c0] sm:$0xff]
        %v1693 = vsel %vm1607, %v1552, %v1692
        %1694 = vst [vmem:[%s462 + $0x2c0] sm:$0xff] %v1693
        %v1695 = vld [vmem:[%s462 + $0x2c8] sm:$0xff]
        %v1696 = vsel %vm1607, %v1559, %v1695
        %1697 = vst [vmem:[%s462 + $0x2c8] sm:$0xff] %v1696
        %v1698 = vld [vmem:[%s462 + $0x2f0] sm:$0xff]
        %v1699 = vsel %vm1607, %v1566, %v1698
        %1700 = vst [vmem:[%s462 + $0x2f0] sm:$0xff] %v1699
        %v1701 = vld [vmem:[%s462 + $0x2f8] sm:$0xff]
        %v1702 = vsel %vm1607, %v1573, %v1701
        %1703 = vst [vmem:[%s462 + $0x2f8] sm:$0xff] %v1702
        %v1704 = vrot.slane %v1039, 1
        %v1705 = vor.u32 %v1036, %v1704
        %v1706 = vrot.slane %v1046, 1
        %v1707 = vor.u32 %v1043, %v1706
        %v1710 = vld [vmem:[#allocation2 + $0x20] sm:$0xff]
        %v1711 = vsel %vm1607, %v1705, %v1710
        %1712 = vst [vmem:[#allocation2 + $0x20] sm:$0xff] %v1711
        %v1713 = vld [vmem:[#allocation2 + $0x28] sm:$0xff]
        %v1714 = vsel %vm1607, %v1707, %v1713
        %1715 = vst [vmem:[#allocation2 + $0x28] sm:$0xff] %v1714
        %v1716 = vrot.slane %v1061, 1
        %v1717 = vor.u32 %v1058, %v1716
        %v1718 = vrot.slane %v1068, 1
        %v1719 = vor.u32 %v1065, %v1718
        %v1722 = vld [vmem:[%s517 + $0x20] sm:$0xff]
        %v1723 = vsel %vm1607, %v1717, %v1722
        %1724 = vst [vmem:[%s517 + $0x20] sm:$0xff] %v1723
        %v1725 = vld [vmem:[%s517 + $0x28] sm:$0xff]
        %v1726 = vsel %vm1607, %v1719, %v1725
        %1727 = vst [vmem:[%s517 + $0x28] sm:$0xff] %v1726
        %vm1728 = vcmask 1047559
        %vm1729 = vsmask.f32 7966
        %vm1730 = vmand %vm1728, %vm1729
        %v1731 = vld [vmem:[#allocation2 + $0x20] sm:$0x80]
        %v1732 = vsel %vm1730, 0, %v1731
        %1733 = vst [vmem:[#allocation2 + $0x20] sm:$0x80] %v1732
        %v1734 = vld [vmem:[#allocation2 + $0x28] sm:$0x80]
        %v1735 = vsel %vm1730, 0, %v1734
        %1736 = vst [vmem:[#allocation2 + $0x28] sm:$0x80] %v1735
        %v1737 = vld [vmem:[#allocation2 + $0x50] sm:$0x80]
        %v1738 = vsel %vm1730, 0, %v1737
        %1739 = vst [vmem:[#allocation2 + $0x50] sm:$0x80] %v1738
        %v1740 = vld [vmem:[#allocation2 + $0x58] sm:$0x80]
        %v1741 = vsel %vm1730, 0, %v1740
        %1742 = vst [vmem:[#allocation2 + $0x58] sm:$0x80] %v1741
        %v1743 = vld [vmem:[#allocation2 + $0x80] sm:$0x80]
        %v1744 = vsel %vm1730, 0, %v1743
        %1745 = vst [vmem:[#allocation2 + $0x80] sm:$0x80] %v1744
        %v1746 = vld [vmem:[#allocation2 + $0x88] sm:$0x80]
        %v1747 = vsel %vm1730, 0, %v1746
        %1748 = vst [vmem:[#allocation2 + $0x88] sm:$0x80] %v1747
        %v1749 = vld [vmem:[#allocation2 + $0xb0] sm:$0x80]
        %v1750 = vsel %vm1730, 0, %v1749
        %1751 = vst [vmem:[#allocation2 + $0xb0] sm:$0x80] %v1750
        %v1752 = vld [vmem:[#allocation2 + $0xb8] sm:$0x80]
        %v1753 = vsel %vm1730, 0, %v1752
        %1754 = vst [vmem:[#allocation2 + $0xb8] sm:$0x80] %v1753
        %v1755 = vld [vmem:[#allocation2 + $0xe0] sm:$0x80]
        %v1756 = vsel %vm1730, 0, %v1755
        %1757 = vst [vmem:[#allocation2 + $0xe0] sm:$0x80] %v1756
        %v1758 = vld [vmem:[#allocation2 + $0xe8] sm:$0x80]
        %v1759 = vsel %vm1730, 0, %v1758
        %1760 = vst [vmem:[#allocation2 + $0xe8] sm:$0x80] %v1759
        %v1761 = vld [vmem:[#allocation2 + $0x110] sm:$0x80]
        %v1762 = vsel %vm1730, 0, %v1761
        %1763 = vst [vmem:[#allocation2 + $0x110] sm:$0x80] %v1762
        %v1764 = vld [vmem:[#allocation2 + $0x118] sm:$0x80]
        %v1765 = vsel %vm1730, 0, %v1764
        %1766 = vst [vmem:[#allocation2 + $0x118] sm:$0x80] %v1765
        %v1767 = vld [vmem:[#allocation2 + $0x140] sm:$0x80]
        %v1768 = vsel %vm1730, 0, %v1767
        %1769 = vst [vmem:[#allocation2 + $0x140] sm:$0x80] %v1768
        %v1770 = vld [vmem:[#allocation2 + $0x148] sm:$0x80]
        %v1771 = vsel %vm1730, 0, %v1770
        %1772 = vst [vmem:[#allocation2 + $0x148] sm:$0x80] %v1771
        %v1773 = vld [vmem:[#allocation2 + $0x170] sm:$0x80]
        %v1774 = vsel %vm1730, 0, %v1773
        %1775 = vst [vmem:[#allocation2 + $0x170] sm:$0x80] %v1774
        %v1776 = vld [vmem:[#allocation2 + $0x178] sm:$0x80]
        %v1777 = vsel %vm1730, 0, %v1776
        %1778 = vst [vmem:[#allocation2 + $0x178] sm:$0x80] %v1777
        %v1779 = vld [vmem:[#allocation2 + $0x1a0] sm:$0x80]
        %v1780 = vsel %vm1730, 0, %v1779
        %1781 = vst [vmem:[#allocation2 + $0x1a0] sm:$0x80] %v1780
        %v1782 = vld [vmem:[#allocation2 + $0x1a8] sm:$0x80]
        %v1783 = vsel %vm1730, 0, %v1782
        %1784 = vst [vmem:[#allocation2 + $0x1a8] sm:$0x80] %v1783
        %v1785 = vld [vmem:[#allocation2 + $0x1d0] sm:$0x80]
        %v1786 = vsel %vm1730, 0, %v1785
        %1787 = vst [vmem:[#allocation2 + $0x1d0] sm:$0x80] %v1786
        %v1788 = vld [vmem:[#allocation2 + $0x1d8] sm:$0x80]
        %v1789 = vsel %vm1730, 0, %v1788
        %1790 = vst [vmem:[#allocation2 + $0x1d8] sm:$0x80] %v1789
        %v1791 = vld [vmem:[#allocation2 + $0x200] sm:$0x80]
        %v1792 = vsel %vm1730, 0, %v1791
        %1793 = vst [vmem:[#allocation2 + $0x200] sm:$0x80] %v1792
        %v1794 = vld [vmem:[#allocation2 + $0x208] sm:$0x80]
        %v1795 = vsel %vm1730, 0, %v1794
        %1796 = vst [vmem:[#allocation2 + $0x208] sm:$0x80] %v1795
        %v1797 = vld [vmem:[#allocation2 + $0x230] sm:$0x80]
        %v1798 = vsel %vm1730, 0, %v1797
        %1799 = vst [vmem:[#allocation2 + $0x230] sm:$0x80] %v1798
        %v1800 = vld [vmem:[#allocation2 + $0x238] sm:$0x80]
        %v1801 = vsel %vm1730, 0, %v1800
        %1802 = vst [vmem:[#allocation2 + $0x238] sm:$0x80] %v1801
        %v1803 = vld [vmem:[#allocation2 + $0x260] sm:$0x80]
        %v1804 = vsel %vm1730, 0, %v1803
        %1805 = vst [vmem:[#allocation2 + $0x260] sm:$0x80] %v1804
        %v1806 = vld [vmem:[#allocation2 + $0x268] sm:$0x80]
        %v1807 = vsel %vm1730, 0, %v1806
        %1808 = vst [vmem:[#allocation2 + $0x268] sm:$0x80] %v1807
        %v1809 = vld [vmem:[#allocation2 + $0x290] sm:$0x80]
        %v1810 = vsel %vm1730, 0, %v1809
        %1811 = vst [vmem:[#allocation2 + $0x290] sm:$0x80] %v1810
        %v1812 = vld [vmem:[#allocation2 + $0x298] sm:$0x80]
        %v1813 = vsel %vm1730, 0, %v1812
        %1814 = vst [vmem:[#allocation2 + $0x298] sm:$0x80] %v1813
        %v1815 = vld [vmem:[#allocation2 + $0x2c0] sm:$0x80]
        %v1816 = vsel %vm1730, 0, %v1815
        %1817 = vst [vmem:[#allocation2 + $0x2c0] sm:$0x80] %v1816
        %v1818 = vld [vmem:[#allocation2 + $0x2c8] sm:$0x80]
        %v1819 = vsel %vm1730, 0, %v1818
        %1820 = vst [vmem:[#allocation2 + $0x2c8] sm:$0x80] %v1819
        %v1821 = vld [vmem:[#allocation2 + $0x2f0] sm:$0x80]
        %v1822 = vsel %vm1730, 0, %v1821
        %1823 = vst [vmem:[#allocation2 + $0x2f0] sm:$0x80] %v1822
        %v1824 = vld [vmem:[#allocation2 + $0x2f8] sm:$0x80]
        %v1825 = vsel %vm1730, 0, %v1824
        %1826 = vst [vmem:[#allocation2 + $0x2f8] sm:$0x80] %v1825
        %v1827 = vld [vmem:[#allocation2 + $0x320] sm:$0x80]
        %v1828 = vsel %vm1730, 0, %v1827
        %1829 = vst [vmem:[#allocation2 + $0x320] sm:$0x80] %v1828
        %v1830 = vld [vmem:[#allocation2 + $0x328] sm:$0x80]
        %v1831 = vsel %vm1730, 0, %v1830
        %1832 = vst [vmem:[#allocation2 + $0x328] sm:$0x80] %v1831
        %v1833 = vld [vmem:[#allocation2 + $0x350] sm:$0x80]
        %v1834 = vsel %vm1730, 0, %v1833
        %1835 = vst [vmem:[#allocation2 + $0x350] sm:$0x80] %v1834
        %v1836 = vld [vmem:[#allocation2 + $0x358] sm:$0x80]
        %v1837 = vsel %vm1730, 0, %v1836
        %1838 = vst [vmem:[#allocation2 + $0x358] sm:$0x80] %v1837
        %v1839 = vld [vmem:[#allocation2] sm:$0xff]
        %v1840 = vld [vmem:[#allocation2 + $0x8] sm:$0xff]
        %v1841 = vld [vmem:[#allocation2 + $0x10] sm:$0xff]
        %v1842 = vld [vmem:[#allocation2 + $0x18] sm:$0xff]
        %v1843 = vld [vmem:[#allocation2 + $0x20] sm:$0xff]
        %v1844 = vld [vmem:[#allocation2 + $0x28] sm:$0xff]
        %v1845 = vld [vmem:[#allocation2 + $0x30] sm:$0xff]
        %v1846 = vld [vmem:[#allocation2 + $0x38] sm:$0xff]
        %v1847 = vld [vmem:[#allocation2 + $0x40] sm:$0xff]
        %v1848 = vld [vmem:[#allocation2 + $0x48] sm:$0xff]
        %v1849 = vld [vmem:[#allocation2 + $0x50] sm:$0xff]
        %v1850 = vld [vmem:[#allocation2 + $0x58] sm:$0xff]
        %v1851 = vld [vmem:[#allocation2 + $0x60] sm:$0xff]
        %v1852 = vld [vmem:[#allocation2 + $0x68] sm:$0xff]
        %v1853 = vld [vmem:[#allocation2 + $0x70] sm:$0xff]
        %v1854 = vld [vmem:[#allocation2 + $0x78] sm:$0xff]
        %v1855 = vld [vmem:[#allocation2 + $0x80] sm:$0xff]
        %v1856 = vld [vmem:[#allocation2 + $0x88] sm:$0xff]
        %v1857 = vld [vmem:[#allocation2 + $0x90] sm:$0xff]
        %v1858 = vld [vmem:[#allocation2 + $0x98] sm:$0xff]
        %v1859 = vld [vmem:[#allocation2 + $0xa0] sm:$0xff]
        %v1860 = vld [vmem:[#allocation2 + $0xa8] sm:$0xff]
        %v1861 = vld [vmem:[#allocation2 + $0xb0] sm:$0xff]
        %v1862 = vld [vmem:[#allocation2 + $0xb8] sm:$0xff]
        %v1863 = vld [vmem:[#allocation2 + $0xc0] sm:$0xff]
        %v1864 = vld [vmem:[#allocation2 + $0xc8] sm:$0xff]
        %v1865 = vld [vmem:[#allocation2 + $0xd0] sm:$0xff]
        %v1866 = vld [vmem:[#allocation2 + $0xd8] sm:$0xff]
        %v1867 = vld [vmem:[#allocation2 + $0xe0] sm:$0xff]
        %v1868 = vld [vmem:[#allocation2 + $0xe8] sm:$0xff]
        %v1869 = vld [vmem:[#allocation2 + $0xf0] sm:$0xff]
        %v1870 = vld [vmem:[#allocation2 + $0xf8] sm:$0xff]
        %v1871 = vld [vmem:[#allocation2 + $0x100] sm:$0xff]
        %v1872 = vld [vmem:[#allocation2 + $0x108] sm:$0xff]
        %v1873 = vld [vmem:[#allocation2 + $0x110] sm:$0xff]
        %v1874 = vld [vmem:[#allocation2 + $0x118] sm:$0xff]
        %v1875 = vld [vmem:[#allocation2 + $0x120] sm:$0xff]
        %v1876 = vld [vmem:[#allocation2 + $0x128] sm:$0xff]
        %v1877 = vld [vmem:[#allocation2 + $0x130] sm:$0xff]
        %v1878 = vld [vmem:[#allocation2 + $0x138] sm:$0xff]
        %v1879 = vld [vmem:[#allocation2 + $0x140] sm:$0xff]
        %v1880 = vld [vmem:[#allocation2 + $0x148] sm:$0xff]
        %v1881 = vld [vmem:[#allocation2 + $0x150] sm:$0xff]
        %v1882 = vld [vmem:[#allocation2 + $0x158] sm:$0xff]
        %v1883 = vld [vmem:[#allocation2 + $0x160] sm:$0xff]
        %v1884 = vld [vmem:[#allocation2 + $0x168] sm:$0xff]
        %v1885 = vld [vmem:[#allocation2 + $0x170] sm:$0xff]
        %v1886 = vld [vmem:[#allocation2 + $0x178] sm:$0xff]
        %v1887 = vld [vmem:[#allocation2 + $0x180] sm:$0xff]
        %v1888 = vld [vmem:[#allocation2 + $0x188] sm:$0xff]
        %v1889 = vld [vmem:[#allocation2 + $0x190] sm:$0xff]
        %v1890 = vld [vmem:[#allocation2 + $0x198] sm:$0xff]
        %v1891 = vld [vmem:[#allocation2 + $0x1a0] sm:$0xff]
        %v1892 = vld [vmem:[#allocation2 + $0x1a8] sm:$0xff]
        %v1893 = vld [vmem:[#allocation2 + $0x1b0] sm:$0xff]
        %v1894 = vld [vmem:[#allocation2 + $0x1b8] sm:$0xff]
        %v1895 = vld [vmem:[#allocation2 + $0x1c0] sm:$0xff]
        %v1896 = vld [vmem:[#allocation2 + $0x1c8] sm:$0xff]
        %v1897 = vld [vmem:[#allocation2 + $0x1d0] sm:$0xff]
        %v1898 = vld [vmem:[#allocation2 + $0x1d8] sm:$0xff]
        %v1899 = vld [vmem:[#allocation2 + $0x1e0] sm:$0xff]
        %v1900 = vld [vmem:[#allocation2 + $0x1e8] sm:$0xff]
        %v1901 = vld [vmem:[#allocation2 + $0x1f0] sm:$0xff]
        %v1902 = vld [vmem:[#allocation2 + $0x1f8] sm:$0xff]
        %v1903 = vld [vmem:[#allocation2 + $0x200] sm:$0xff]
        %v1904 = vld [vmem:[#allocation2 + $0x208] sm:$0xff]
        %v1905 = vld [vmem:[#allocation2 + $0x210] sm:$0xff]
        %v1906 = vld [vmem:[#allocation2 + $0x218] sm:$0xff]
        %v1907 = vld [vmem:[#allocation2 + $0x220] sm:$0xff]
        %v1908 = vld [vmem:[#allocation2 + $0x228] sm:$0xff]
        %v1909 = vld [vmem:[#allocation2 + $0x230] sm:$0xff]
        %v1910 = vld [vmem:[#allocation2 + $0x238] sm:$0xff]
        %v1911 = vld [vmem:[#allocation2 + $0x240] sm:$0xff]
        %v1912 = vld [vmem:[#allocation2 + $0x248] sm:$0xff]
        %v1913 = vld [vmem:[#allocation2 + $0x250] sm:$0xff]
        %v1914 = vld [vmem:[#allocation2 + $0x258] sm:$0xff]
        %v1915 = vld [vmem:[#allocation2 + $0x260] sm:$0xff]
        %v1916 = vld [vmem:[#allocation2 + $0x268] sm:$0xff]
        %v1917 = vld [vmem:[#allocation2 + $0x270] sm:$0xff]
        %v1918 = vld [vmem:[#allocation2 + $0x278] sm:$0xff]
        %v1919 = vld [vmem:[#allocation2 + $0x280] sm:$0xff]
        %v1920 = vld [vmem:[#allocation2 + $0x288] sm:$0xff]
        %v1921 = vld [vmem:[#allocation2 + $0x290] sm:$0xff]
        %v1922 = vld [vmem:[#allocation2 + $0x298] sm:$0xff]
        %v1923 = vld [vmem:[#allocation2 + $0x2a0] sm:$0xff]
        %v1924 = vld [vmem:[#allocation2 + $0x2a8] sm:$0xff]
        %v1925 = vld [vmem:[#allocation2 + $0x2b0] sm:$0xff]
        %v1926 = vld [vmem:[#allocation2 + $0x2b8] sm:$0xff]
        %v1927 = vld [vmem:[#allocation2 + $0x2c0] sm:$0xff]
        %v1928 = vld [vmem:[#allocation2 + $0x2c8] sm:$0xff]
        %v1929 = vld [vmem:[#allocation2 + $0x2d0] sm:$0xff]
        %v1930 = vld [vmem:[#allocation2 + $0x2d8] sm:$0xff]
        %v1931 = vld [vmem:[#allocation2 + $0x2e0] sm:$0xff]
        %v1932 = vld [vmem:[#allocation2 + $0x2e8] sm:$0xff]
        %v1933 = vld [vmem:[#allocation2 + $0x2f0] sm:$0xff]
        %v1934 = vld [vmem:[#allocation2 + $0x2f8] sm:$0xff]
        %v1935 = vld [vmem:[%s462] sm:$0xff]
        %v1936 = vld [vmem:[%s462 + $0x8] sm:$0xff]
        %v1937 = vld [vmem:[%s462 + $0x10] sm:$0xff]
        %v1938 = vld [vmem:[%s462 + $0x18] sm:$0xff]
        %v1939 = vld [vmem:[%s462 + $0x20] sm:$0xff]
        %v1940 = vld [vmem:[%s462 + $0x28] sm:$0xff]
        %v1941 = vld [vmem:[%s462 + $0x30] sm:$0xff]
        %v1942 = vld [vmem:[%s462 + $0x38] sm:$0xff]
        %v1943 = vld [vmem:[%s462 + $0x40] sm:$0xff]
        %v1944 = vld [vmem:[%s462 + $0x48] sm:$0xff]
        %v1945 = vld [vmem:[%s462 + $0x50] sm:$0xff]
        %v1946 = vld [vmem:[%s462 + $0x58] sm:$0xff]
        %v1947 = vld [vmem:[%s462 + $0x60] sm:$0xff]
        %v1948 = vld [vmem:[%s462 + $0x68] sm:$0xff]
        %v1949 = vld [vmem:[%s462 + $0x70] sm:$0xff]
        %v1950 = vld [vmem:[%s462 + $0x78] sm:$0xff]
        %v1951 = vld [vmem:[%s462 + $0x80] sm:$0xff]
        %v1952 = vld [vmem:[%s462 + $0x88] sm:$0xff]
        %v1953 = vld [vmem:[%s462 + $0x90] sm:$0xff]
        %v1954 = vld [vmem:[%s462 + $0x98] sm:$0xff]
        %v1955 = vld [vmem:[%s462 + $0xa0] sm:$0xff]
        %v1956 = vld [vmem:[%s462 + $0xa8] sm:$0xff]
        %v1957 = vld [vmem:[%s462 + $0xb0] sm:$0xff]
        %v1958 = vld [vmem:[%s462 + $0xb8] sm:$0xff]
        %v1959 = vld [vmem:[%s462 + $0xc0] sm:$0xff]
        %v1960 = vld [vmem:[%s462 + $0xc8] sm:$0xff]
        %v1961 = vld [vmem:[%s462 + $0xd0] sm:$0xff]
        %v1962 = vld [vmem:[%s462 + $0xd8] sm:$0xff]
        %v1963 = vld [vmem:[%s462 + $0xe0] sm:$0xff]
        %v1964 = vld [vmem:[%s462 + $0xe8] sm:$0xff]
        %v1965 = vld [vmem:[%s462 + $0xf0] sm:$0xff]
        %v1966 = vld [vmem:[%s462 + $0xf8] sm:$0xff]
        %v1967 = vld [vmem:[%s462 + $0x100] sm:$0xff]
        %v1968 = vld [vmem:[%s462 + $0x108] sm:$0xff]
        %v1969 = vld [vmem:[%s462 + $0x110] sm:$0xff]
        %v1970 = vld [vmem:[%s462 + $0x118] sm:$0xff]
        %v1971 = vld [vmem:[%s462 + $0x120] sm:$0xff]
        %v1972 = vld [vmem:[%s462 + $0x128] sm:$0xff]
        %v1973 = vld [vmem:[%s462 + $0x130] sm:$0xff]
        %v1974 = vld [vmem:[%s462 + $0x138] sm:$0xff]
        %v1975 = vld [vmem:[%s462 + $0x140] sm:$0xff]
        %v1976 = vld [vmem:[%s462 + $0x148] sm:$0xff]
        %v1977 = vld [vmem:[%s462 + $0x150] sm:$0xff]
        %v1978 = vld [vmem:[%s462 + $0x158] sm:$0xff]
        %v1979 = vld [vmem:[%s462 + $0x160] sm:$0xff]
        %v1980 = vld [vmem:[%s462 + $0x168] sm:$0xff]
        %v1981 = vld [vmem:[%s462 + $0x170] sm:$0xff]
        %v1982 = vld [vmem:[%s462 + $0x178] sm:$0xff]
        %v1983 = vld [vmem:[%s462 + $0x180] sm:$0xff]
        %v1984 = vld [vmem:[%s462 + $0x188] sm:$0xff]
        %v1985 = vld [vmem:[%s462 + $0x190] sm:$0xff]
        %v1986 = vld [vmem:[%s462 + $0x198] sm:$0xff]
        %v1987 = vld [vmem:[%s462 + $0x1a0] sm:$0xff]
        %v1988 = vld [vmem:[%s462 + $0x1a8] sm:$0xff]
        %v1989 = vld [vmem:[%s462 + $0x1b0] sm:$0xff]
        %v1990 = vld [vmem:[%s462 + $0x1b8] sm:$0xff]
        %v1991 = vld [vmem:[%s462 + $0x1c0] sm:$0xff]
        %v1992 = vld [vmem:[%s462 + $0x1c8] sm:$0xff]
        %v1993 = vld [vmem:[%s462 + $0x1d0] sm:$0xff]
        %v1994 = vld [vmem:[%s462 + $0x1d8] sm:$0xff]
        %v1995 = vld [vmem:[%s462 + $0x1e0] sm:$0xff]
        %v1996 = vld [vmem:[%s462 + $0x1e8] sm:$0xff]
        %v1997 = vld [vmem:[%s462 + $0x1f0] sm:$0xff]
        %v1998 = vld [vmem:[%s462 + $0x1f8] sm:$0xff]
        %v1999 = vld [vmem:[%s462 + $0x200] sm:$0xff]
        %v2000 = vld [vmem:[%s462 + $0x208] sm:$0xff]
        %v2001 = vld [vmem:[%s462 + $0x210] sm:$0xff]
        %v2002 = vld [vmem:[%s462 + $0x218] sm:$0xff]
        %v2003 = vld [vmem:[%s462 + $0x220] sm:$0xff]
        %v2004 = vld [vmem:[%s462 + $0x228] sm:$0xff]
        %v2005 = vld [vmem:[%s462 + $0x230] sm:$0xff]
        %v2006 = vld [vmem:[%s462 + $0x238] sm:$0xff]
        %v2007 = vld [vmem:[%s462 + $0x240] sm:$0xff]
        %v2008 = vld [vmem:[%s462 + $0x248] sm:$0xff]
        %v2009 = vld [vmem:[%s462 + $0x250] sm:$0xff]
        %v2010 = vld [vmem:[%s462 + $0x258] sm:$0xff]
        %v2011 = vld [vmem:[%s462 + $0x260] sm:$0xff]
        %v2012 = vld [vmem:[%s462 + $0x268] sm:$0xff]
        %v2013 = vld [vmem:[%s462 + $0x270] sm:$0xff]
        %v2014 = vld [vmem:[%s462 + $0x278] sm:$0xff]
        %v2015 = vld [vmem:[%s462 + $0x280] sm:$0xff]
        %v2016 = vld [vmem:[%s462 + $0x288] sm:$0xff]
        %v2017 = vld [vmem:[%s462 + $0x290] sm:$0xff]
        %v2018 = vld [vmem:[%s462 + $0x298] sm:$0xff]
        %v2019 = vld [vmem:[%s462 + $0x2a0] sm:$0xff]
        %v2020 = vld [vmem:[%s462 + $0x2a8] sm:$0xff]
        %v2021 = vld [vmem:[%s462 + $0x2b0] sm:$0xff]
        %v2022 = vld [vmem:[%s462 + $0x2b8] sm:$0xff]
        %v2023 = vld [vmem:[%s462 + $0x2c0] sm:$0xff]
        %v2024 = vld [vmem:[%s462 + $0x2c8] sm:$0xff]
        %v2025 = vld [vmem:[%s462 + $0x2d0] sm:$0xff]
        %v2026 = vld [vmem:[%s462 + $0x2d8] sm:$0xff]
        %v2027 = vld [vmem:[%s462 + $0x2e0] sm:$0xff]
        %v2028 = vld [vmem:[%s462 + $0x2e8] sm:$0xff]
        %v2029 = vld [vmem:[%s462 + $0x2f0] sm:$0xff]
        %v2030 = vld [vmem:[%s462 + $0x2f8] sm:$0xff]
        %s2031 = scalar_lea.vmem [#allocation2], 96
        %v2032 = vld [vmem:[%s2031] sm:$0xff]
        %v2033 = vld [vmem:[%s2031 + $0x8] sm:$0xff]
        %v2034 = vld [vmem:[%s2031 + $0x10] sm:$0xff]
        %v2035 = vld [vmem:[%s2031 + $0x18] sm:$0xff]
        %v2036 = vld [vmem:[%s2031 + $0x20] sm:$0xff]
        %v2037 = vld [vmem:[%s2031 + $0x28] sm:$0xff]
        %v2038 = vld [vmem:[%s2031 + $0x30] sm:$0xff]
        %v2039 = vld [vmem:[%s2031 + $0x38] sm:$0xff]
        %v2040 = vld [vmem:[%s2031 + $0x40] sm:$0xff]
        %v2041 = vld [vmem:[%s2031 + $0x48] sm:$0xff]
        %v2042 = vld [vmem:[%s2031 + $0x50] sm:$0xff]
        %v2043 = vld [vmem:[%s2031 + $0x58] sm:$0xff]
        %v2044 = vld [vmem:[%s2031 + $0x60] sm:$0xff]
        %v2045 = vld [vmem:[%s2031 + $0x68] sm:$0xff]
        %v2046 = vld [vmem:[%s2031 + $0x70] sm:$0xff]
        %v2047 = vld [vmem:[%s2031 + $0x78] sm:$0xff]
        %v2048 = vld [vmem:[%s2031 + $0x80] sm:$0xff]
        %v2049 = vld [vmem:[%s2031 + $0x88] sm:$0xff]
        %v2050 = vld [vmem:[%s2031 + $0x90] sm:$0xff]
        %v2051 = vld [vmem:[%s2031 + $0x98] sm:$0xff]
        %v2052 = vld [vmem:[%s2031 + $0xa0] sm:$0xff]
        %v2053 = vld [vmem:[%s2031 + $0xa8] sm:$0xff]
        %v2054 = vld [vmem:[%s2031 + $0xb0] sm:$0xff]
        %v2055 = vld [vmem:[%s2031 + $0xb8] sm:$0xff]
        %v2056 = vld [vmem:[%s2031 + $0xc0] sm:$0xff]
        %v2057 = vld [vmem:[%s2031 + $0xc8] sm:$0xff]
        %v2058 = vld [vmem:[%s2031 + $0xd0] sm:$0xff]
        %v2059 = vld [vmem:[%s2031 + $0xd8] sm:$0xff]
        %v2060 = vld [vmem:[%s2031 + $0xe0] sm:$0xff]
        %v2061 = vld [vmem:[%s2031 + $0xe8] sm:$0xff]
        %v2062 = vld [vmem:[%s2031 + $0xf0] sm:$0xff]
        %v2063 = vld [vmem:[%s2031 + $0xf8] sm:$0xff]
        %v2064 = vld [vmem:[%s2031 + $0x100] sm:$0xff]
        %v2065 = vld [vmem:[%s2031 + $0x108] sm:$0xff]
        %v2066 = vld [vmem:[%s2031 + $0x110] sm:$0xff]
        %v2067 = vld [vmem:[%s2031 + $0x118] sm:$0xff]
        %v2068 = vld [vmem:[%s2031 + $0x120] sm:$0xff]
        %v2069 = vld [vmem:[%s2031 + $0x128] sm:$0xff]
        %v2070 = vld [vmem:[%s2031 + $0x130] sm:$0xff]
        %v2071 = vld [vmem:[%s2031 + $0x138] sm:$0xff]
        %v2072 = vld [vmem:[%s2031 + $0x140] sm:$0xff]
        %v2073 = vld [vmem:[%s2031 + $0x148] sm:$0xff]
        %v2074 = vld [vmem:[%s2031 + $0x150] sm:$0xff]
        %v2075 = vld [vmem:[%s2031 + $0x158] sm:$0xff]
        %v2076 = vld [vmem:[%s2031 + $0x160] sm:$0xff]
        %v2077 = vld [vmem:[%s2031 + $0x168] sm:$0xff]
        %v2078 = vld [vmem:[%s2031 + $0x170] sm:$0xff]
        %v2079 = vld [vmem:[%s2031 + $0x178] sm:$0xff]
        %v2080 = vld [vmem:[%s2031 + $0x180] sm:$0xff]
        %v2081 = vld [vmem:[%s2031 + $0x188] sm:$0xff]
        %v2082 = vld [vmem:[%s2031 + $0x190] sm:$0xff]
        %v2083 = vld [vmem:[%s2031 + $0x198] sm:$0xff]
        %v2084 = vld [vmem:[%s2031 + $0x1a0] sm:$0xff]
        %v2085 = vld [vmem:[%s2031 + $0x1a8] sm:$0xff]
        %v2086 = vld [vmem:[%s2031 + $0x1b0] sm:$0xff]
        %v2087 = vld [vmem:[%s2031 + $0x1b8] sm:$0xff]
        %v2088 = vld [vmem:[%s2031 + $0x1c0] sm:$0xff]
        %v2089 = vld [vmem:[%s2031 + $0x1c8] sm:$0xff]
        %v2090 = vld [vmem:[%s2031 + $0x1d0] sm:$0xff]
        %v2091 = vld [vmem:[%s2031 + $0x1d8] sm:$0xff]
        %v2092 = vld [vmem:[%s2031 + $0x1e0] sm:$0xff]
        %v2093 = vld [vmem:[%s2031 + $0x1e8] sm:$0xff]
        %v2094 = vld [vmem:[%s2031 + $0x1f0] sm:$0xff]
        %v2095 = vld [vmem:[%s2031 + $0x1f8] sm:$0xff]
        %v2096 = vld [vmem:[%s2031 + $0x200] sm:$0xff]
        %v2097 = vld [vmem:[%s2031 + $0x208] sm:$0xff]
        %v2098 = vld [vmem:[%s2031 + $0x210] sm:$0xff]
        %v2099 = vld [vmem:[%s2031 + $0x218] sm:$0xff]
        %v2100 = vld [vmem:[%s2031 + $0x220] sm:$0xff]
        %v2101 = vld [vmem:[%s2031 + $0x228] sm:$0xff]
        %v2102 = vld [vmem:[%s2031 + $0x230] sm:$0xff]
        %v2103 = vld [vmem:[%s2031 + $0x238] sm:$0xff]
        %v2104 = vld [vmem:[%s2031 + $0x240] sm:$0xff]
        %v2105 = vld [vmem:[%s2031 + $0x248] sm:$0xff]
        %v2106 = vld [vmem:[%s2031 + $0x250] sm:$0xff]
        %v2107 = vld [vmem:[%s2031 + $0x258] sm:$0xff]
        %v2108 = vld [vmem:[%s2031 + $0x260] sm:$0xff]
        %v2109 = vld [vmem:[%s2031 + $0x268] sm:$0xff]
        %v2110 = vld [vmem:[%s2031 + $0x270] sm:$0xff]
        %v2111 = vld [vmem:[%s2031 + $0x278] sm:$0xff]
        %v2112 = vld [vmem:[%s2031 + $0x280] sm:$0xff]
        %v2113 = vld [vmem:[%s2031 + $0x288] sm:$0xff]
        %v2114 = vld [vmem:[%s2031 + $0x290] sm:$0xff]
        %v2115 = vld [vmem:[%s2031 + $0x298] sm:$0xff]
        %v2116 = vld [vmem:[%s2031 + $0x2a0] sm:$0xff]
        %v2117 = vld [vmem:[%s2031 + $0x2a8] sm:$0xff]
        %v2118 = vld [vmem:[%s2031 + $0x2b0] sm:$0xff]
        %v2119 = vld [vmem:[%s2031 + $0x2b8] sm:$0xff]
        %v2120 = vld [vmem:[%s2031 + $0x2c0] sm:$0xff]
        %v2121 = vld [vmem:[%s2031 + $0x2c8] sm:$0xff]
        %v2122 = vld [vmem:[%s2031 + $0x2d0] sm:$0xff]
        %v2123 = vld [vmem:[%s2031 + $0x2d8] sm:$0xff]
        %v2124 = vld [vmem:[%s2031 + $0x2e0] sm:$0xff]
        %v2125 = vld [vmem:[%s2031 + $0x2e8] sm:$0xff]
        %v2126 = vld [vmem:[%s2031 + $0x2f0] sm:$0xff]
        %v2127 = vld [vmem:[%s2031 + $0x2f8] sm:$0xff]
        %v2128 = vld [vmem:[%s2] sm:$0xff]
        %v2129 = vld [vmem:[%s2 + $0x8] sm:$0xff]
        %v2130 = vld [vmem:[%s2 + $0x10] sm:$0xff]
        %v2131 = vld [vmem:[%s2 + $0x18] sm:$0xff]
        %v2132 = vld [vmem:[%s2 + $0x20] sm:$0xff]
        %v2133 = vld [vmem:[%s2 + $0x28] sm:$0xff]
        %v2134 = vld [vmem:[%s2 + $0x30] sm:$0xff]
        %v2135 = vld [vmem:[%s2 + $0x38] sm:$0xff]
        %v2136 = vld [vmem:[%s2 + $0x40] sm:$0xff]
        %v2137 = vld [vmem:[%s2 + $0x48] sm:$0xff]
        %v2138 = vld [vmem:[%s2 + $0x50] sm:$0xff]
        %v2139 = vld [vmem:[%s2 + $0x58] sm:$0xff]
        %v2140 = vld [vmem:[%s2 + $0x60] sm:$0xff]
        %v2141 = vld [vmem:[%s2 + $0x68] sm:$0xff]
        %v2142 = vld [vmem:[%s2 + $0x70] sm:$0xff]
        %v2143 = vld [vmem:[%s2 + $0x78] sm:$0xff]
        %v2144 = vld [vmem:[%s2 + $0x80] sm:$0xff]
        %v2145 = vld [vmem:[%s2 + $0x88] sm:$0xff]
        %v2146 = vld [vmem:[%s2 + $0x90] sm:$0xff]
        %v2147 = vld [vmem:[%s2 + $0x98] sm:$0xff]
        %v2148 = vld [vmem:[%s2 + $0xa0] sm:$0xff]
        %v2149 = vld [vmem:[%s2 + $0xa8] sm:$0xff]
        %v2150 = vld [vmem:[%s2 + $0xb0] sm:$0xff]
        %v2151 = vld [vmem:[%s2 + $0xb8] sm:$0xff]
        %v2152 = vld [vmem:[%s2 + $0xc0] sm:$0xff]
        %v2153 = vld [vmem:[%s2 + $0xc8] sm:$0xff]
        %v2154 = vld [vmem:[%s2 + $0xd0] sm:$0xff]
        %v2155 = vld [vmem:[%s2 + $0xd8] sm:$0xff]
        %v2156 = vld [vmem:[%s2 + $0xe0] sm:$0xff]
        %v2157 = vld [vmem:[%s2 + $0xe8] sm:$0xff]
        %v2158 = vld [vmem:[%s2 + $0xf0] sm:$0xff]
        %v2159 = vld [vmem:[%s2 + $0xf8] sm:$0xff]
        %v2160 = vld [vmem:[%s2 + $0x100] sm:$0xff]
        %v2161 = vld [vmem:[%s2 + $0x108] sm:$0xff]
        %v2162 = vld [vmem:[%s2 + $0x110] sm:$0xff]
        %v2163 = vld [vmem:[%s2 + $0x118] sm:$0xff]
        %v2164 = vld [vmem:[%s2 + $0x120] sm:$0xff]
        %v2165 = vld [vmem:[%s2 + $0x128] sm:$0xff]
        %v2166 = vld [vmem:[%s2 + $0x130] sm:$0xff]
        %v2167 = vld [vmem:[%s2 + $0x138] sm:$0xff]
        %v2168 = vld [vmem:[%s2 + $0x140] sm:$0xff]
        %v2169 = vld [vmem:[%s2 + $0x148] sm:$0xff]
        %v2170 = vld [vmem:[%s2 + $0x150] sm:$0xff]
        %v2171 = vld [vmem:[%s2 + $0x158] sm:$0xff]
        %v2172 = vld [vmem:[%s2 + $0x160] sm:$0xff]
        %v2173 = vld [vmem:[%s2 + $0x168] sm:$0xff]
        %v2174 = vld [vmem:[%s2 + $0x170] sm:$0xff]
        %v2175 = vld [vmem:[%s2 + $0x178] sm:$0xff]
        %v2176 = vld [vmem:[%s2 + $0x180] sm:$0xff]
        %v2177 = vld [vmem:[%s2 + $0x188] sm:$0xff]
        %v2178 = vld [vmem:[%s2 + $0x190] sm:$0xff]
        %v2179 = vld [vmem:[%s2 + $0x198] sm:$0xff]
        %v2180 = vld [vmem:[%s2 + $0x1a0] sm:$0xff]
        %v2181 = vld [vmem:[%s2 + $0x1a8] sm:$0xff]
        %v2182 = vld [vmem:[%s2 + $0x1b0] sm:$0xff]
        %v2183 = vld [vmem:[%s2 + $0x1b8] sm:$0xff]
        %v2184 = vld [vmem:[%s2 + $0x1c0] sm:$0xff]
        %v2185 = vld [vmem:[%s2 + $0x1c8] sm:$0xff]
        %v2186 = vld [vmem:[%s2 + $0x1d0] sm:$0xff]
        %v2187 = vld [vmem:[%s2 + $0x1d8] sm:$0xff]
        %v2188 = vld [vmem:[%s2 + $0x1e0] sm:$0xff]
        %v2189 = vld [vmem:[%s2 + $0x1e8] sm:$0xff]
        %v2190 = vld [vmem:[%s2 + $0x1f0] sm:$0xff]
        %v2191 = vld [vmem:[%s2 + $0x1f8] sm:$0xff]
        %v2192 = vld [vmem:[%s2 + $0x200] sm:$0xff]
        %v2193 = vld [vmem:[%s2 + $0x208] sm:$0xff]
        %v2194 = vld [vmem:[%s2 + $0x210] sm:$0xff]
        %v2195 = vld [vmem:[%s2 + $0x218] sm:$0xff]
        %v2196 = vld [vmem:[%s2 + $0x220] sm:$0xff]
        %v2197 = vld [vmem:[%s2 + $0x228] sm:$0xff]
        %v2198 = vld [vmem:[%s2 + $0x230] sm:$0xff]
        %v2199 = vld [vmem:[%s2 + $0x238] sm:$0xff]
        %v2200 = vld [vmem:[%s2 + $0x240] sm:$0xff]
        %v2201 = vld [vmem:[%s2 + $0x248] sm:$0xff]
        %v2202 = vld [vmem:[%s2 + $0x250] sm:$0xff]
        %v2203 = vld [vmem:[%s2 + $0x258] sm:$0xff]
        %v2204 = vld [vmem:[%s2 + $0x260] sm:$0xff]
        %v2205 = vld [vmem:[%s2 + $0x268] sm:$0xff]
        %v2206 = vld [vmem:[%s2 + $0x270] sm:$0xff]
        %v2207 = vld [vmem:[%s2 + $0x278] sm:$0xff]
        %v2208 = vld [vmem:[%s2 + $0x280] sm:$0xff]
        %v2209 = vld [vmem:[%s2 + $0x288] sm:$0xff]
        %v2210 = vld [vmem:[%s2 + $0x290] sm:$0xff]
        %v2211 = vld [vmem:[%s2 + $0x298] sm:$0xff]
        %v2212 = vld [vmem:[%s2 + $0x2a0] sm:$0xff]
        %v2213 = vld [vmem:[%s2 + $0x2a8] sm:$0xff]
        %v2214 = vld [vmem:[%s2 + $0x2b0] sm:$0xff]
        %v2215 = vld [vmem:[%s2 + $0x2b8] sm:$0xff]
        %v2216 = vld [vmem:[%s2 + $0x2c0] sm:$0xff]
        %v2217 = vld [vmem:[%s2 + $0x2c8] sm:$0xff]
        %v2218 = vld [vmem:[%s2 + $0x2d0] sm:$0xff]
        %v2219 = vld [vmem:[%s2 + $0x2d8] sm:$0xff]
        %v2220 = vld [vmem:[%s2 + $0x2e0] sm:$0xff]
        %v2221 = vld [vmem:[%s2 + $0x2e8] sm:$0xff]
        %v2222 = vld [vmem:[%s2 + $0x2f0] sm:$0xff]
        %v2223 = vld [vmem:[%s2 + $0x2f8] sm:$0xff]
        %s2224 = scalar_lea.vmem %s2, 768
        %v2225 = vld [vmem:[%s2224] sm:$0xff]
        %v2226 = vld [vmem:[%s2224 + $0x8] sm:$0xff]
        %v2227 = vld [vmem:[%s2224 + $0x10] sm:$0xff]
        %v2228 = vld [vmem:[%s2224 + $0x18] sm:$0xff]
        %v2229 = vld [vmem:[%s2224 + $0x20] sm:$0xff]
        %v2230 = vld [vmem:[%s2224 + $0x28] sm:$0xff]
        %v2231 = vld [vmem:[%s2224 + $0x30] sm:$0xff]
        %v2232 = vld [vmem:[%s2224 + $0x38] sm:$0xff]
        %v2233 = vld [vmem:[%s2224 + $0x40] sm:$0xff]
        %v2234 = vld [vmem:[%s2224 + $0x48] sm:$0xff]
        %v2235 = vld [vmem:[%s2224 + $0x50] sm:$0xff]
        %v2236 = vld [vmem:[%s2224 + $0x58] sm:$0xff]
        %v2237 = vld [vmem:[%s2224 + $0x60] sm:$0xff]
        %v2238 = vld [vmem:[%s2224 + $0x68] sm:$0xff]
        %v2239 = vld [vmem:[%s2224 + $0x70] sm:$0xff]
        %v2240 = vld [vmem:[%s2224 + $0x78] sm:$0xff]
        %v2241 = vld [vmem:[%s2224 + $0x80] sm:$0xff]
        %v2242 = vld [vmem:[%s2224 + $0x88] sm:$0xff]
        %v2243 = vld [vmem:[%s2224 + $0x90] sm:$0xff]
        %v2244 = vld [vmem:[%s2224 + $0x98] sm:$0xff]
        %v2245 = vld [vmem:[%s2224 + $0xa0] sm:$0xff]
        %v2246 = vld [vmem:[%s2224 + $0xa8] sm:$0xff]
        %v2247 = vld [vmem:[%s2224 + $0xb0] sm:$0xff]
        %v2248 = vld [vmem:[%s2224 + $0xb8] sm:$0xff]
        %v2249 = vld [vmem:[%s2224 + $0xc0] sm:$0xff]
        %v2250 = vld [vmem:[%s2224 + $0xc8] sm:$0xff]
        %v2251 = vld [vmem:[%s2224 + $0xd0] sm:$0xff]
        %v2252 = vld [vmem:[%s2224 + $0xd8] sm:$0xff]
        %v2253 = vld [vmem:[%s2224 + $0xe0] sm:$0xff]
        %v2254 = vld [vmem:[%s2224 + $0xe8] sm:$0xff]
        %v2255 = vld [vmem:[%s2224 + $0xf0] sm:$0xff]
        %v2256 = vld [vmem:[%s2224 + $0xf8] sm:$0xff]
        %v2257 = vld [vmem:[%s2224 + $0x100] sm:$0xff]
        %v2258 = vld [vmem:[%s2224 + $0x108] sm:$0xff]
        %v2259 = vld [vmem:[%s2224 + $0x110] sm:$0xff]
        %v2260 = vld [vmem:[%s2224 + $0x118] sm:$0xff]
        %v2261 = vld [vmem:[%s2224 + $0x120] sm:$0xff]
        %v2262 = vld [vmem:[%s2224 + $0x128] sm:$0xff]
        %v2263 = vld [vmem:[%s2224 + $0x130] sm:$0xff]
        %v2264 = vld [vmem:[%s2224 + $0x138] sm:$0xff]
        %v2265 = vld [vmem:[%s2224 + $0x140] sm:$0xff]
        %v2266 = vld [vmem:[%s2224 + $0x148] sm:$0xff]
        %v2267 = vld [vmem:[%s2224 + $0x150] sm:$0xff]
        %v2268 = vld [vmem:[%s2224 + $0x158] sm:$0xff]
        %v2269 = vld [vmem:[%s2224 + $0x160] sm:$0xff]
        %v2270 = vld [vmem:[%s2224 + $0x168] sm:$0xff]
        %v2271 = vld [vmem:[%s2224 + $0x170] sm:$0xff]
        %v2272 = vld [vmem:[%s2224 + $0x178] sm:$0xff]
        %v2273 = vld [vmem:[%s2224 + $0x180] sm:$0xff]
        %v2274 = vld [vmem:[%s2224 + $0x188] sm:$0xff]
        %v2275 = vld [vmem:[%s2224 + $0x190] sm:$0xff]
        %v2276 = vld [vmem:[%s2224 + $0x198] sm:$0xff]
        %v2277 = vld [vmem:[%s2224 + $0x1a0] sm:$0xff]
        %v2278 = vld [vmem:[%s2224 + $0x1a8] sm:$0xff]
        %v2279 = vld [vmem:[%s2224 + $0x1b0] sm:$0xff]
        %v2280 = vld [vmem:[%s2224 + $0x1b8] sm:$0xff]
        %v2281 = vld [vmem:[%s2224 + $0x1c0] sm:$0xff]
        %v2282 = vld [vmem:[%s2224 + $0x1c8] sm:$0xff]
        %v2283 = vld [vmem:[%s2224 + $0x1d0] sm:$0xff]
        %v2284 = vld [vmem:[%s2224 + $0x1d8] sm:$0xff]
        %v2285 = vld [vmem:[%s2224 + $0x1e0] sm:$0xff]
        %v2286 = vld [vmem:[%s2224 + $0x1e8] sm:$0xff]
        %v2287 = vld [vmem:[%s2224 + $0x1f0] sm:$0xff]
        %v2288 = vld [vmem:[%s2224 + $0x1f8] sm:$0xff]
        %v2289 = vld [vmem:[%s2224 + $0x200] sm:$0xff]
        %v2290 = vld [vmem:[%s2224 + $0x208] sm:$0xff]
        %v2291 = vld [vmem:[%s2224 + $0x210] sm:$0xff]
        %v2292 = vld [vmem:[%s2224 + $0x218] sm:$0xff]
        %v2293 = vld [vmem:[%s2224 + $0x220] sm:$0xff]
        %v2294 = vld [vmem:[%s2224 + $0x228] sm:$0xff]
        %v2295 = vld [vmem:[%s2224 + $0x230] sm:$0xff]
        %v2296 = vld [vmem:[%s2224 + $0x238] sm:$0xff]
        %v2297 = vld [vmem:[%s2224 + $0x240] sm:$0xff]
        %v2298 = vld [vmem:[%s2224 + $0x248] sm:$0xff]
        %v2299 = vld [vmem:[%s2224 + $0x250] sm:$0xff]
        %v2300 = vld [vmem:[%s2224 + $0x258] sm:$0xff]
        %v2301 = vld [vmem:[%s2224 + $0x260] sm:$0xff]
        %v2302 = vld [vmem:[%s2224 + $0x268] sm:$0xff]
        %v2303 = vld [vmem:[%s2224 + $0x270] sm:$0xff]
        %v2304 = vld [vmem:[%s2224 + $0x278] sm:$0xff]
        %v2305 = vld [vmem:[%s2224 + $0x280] sm:$0xff]
        %v2306 = vld [vmem:[%s2224 + $0x288] sm:$0xff]
        %v2307 = vld [vmem:[%s2224 + $0x290] sm:$0xff]
        %v2308 = vld [vmem:[%s2224 + $0x298] sm:$0xff]
        %v2309 = vld [vmem:[%s2224 + $0x2a0] sm:$0xff]
        %v2310 = vld [vmem:[%s2224 + $0x2a8] sm:$0xff]
        %v2311 = vld [vmem:[%s2224 + $0x2b0] sm:$0xff]
        %v2312 = vld [vmem:[%s2224 + $0x2b8] sm:$0xff]
        %v2313 = vld [vmem:[%s2224 + $0x2c0] sm:$0xff]
        %v2314 = vld [vmem:[%s2224 + $0x2c8] sm:$0xff]
        %v2315 = vld [vmem:[%s2224 + $0x2d0] sm:$0xff]
        %v2316 = vld [vmem:[%s2224 + $0x2d8] sm:$0xff]
        %v2317 = vld [vmem:[%s2224 + $0x2e0] sm:$0xff]
        %v2318 = vld [vmem:[%s2224 + $0x2e8] sm:$0xff]
        %v2319 = vld [vmem:[%s2224 + $0x2f0] sm:$0xff]
        %v2320 = vld [vmem:[%s2224 + $0x2f8] sm:$0xff]
        %v2417 = vunpack.c.l.b16 %v2225
        %v2418 = vunpack.c.h.b16 %v2225
        %v2419 = vunpack.c.l.b16 %v2226
        %v2420 = vunpack.c.h.b16 %v2226
        %v2421 = vunpack.c.l.b16 %v2227
        %v2422 = vunpack.c.h.b16 %v2227
        %v2423 = vunpack.c.l.b16 %v2228
        %v2424 = vunpack.c.h.b16 %v2228
        %v2425 = vunpack.c.l.b16 %v2229
        %v2426 = vunpack.c.h.b16 %v2229
        %v2427 = vunpack.c.l.b16 %v2230
        %v2428 = vunpack.c.h.b16 %v2230
        %v2429 = vunpack.c.l.b16 %v2231
        %v2430 = vunpack.c.h.b16 %v2231
        %v2431 = vunpack.c.l.b16 %v2232
        %v2432 = vunpack.c.h.b16 %v2232
        %v2433 = vunpack.c.l.b16 %v2233
        %v2434 = vunpack.c.h.b16 %v2233
        %v2435 = vunpack.c.l.b16 %v2234
        %v2436 = vunpack.c.h.b16 %v2234
        %v2437 = vunpack.c.l.b16 %v2235
        %v2438 = vunpack.c.h.b16 %v2235
        %v2439 = vunpack.c.l.b16 %v2236
        %v2440 = vunpack.c.h.b16 %v2236
        %v2441 = vunpack.c.l.b16 %v2237
        %v2442 = vunpack.c.h.b16 %v2237
        %v2443 = vunpack.c.l.b16 %v2238
        %v2444 = vunpack.c.h.b16 %v2238
        %v2445 = vunpack.c.l.b16 %v2239
        %v2446 = vunpack.c.h.b16 %v2239
        %v2447 = vunpack.c.l.b16 %v2240
        %v2448 = vunpack.c.h.b16 %v2240
        %v2449 = vunpack.c.l.b16 %v2241
        %v2450 = vunpack.c.h.b16 %v2241
        %v2451 = vunpack.c.l.b16 %v2242
        %v2452 = vunpack.c.h.b16 %v2242
        %v2453 = vunpack.c.l.b16 %v2243
        %v2454 = vunpack.c.h.b16 %v2243
        %v2455 = vunpack.c.l.b16 %v2244
        %v2456 = vunpack.c.h.b16 %v2244
        %v2457 = vunpack.c.l.b16 %v2245
        %v2458 = vunpack.c.h.b16 %v2245
        %v2459 = vunpack.c.l.b16 %v2246
        %v2460 = vunpack.c.h.b16 %v2246
        %v2461 = vunpack.c.l.b16 %v2247
        %v2462 = vunpack.c.h.b16 %v2247
        %v2463 = vunpack.c.l.b16 %v2248
        %v2464 = vunpack.c.h.b16 %v2248
        %v2465 = vunpack.c.l.b16 %v2249
        %v2466 = vunpack.c.h.b16 %v2249
        %v2467 = vunpack.c.l.b16 %v2250
        %v2468 = vunpack.c.h.b16 %v2250
        %v2469 = vunpack.c.l.b16 %v2251
        %v2470 = vunpack.c.h.b16 %v2251
        %v2471 = vunpack.c.l.b16 %v2252
        %v2472 = vunpack.c.h.b16 %v2252
        %v2473 = vunpack.c.l.b16 %v2253
        %v2474 = vunpack.c.h.b16 %v2253
        %v2475 = vunpack.c.l.b16 %v2254
        %v2476 = vunpack.c.h.b16 %v2254
        %v2477 = vunpack.c.l.b16 %v2255
        %v2478 = vunpack.c.h.b16 %v2255
        %v2479 = vunpack.c.l.b16 %v2256
        %v2480 = vunpack.c.h.b16 %v2256
        %v2481 = vunpack.c.l.b16 %v2257
        %v2482 = vunpack.c.h.b16 %v2257
        %v2483 = vunpack.c.l.b16 %v2258
        %v2484 = vunpack.c.h.b16 %v2258
        %v2485 = vunpack.c.l.b16 %v2259
        %v2486 = vunpack.c.h.b16 %v2259
        %v2487 = vunpack.c.l.b16 %v2260
        %v2488 = vunpack.c.h.b16 %v2260
        %v2489 = vunpack.c.l.b16 %v2261
        %v2490 = vunpack.c.h.b16 %v2261
        %v2491 = vunpack.c.l.b16 %v2262
        %v2492 = vunpack.c.h.b16 %v2262
        %v2493 = vunpack.c.l.b16 %v2263
        %v2494 = vunpack.c.h.b16 %v2263
        %v2495 = vunpack.c.l.b16 %v2264
        %v2496 = vunpack.c.h.b16 %v2264
        %v2497 = vunpack.c.l.b16 %v2265
        %v2498 = vunpack.c.h.b16 %v2265
        %v2499 = vunpack.c.l.b16 %v2266
        %v2500 = vunpack.c.h.b16 %v2266
        %v2501 = vunpack.c.l.b16 %v2267
        %v2502 = vunpack.c.h.b16 %v2267
        %v2503 = vunpack.c.l.b16 %v2268
        %v2504 = vunpack.c.h.b16 %v2268
        %v2505 = vunpack.c.l.b16 %v2269
        %v2506 = vunpack.c.h.b16 %v2269
        %v2507 = vunpack.c.l.b16 %v2270
        %v2508 = vunpack.c.h.b16 %v2270
        %v2509 = vunpack.c.l.b16 %v2271
        %v2510 = vunpack.c.h.b16 %v2271
        %v2511 = vunpack.c.l.b16 %v2272
        %v2512 = vunpack.c.h.b16 %v2272
        %v2513 = vunpack.c.l.b16 %v2273
        %v2514 = vunpack.c.h.b16 %v2273
        %v2515 = vunpack.c.l.b16 %v2274
        %v2516 = vunpack.c.h.b16 %v2274
        %v2517 = vunpack.c.l.b16 %v2275
        %v2518 = vunpack.c.h.b16 %v2275
        %v2519 = vunpack.c.l.b16 %v2276
        %v2520 = vunpack.c.h.b16 %v2276
        %v2521 = vunpack.c.l.b16 %v2277
        %v2522 = vunpack.c.h.b16 %v2277
        %v2523 = vunpack.c.l.b16 %v2278
        %v2524 = vunpack.c.h.b16 %v2278
        %v2525 = vunpack.c.l.b16 %v2279
        %v2526 = vunpack.c.h.b16 %v2279
        %v2527 = vunpack.c.l.b16 %v2280
        %v2528 = vunpack.c.h.b16 %v2280
        %v2529 = vunpack.c.l.b16 %v2281
        %v2530 = vunpack.c.h.b16 %v2281
        %v2531 = vunpack.c.l.b16 %v2282
        %v2532 = vunpack.c.h.b16 %v2282
        %v2533 = vunpack.c.l.b16 %v2283
        %v2534 = vunpack.c.h.b16 %v2283
        %v2535 = vunpack.c.l.b16 %v2284
        %v2536 = vunpack.c.h.b16 %v2284
        %v2537 = vunpack.c.l.b16 %v2285
        %v2538 = vunpack.c.h.b16 %v2285
        %v2539 = vunpack.c.l.b16 %v2286
        %v2540 = vunpack.c.h.b16 %v2286
        %v2541 = vunpack.c.l.b16 %v2287
        %v2542 = vunpack.c.h.b16 %v2287
        %v2543 = vunpack.c.l.b16 %v2288
        %v2544 = vunpack.c.h.b16 %v2288
        %v2545 = vunpack.c.l.b16 %v2289
        %v2546 = vunpack.c.h.b16 %v2289
        %v2547 = vunpack.c.l.b16 %v2290
        %v2548 = vunpack.c.h.b16 %v2290
        %v2549 = vunpack.c.l.b16 %v2291
        %v2550 = vunpack.c.h.b16 %v2291
        %v2551 = vunpack.c.l.b16 %v2292
        %v2552 = vunpack.c.h.b16 %v2292
        %v2553 = vunpack.c.l.b16 %v2293
        %v2554 = vunpack.c.h.b16 %v2293
        %v2555 = vunpack.c.l.b16 %v2294
        %v2556 = vunpack.c.h.b16 %v2294
        %v2557 = vunpack.c.l.b16 %v2295
        %v2558 = vunpack.c.h.b16 %v2295
        %v2559 = vunpack.c.l.b16 %v2296
        %v2560 = vunpack.c.h.b16 %v2296
        %v2561 = vunpack.c.l.b16 %v2297
        %v2562 = vunpack.c.h.b16 %v2297
        %v2563 = vunpack.c.l.b16 %v2298
        %v2564 = vunpack.c.h.b16 %v2298
        %v2565 = vunpack.c.l.b16 %v2299
        %v2566 = vunpack.c.h.b16 %v2299
        %v2567 = vunpack.c.l.b16 %v2300
        %v2568 = vunpack.c.h.b16 %v2300
        %v2569 = vunpack.c.l.b16 %v2301
        %v2570 = vunpack.c.h.b16 %v2301
        %v2571 = vunpack.c.l.b16 %v2302
        %v2572 = vunpack.c.h.b16 %v2302
        %v2573 = vunpack.c.l.b16 %v2303
        %v2574 = vunpack.c.h.b16 %v2303
        %v2575 = vunpack.c.l.b16 %v2304
        %v2576 = vunpack.c.h.b16 %v2304
        %v2577 = vunpack.c.l.b16 %v2305
        %v2578 = vunpack.c.h.b16 %v2305
        %v2579 = vunpack.c.l.b16 %v2306
        %v2580 = vunpack.c.h.b16 %v2306
        %v2581 = vunpack.c.l.b16 %v2307
        %v2582 = vunpack.c.h.b16 %v2307
        %v2583 = vunpack.c.l.b16 %v2308
        %v2584 = vunpack.c.h.b16 %v2308
        %v2585 = vunpack.c.l.b16 %v2309
        %v2586 = vunpack.c.h.b16 %v2309
        %v2587 = vunpack.c.l.b16 %v2310
        %v2588 = vunpack.c.h.b16 %v2310
        %v2589 = vunpack.c.l.b16 %v2311
        %v2590 = vunpack.c.h.b16 %v2311
        %v2591 = vunpack.c.l.b16 %v2312
        %v2592 = vunpack.c.h.b16 %v2312
        %v2593 = vunpack.c.l.b16 %v2313
        %v2594 = vunpack.c.h.b16 %v2313
        %v2595 = vunpack.c.l.b16 %v2314
        %v2596 = vunpack.c.h.b16 %v2314
        %v2597 = vunpack.c.l.b16 %v2315
        %v2598 = vunpack.c.h.b16 %v2315
        %v2599 = vunpack.c.l.b16 %v2316
        %v2600 = vunpack.c.h.b16 %v2316
        %v2601 = vunpack.c.l.b16 %v2317
        %v2602 = vunpack.c.h.b16 %v2317
        %v2603 = vunpack.c.l.b16 %v2318
        %v2604 = vunpack.c.h.b16 %v2318
        %v2605 = vunpack.c.l.b16 %v2319
        %v2606 = vunpack.c.h.b16 %v2319
        %v2607 = vunpack.c.l.b16 %v2320
        %v2608 = vunpack.c.h.b16 %v2320
        %v2609 = vpack.c.b16 %v2419, %v2417
        %v2610 = vpack.c.b16 %v2420, %v2418
        %v2611 = vpack.c.b16 %v2423, %v2421
        %v2612 = vpack.c.b16 %v2424, %v2422
        %v2613 = vpack.c.b16 %v2427, %v2425
        %v2614 = vpack.c.b16 %v2428, %v2426
        %v2615 = vpack.c.b16 %v2431, %v2429
        %v2616 = vpack.c.b16 %v2432, %v2430
        %v2617 = vpack.c.b16 %v2435, %v2433
        %v2618 = vpack.c.b16 %v2436, %v2434
        %v2619 = vpack.c.b16 %v2439, %v2437
        %v2620 = vpack.c.b16 %v2440, %v2438
        %v2621 = vpack.c.b16 %v2443, %v2441
        %v2622 = vpack.c.b16 %v2444, %v2442
        %v2623 = vpack.c.b16 %v2447, %v2445
        %v2624 = vpack.c.b16 %v2448, %v2446
        %v2625 = vpack.c.b16 %v2451, %v2449
        %v2626 = vpack.c.b16 %v2452, %v2450
        %v2627 = vpack.c.b16 %v2455, %v2453
        %v2628 = vpack.c.b16 %v2456, %v2454
        %v2629 = vpack.c.b16 %v2459, %v2457
        %v2630 = vpack.c.b16 %v2460, %v2458
        %v2631 = vpack.c.b16 %v2463, %v2461
        %v2632 = vpack.c.b16 %v2464, %v2462
        %v2633 = vpack.c.b16 %v2467, %v2465
        %v2634 = vpack.c.b16 %v2468, %v2466
        %v2635 = vpack.c.b16 %v2471, %v2469
        %v2636 = vpack.c.b16 %v2472, %v2470
        %v2637 = vpack.c.b16 %v2475, %v2473
        %v2638 = vpack.c.b16 %v2476, %v2474
        %v2639 = vpack.c.b16 %v2479, %v2477
        %v2640 = vpack.c.b16 %v2480, %v2478
        %v2641 = vpack.c.b16 %v2483, %v2481
        %v2642 = vpack.c.b16 %v2484, %v2482
        %v2643 = vpack.c.b16 %v2487, %v2485
        %v2644 = vpack.c.b16 %v2488, %v2486
        %v2645 = vpack.c.b16 %v2491, %v2489
        %v2646 = vpack.c.b16 %v2492, %v2490
        %v2647 = vpack.c.b16 %v2495, %v2493
        %v2648 = vpack.c.b16 %v2496, %v2494
        %v2649 = vpack.c.b16 %v2499, %v2497
        %v2650 = vpack.c.b16 %v2500, %v2498
        %v2651 = vpack.c.b16 %v2503, %v2501
        %v2652 = vpack.c.b16 %v2504, %v2502
        %v2653 = vpack.c.b16 %v2507, %v2505
        %v2654 = vpack.c.b16 %v2508, %v2506
        %v2655 = vpack.c.b16 %v2511, %v2509
        %v2656 = vpack.c.b16 %v2512, %v2510
        %v2657 = vpack.c.b16 %v2515, %v2513
        %v2658 = vpack.c.b16 %v2516, %v2514
        %v2659 = vpack.c.b16 %v2519, %v2517
        %v2660 = vpack.c.b16 %v2520, %v2518
        %v2661 = vpack.c.b16 %v2523, %v2521
        %v2662 = vpack.c.b16 %v2524, %v2522
        %v2663 = vpack.c.b16 %v2527, %v2525
        %v2664 = vpack.c.b16 %v2528, %v2526
        %v2665 = vpack.c.b16 %v2531, %v2529
        %v2666 = vpack.c.b16 %v2532, %v2530
        %v2667 = vpack.c.b16 %v2535, %v2533
        %v2668 = vpack.c.b16 %v2536, %v2534
        %v2669 = vpack.c.b16 %v2539, %v2537
        %v2670 = vpack.c.b16 %v2540, %v2538
        %v2671 = vpack.c.b16 %v2543, %v2541
        %v2672 = vpack.c.b16 %v2544, %v2542
        %v2673 = vpack.c.b16 %v2547, %v2545
        %v2674 = vpack.c.b16 %v2548, %v2546
        %v2675 = vpack.c.b16 %v2551, %v2549
        %v2676 = vpack.c.b16 %v2552, %v2550
        %v2677 = vpack.c.b16 %v2555, %v2553
        %v2678 = vpack.c.b16 %v2556, %v2554
        %v2679 = vpack.c.b16 %v2559, %v2557
        %v2680 = vpack.c.b16 %v2560, %v2558
        %v2681 = vpack.c.b16 %v2563, %v2561
        %v2682 = vpack.c.b16 %v2564, %v2562
        %v2683 = vpack.c.b16 %v2567, %v2565
        %v2684 = vpack.c.b16 %v2568, %v2566
        %v2685 = vpack.c.b16 %v2571, %v2569
        %v2686 = vpack.c.b16 %v2572, %v2570
        %v2687 = vpack.c.b16 %v2575, %v2573
        %v2688 = vpack.c.b16 %v2576, %v2574
        %v2689 = vpack.c.b16 %v2579, %v2577
        %v2690 = vpack.c.b16 %v2580, %v2578
        %v2691 = vpack.c.b16 %v2583, %v2581
        %v2692 = vpack.c.b16 %v2584, %v2582
        %v2693 = vpack.c.b16 %v2587, %v2585
        %v2694 = vpack.c.b16 %v2588, %v2586
        %v2695 = vpack.c.b16 %v2591, %v2589
        %v2696 = vpack.c.b16 %v2592, %v2590
        %v2697 = vpack.c.b16 %v2595, %v2593
        %v2698 = vpack.c.b16 %v2596, %v2594
        %v2699 = vpack.c.b16 %v2599, %v2597
        %v2700 = vpack.c.b16 %v2600, %v2598
        %v2701 = vpack.c.b16 %v2603, %v2601
        %v2702 = vpack.c.b16 %v2604, %v2602
        %v2703 = vpack.c.b16 %v2607, %v2605
        %v2704 = vpack.c.b16 %v2608, %v2606
        %2801 = vmatprep.subr.bf16.mxu0 %v2610
        %2802 = vmatpush1.bf16.msra.mxu0 %v2609
        %2803 = vmatprep.subr.bf16.mxu0 %v2612
        %2804 = vmatpush1.bf16.msra.mxu0 %v2611
        %2805 = vmatprep.subr.bf16.mxu0 %v2614
        %2806 = vmatpush1.bf16.msra.mxu0 %v2613
        %2807 = vmatprep.subr.bf16.mxu0 %v2616
        %2808 = vmatpush1.bf16.msra.mxu0 %v2615
        %2809 = vmatprep.subr.bf16.mxu0 %v2618
        %2810 = vmatpush1.bf16.msra.mxu0 %v2617
        %2811 = vmatprep.subr.bf16.mxu0 %v2620
        %2812 = vmatpush1.bf16.msra.mxu0 %v2619
        %2813 = vmatprep.subr.bf16.mxu0 %v2622
        %2814 = vmatpush1.bf16.msra.mxu0 %v2621
        %2815 = vmatprep.subr.bf16.mxu0 %v2624
        %2816 = vmatpush1.bf16.msra.mxu0 %v2623
        %2817 = vmatprep.subr.bf16.mxu0 %v2626
        %2818 = vmatpush1.bf16.msra.mxu0 %v2625
        %2819 = vmatprep.subr.bf16.mxu0 %v2628
        %2820 = vmatpush1.bf16.msra.mxu0 %v2627
        %2821 = vmatprep.subr.bf16.mxu0 %v2630
        %2822 = vmatpush1.bf16.msra.mxu0 %v2629
        %2823 = vmatprep.subr.bf16.mxu0 %v2632
        %2824 = vmatpush1.bf16.msra.mxu0 %v2631
        %2825 = vmatprep.subr.bf16.mxu0 %v2634
        %2826 = vmatpush1.bf16.msra.mxu0 %v2633
        %2827 = vmatprep.subr.bf16.mxu0 %v2636
        %2828 = vmatpush1.bf16.msra.mxu0 %v2635
        %2829 = vmatprep.subr.bf16.mxu0 %v2638
        %2830 = vmatpush1.bf16.msra.mxu0 %v2637
        %2831 = vmatprep.subr.bf16.mxu0 %v2640
        %2832 = vmatpush1.bf16.msra.mxu0 %v2639
        %2833 = vmatprep.mubr.bf16.mxu0 %v1936
        %2834 = vmatmul.mubr.bf16.gmra.mrb[0].mxu0 %v1935
        %v2835 = vpop.f32.mrb[0].mxu0
        %v2836 = vadd.f32 0.0, %v2835
        %v2837 = vpop.f32.mrb[0].mxu0
        %v2838 = vadd.f32 0.0, %v2837
        %v2839 = vpop.f32.mrb[0].mxu0
        %v2840 = vadd.f32 0.0, %v2839
        %v2841 = vpop.f32.mrb[0].mxu0
        %v2842 = vadd.f32 0.0, %v2841
        %2843 = vmatprep.mubr.bf16.mxu0 %v1942
        %2844 = vmatmul.mubr.bf16.gmra.mrb[0].mxu0 %v1941
        %v2845 = vpop.f32.mrb[0].mxu0
        %v2846 = vadd.f32 0.0, %v2845
        %v2847 = vpop.f32.mrb[0].mxu0
        %v2848 = vadd.f32 0.0, %v2847
        %v2849 = vpop.f32.mrb[0].mxu0
        %v2850 = vadd.f32 0.0, %v2849
        %v2851 = vpop.f32.mrb[0].mxu0
        %v2852 = vadd.f32 0.0, %v2851
        %2853 = vmatprep.mubr.bf16.mxu0 %v1948
        %2854 = vmatmul.mubr.bf16.gmra.mrb[0].mxu0 %v1947
        %v2855 = vpop.f32.mrb[0].mxu0
        %v2856 = vadd.f32 0.0, %v2855
        %v2857 = vpop.f32.mrb[0].mxu0
        %v2858 = vadd.f32 0.0, %v2857
        %v2859 = vpop.f32.mrb[0].mxu0
        %v2860 = vadd.f32 0.0, %v2859
        %v2861 = vpop.f32.mrb[0].mxu0
        %v2862 = vadd.f32 0.0, %v2861
        %2863 = vmatprep.mubr.bf16.mxu0 %v1954
        %2864 = vmatmul.mubr.bf16.gmra.mrb[0].mxu0 %v1953
        %v2865 = vpop.f32.mrb[0].mxu0
        %v2866 = vadd.f32 0.0, %v2865
        %v2867 = vpop.f32.mrb[0].mxu0
        %v2868 = vadd.f32 0.0, %v2867
        %v2869 = vpop.f32.mrb[0].mxu0
        %v2870 = vadd.f32 0.0, %v2869
        %v2871 = vpop.f32.mrb[0].mxu0
        %v2872 = vadd.f32 0.0, %v2871
        %2873 = vmatprep.mubr.bf16.mxu0 %v1960
        %2874 = vmatmul.mubr.bf16.gmra.mrb[0].mxu0 %v1959
        %v2875 = vpop.f32.mrb[0].mxu0
        %v2876 = vadd.f32 0.0, %v2875
        %v2877 = vpop.f32.mrb[0].mxu0
        %v2878 = vadd.f32 0.0, %v2877
        %v2879 = vpop.f32.mrb[0].mxu0
        %v2880 = vadd.f32 0.0, %v2879
        %v2881 = vpop.f32.mrb[0].mxu0
        %v2882 = vadd.f32 0.0, %v2881
        %2883 = vmatprep.mubr.bf16.mxu0 %v1966
        %2884 = vmatmul.mubr.bf16.gmra.mrb[0].mxu0 %v1965
        %v2885 = vpop.f32.mrb[0].mxu0
        %v2886 = vadd.f32 0.0, %v2885
        %v2887 = vpop.f32.mrb[0].mxu0
        %v2888 = vadd.f32 0.0, %v2887
        %v2889 = vpop.f32.mrb[0].mxu0
        %v2890 = vadd.f32 0.0, %v2889
        %v2891 = vpop.f32.mrb[0].mxu0
        %v2892 = vadd.f32 0.0, %v2891
        %2893 = vmatprep.mubr.bf16.mxu0 %v1972
        %2894 = vmatmul.mubr.bf16.gmra.mrb[0].mxu0 %v1971
        %v2895 = vpop.f32.mrb[0].mxu0
        %v2896 = vadd.f32 0.0, %v2895
        %v2897 = vpop.f32.mrb[0].mxu0
        %v2898 = vadd.f32 0.0, %v2897
        %v2899 = vpop.f32.mrb[0].mxu0
        %v2900 = vadd.f32 0.0, %v2899
        %v2901 = vpop.f32.mrb[0].mxu0
        %v2902 = vadd.f32 0.0, %v2901
        %2903 = vmatprep.mubr.bf16.mxu0 %v1978
        %2904 = vmatmul.mubr.bf16.gmra.mrb[0].mxu0 %v1977
        %v2905 = vpop.f32.mrb[0].mxu0
        %v2906 = vadd.f32 0.0, %v2905
        %v2907 = vpop.f32.mrb[0].mxu0
        %v2908 = vadd.f32 0.0, %v2907
        %v2909 = vpop.f32.mrb[0].mxu0
        %v2910 = vadd.f32 0.0, %v2909
        %v2911 = vpop.f32.mrb[0].mxu0
        %v2912 = vadd.f32 0.0, %v2911
        %2913 = vmatprep.mubr.bf16.mxu0 %v1984
        %2914 = vmatmul.mubr.bf16.gmra.mrb[0].mxu0 %v1983
        %v2915 = vpop.f32.mrb[0].mxu0
        %v2916 = vadd.f32 0.0, %v2915
        %v2917 = vpop.f32.mrb[0].mxu0
        %v2918 = vadd.f32 0.0, %v2917
        %v2919 = vpop.f32.mrb[0].mxu0
        %v2920 = vadd.f32 0.0, %v2919
        %v2921 = vpop.f32.mrb[0].mxu0
        %v2922 = vadd.f32 0.0, %v2921
        %2923 = vmatprep.mubr.bf16.mxu0 %v1990
        %2924 = vmatmul.mubr.bf16.gmra.mrb[0].mxu0 %v1989
        %v2925 = vpop.f32.mrb[0].mxu0
        %v2926 = vadd.f32 0.0, %v2925
        %v2927 = vpop.f32.mrb[0].mxu0
        %v2928 = vadd.f32 0.0, %v2927
        %v2929 = vpop.f32.mrb[0].mxu0
        %v2930 = vadd.f32 0.0, %v2929
        %v2931 = vpop.f32.mrb[0].mxu0
        %v2932 = vadd.f32 0.0, %v2931
        %2933 = vmatprep.mubr.bf16.mxu0 %v1996
        %2934 = vmatmul.mubr.bf16.gmra.mrb[0].mxu0 %v1995
        %v2935 = vpop.f32.mrb[0].mxu0
        %v2936 = vadd.f32 0.0, %v2935
        %v2937 = vpop.f32.mrb[0].mxu0
        %v2938 = vadd.f32 0.0, %v2937
        %v2939 = vpop.f32.mrb[0].mxu0
        %v2940 = vadd.f32 0.0, %v2939
        %v2941 = vpop.f32.mrb[0].mxu0
        %v2942 = vadd.f32 0.0, %v2941
        %2943 = vmatprep.mubr.bf16.mxu0 %v2002
        %2944 = vmatmul.mubr.bf16.gmra.mrb[0].mxu0 %v2001
        %v2945 = vpop.f32.mrb[0].mxu0
        %v2946 = vadd.f32 0.0, %v2945
        %v2947 = vpop.f32.mrb[0].mxu0
        %v2948 = vadd.f32 0.0, %v2947
        %v2949 = vpop.f32.mrb[0].mxu0
        %v2950 = vadd.f32 0.0, %v2949
        %v2951 = vpop.f32.mrb[0].mxu0
        %v2952 = vadd.f32 0.0, %v2951
        %2953 = vmatprep.mubr.bf16.mxu0 %v2008
        %2954 = vmatmul.mubr.bf16.gmra.mrb[0].mxu0 %v2007
        %v2955 = vpop.f32.mrb[0].mxu0
        %v2956 = vadd.f32 0.0, %v2955
        %v2957 = vpop.f32.mrb[0].mxu0
        %v2958 = vadd.f32 0.0, %v2957
        %v2959 = vpop.f32.mrb[0].mxu0
        %v2960 = vadd.f32 0.0, %v2959
        %v2961 = vpop.f32.mrb[0].mxu0
        %v2962 = vadd.f32 0.0, %v2961
        %2963 = vmatprep.mubr.bf16.mxu0 %v2014
        %2964 = vmatmul.mubr.bf16.gmra.mrb[0].mxu0 %v2013
        %v2965 = vpop.f32.mrb[0].mxu0
        %v2966 = vadd.f32 0.0, %v2965
        %v2967 = vpop.f32.mrb[0].mxu0
        %v2968 = vadd.f32 0.0, %v2967
        %v2969 = vpop.f32.mrb[0].mxu0
        %v2970 = vadd.f32 0.0, %v2969
        %v2971 = vpop.f32.mrb[0].mxu0
        %v2972 = vadd.f32 0.0, %v2971
        %2973 = vmatprep.mubr.bf16.mxu0 %v2020
        %2974 = vmatmul.mubr.bf16.gmra.mrb[0].mxu0 %v2019
        %v2975 = vpop.f32.mrb[0].mxu0
        %v2976 = vadd.f32 0.0, %v2975
        %v2977 = vpop.f32.mrb[0].mxu0
        %v2978 = vadd.f32 0.0, %v2977
        %v2979 = vpop.f32.mrb[0].mxu0
        %v2980 = vadd.f32 0.0, %v2979
        %v2981 = vpop.f32.mrb[0].mxu0
        %v2982 = vadd.f32 0.0, %v2981
        %2983 = vmatprep.mubr.bf16.mxu0 %v2026
        %2984 = vmatmul.mubr.bf16.gmra.mrb[0].mxu0 %v2025
        %v2985 = vpop.f32.mrb[0].mxu0
        %v2986 = vadd.f32 0.0, %v2985
        %v2987 = vpop.f32.mrb[0].mxu0
        %v2988 = vadd.f32 0.0, %v2987
        %v2989 = vpop.f32.mrb[0].mxu0
        %v2990 = vadd.f32 0.0, %v2989
        %v2991 = vpop.f32.mrb[0].mxu0
        %v2992 = vadd.f32 0.0, %v2991
        %2993 = vdwg.mxu0
        %2994 = vmatprep.subr.bf16.mxu0 %v2642
        %2995 = vmatpush1.bf16.msra.mxu0 %v2641
        %2996 = vmatprep.subr.bf16.mxu0 %v2644
        %2997 = vmatpush1.bf16.msra.mxu0 %v2643
        %2998 = vmatprep.subr.bf16.mxu0 %v2646
        %2999 = vmatpush1.bf16.msra.mxu0 %v2645
        %3000 = vmatprep.subr.bf16.mxu0 %v2648
        %3001 = vmatpush1.bf16.msra.mxu0 %v2647
        %3002 = vmatprep.subr.bf16.mxu0 %v2650
        %3003 = vmatpush1.bf16.msra.mxu0 %v2649
        %3004 = vmatprep.subr.bf16.mxu0 %v2652
        %3005 = vmatpush1.bf16.msra.mxu0 %v2651
        %3006 = vmatprep.subr.bf16.mxu0 %v2654
        %3007 = vmatpush1.bf16.msra.mxu0 %v2653
        %3008 = vmatprep.subr.bf16.mxu0 %v2656
        %3009 = vmatpush1.bf16.msra.mxu0 %v2655
        %3010 = vmatprep.subr.bf16.mxu0 %v2658
        %3011 = vmatpush1.bf16.msra.mxu0 %v2657
        %3012 = vmatprep.subr.bf16.mxu0 %v2660
        %3013 = vmatpush1.bf16.msra.mxu0 %v2659
        %3014 = vmatprep.subr.bf16.mxu0 %v2662
        %3015 = vmatpush1.bf16.msra.mxu0 %v2661
        %3016 = vmatprep.subr.bf16.mxu0 %v2664
        %3017 = vmatpush1.bf16.msra.mxu0 %v2663
        %3018 = vmatprep.subr.bf16.mxu0 %v2666
        %3019 = vmatpush1.bf16.msra.mxu0 %v2665
        %3020 = vmatprep.subr.bf16.mxu0 %v2668
        %3021 = vmatpush1.bf16.msra.mxu0 %v2667
        %3022 = vmatprep.subr.bf16.mxu0 %v2670
        %3023 = vmatpush1.bf16.msra.mxu0 %v2669
        %3024 = vmatprep.subr.bf16.mxu0 %v2672
        %3025 = vmatpush1.bf16.msra.mxu0 %v2671
        %3026 = vmatprep.mubr.bf16.mxu0 %v1938
        %3027 = vmatmul.mubr.bf16.gmra.mrb[0].mxu0 %v1937
        %v3028 = vpop.f32.mrb[0].mxu0
        %v3029 = vadd.f32 %v2836, %v3028
        %v3030 = vpop.f32.mrb[0].mxu0
        %v3031 = vadd.f32 %v2838, %v3030
        %v3032 = vpop.f32.mrb[0].mxu0
        %v3033 = vadd.f32 %v2840, %v3032
        %v3034 = vpop.f32.mrb[0].mxu0
        %v3035 = vadd.f32 %v2842, %v3034
        %3036 = vmatprep.mubr.bf16.mxu0 %v1944
        %3037 = vmatmul.mubr.bf16.gmra.mrb[0].mxu0 %v1943
        %v3038 = vpop.f32.mrb[0].mxu0
        %v3039 = vadd.f32 %v2846, %v3038
        %v3040 = vpop.f32.mrb[0].mxu0
        %v3041 = vadd.f32 %v2848, %v3040
        %v3042 = vpop.f32.mrb[0].mxu0
        %v3043 = vadd.f32 %v2850, %v3042
        %v3044 = vpop.f32.mrb[0].mxu0
        %v3045 = vadd.f32 %v2852, %v3044
        %3046 = vmatprep.mubr.bf16.mxu0 %v1950
        %3047 = vmatmul.mubr.bf16.gmra.mrb[0].mxu0 %v1949
        %v3048 = vpop.f32.mrb[0].mxu0
        %v3049 = vadd.f32 %v2856, %v3048
        %v3050 = vpop.f32.mrb[0].mxu0
        %v3051 = vadd.f32 %v2858, %v3050
        %v3052 = vpop.f32.mrb[0].mxu0
        %v3053 = vadd.f32 %v2860, %v3052
        %v3054 = vpop.f32.mrb[0].mxu0
        %v3055 = vadd.f32 %v2862, %v3054
        %3056 = vmatprep.mubr.bf16.mxu0 %v1956
        %3057 = vmatmul.mubr.bf16.gmra.mrb[0].mxu0 %v1955
        %v3058 = vpop.f32.mrb[0].mxu0
        %v3059 = vadd.f32 %v2866, %v3058
        %v3060 = vpop.f32.mrb[0].mxu0
        %v3061 = vadd.f32 %v2868, %v3060
        %v3062 = vpop.f32.mrb[0].mxu0
        %v3063 = vadd.f32 %v2870, %v3062
        %v3064 = vpop.f32.mrb[0].mxu0
        %v3065 = vadd.f32 %v2872, %v3064
        %3066 = vmatprep.mubr.bf16.mxu0 %v1962
        %3067 = vmatmul.mubr.bf16.gmra.mrb[0].mxu0 %v1961
        %v3068 = vpop.f32.mrb[0].mxu0
        %v3069 = vadd.f32 %v2876, %v3068
        %v3070 = vpop.f32.mrb[0].mxu0
        %v3071 = vadd.f32 %v2878, %v3070
        %v3072 = vpop.f32.mrb[0].mxu0
        %v3073 = vadd.f32 %v2880, %v3072
        %v3074 = vpop.f32.mrb[0].mxu0
        %v3075 = vadd.f32 %v2882, %v3074
        %3076 = vmatprep.mubr.bf16.mxu0 %v1968
        %3077 = vmatmul.mubr.bf16.gmra.mrb[0].mxu0 %v1967
        %v3078 = vpop.f32.mrb[0].mxu0
        %v3079 = vadd.f32 %v2886, %v3078
        %v3080 = vpop.f32.mrb[0].mxu0
        %v3081 = vadd.f32 %v2888, %v3080
        %v3082 = vpop.f32.mrb[0].mxu0
        %v3083 = vadd.f32 %v2890, %v3082
        %v3084 = vpop.f32.mrb[0].mxu0
        %v3085 = vadd.f32 %v2892, %v3084
        %3086 = vmatprep.mubr.bf16.mxu0 %v1974
        %3087 = vmatmul.mubr.bf16.gmra.mrb[0].mxu0 %v1973
        %v3088 = vpop.f32.mrb[0].mxu0
        %v3089 = vadd.f32 %v2896, %v3088
        %v3090 = vpop.f32.mrb[0].mxu0
        %v3091 = vadd.f32 %v2898, %v3090
        %v3092 = vpop.f32.mrb[0].mxu0
        %v3093 = vadd.f32 %v2900, %v3092
        %v3094 = vpop.f32.mrb[0].mxu0
        %v3095 = vadd.f32 %v2902, %v3094
        %3096 = vmatprep.mubr.bf16.mxu0 %v1980
        %3097 = vmatmul.mubr.bf16.gmra.mrb[0].mxu0 %v1979
        %v3098 = vpop.f32.mrb[0].mxu0
        %v3099 = vadd.f32 %v2906, %v3098
        %v3100 = vpop.f32.mrb[0].mxu0
        %v3101 = vadd.f32 %v2908, %v3100
        %v3102 = vpop.f32.mrb[0].mxu0
        %v3103 = vadd.f32 %v2910, %v3102
        %v3104 = vpop.f32.mrb[0].mxu0
        %v3105 = vadd.f32 %v2912, %v3104
        %3106 = vmatprep.mubr.bf16.mxu0 %v1986
        %3107 = vmatmul.mubr.bf16.gmra.mrb[0].mxu0 %v1985
        %v3108 = vpop.f32.mrb[0].mxu0
        %v3109 = vadd.f32 %v2916, %v3108
        %v3110 = vpop.f32.mrb[0].mxu0
        %v3111 = vadd.f32 %v2918, %v3110
        %v3112 = vpop.f32.mrb[0].mxu0
        %v3113 = vadd.f32 %v2920, %v3112
        %v3114 = vpop.f32.mrb[0].mxu0
        %v3115 = vadd.f32 %v2922, %v3114
        %3116 = vmatprep.mubr.bf16.mxu0 %v1992
        %3117 = vmatmul.mubr.bf16.gmra.mrb[0].mxu0 %v1991
        %v3118 = vpop.f32.mrb[0].mxu0
        %v3119 = vadd.f32 %v2926, %v3118
        %v3120 = vpop.f32.mrb[0].mxu0
        %v3121 = vadd.f32 %v2928, %v3120
        %v3122 = vpop.f32.mrb[0].mxu0
        %v3123 = vadd.f32 %v2930, %v3122
        %v3124 = vpop.f32.mrb[0].mxu0
        %v3125 = vadd.f32 %v2932, %v3124
        %3126 = vmatprep.mubr.bf16.mxu0 %v1998
        %3127 = vmatmul.mubr.bf16.gmra.mrb[0].mxu0 %v1997
        %v3128 = vpop.f32.mrb[0].mxu0
        %v3129 = vadd.f32 %v2936, %v3128
        %v3130 = vpop.f32.mrb[0].mxu0
        %v3131 = vadd.f32 %v2938, %v3130
        %v3132 = vpop.f32.mrb[0].mxu0
        %v3133 = vadd.f32 %v2940, %v3132
        %v3134 = vpop.f32.mrb[0].mxu0
        %v3135 = vadd.f32 %v2942, %v3134
        %3136 = vmatprep.mubr.bf16.mxu0 %v2004
        %3137 = vmatmul.mubr.bf16.gmra.mrb[0].mxu0 %v2003
        %v3138 = vpop.f32.mrb[0].mxu0
        %v3139 = vadd.f32 %v2946, %v3138
        %v3140 = vpop.f32.mrb[0].mxu0
        %v3141 = vadd.f32 %v2948, %v3140
        %v3142 = vpop.f32.mrb[0].mxu0
        %v3143 = vadd.f32 %v2950, %v3142
        %v3144 = vpop.f32.mrb[0].mxu0
        %v3145 = vadd.f32 %v2952, %v3144
        %3146 = vmatprep.mubr.bf16.mxu0 %v2010
        %3147 = vmatmul.mubr.bf16.gmra.mrb[0].mxu0 %v2009
        %v3148 = vpop.f32.mrb[0].mxu0
        %v3149 = vadd.f32 %v2956, %v3148
        %v3150 = vpop.f32.mrb[0].mxu0
        %v3151 = vadd.f32 %v2958, %v3150
        %v3152 = vpop.f32.mrb[0].mxu0
        %v3153 = vadd.f32 %v2960, %v3152
        %v3154 = vpop.f32.mrb[0].mxu0
        %v3155 = vadd.f32 %v2962, %v3154
        %3156 = vmatprep.mubr.bf16.mxu0 %v2016
        %3157 = vmatmul.mubr.bf16.gmra.mrb[0].mxu0 %v2015
        %v3158 = vpop.f32.mrb[0].mxu0
        %v3159 = vadd.f32 %v2966, %v3158
        %v3160 = vpop.f32.mrb[0].mxu0
        %v3161 = vadd.f32 %v2968, %v3160
        %v3162 = vpop.f32.mrb[0].mxu0
        %v3163 = vadd.f32 %v2970, %v3162
        %v3164 = vpop.f32.mrb[0].mxu0
        %v3165 = vadd.f32 %v2972, %v3164
        %3166 = vmatprep.mubr.bf16.mxu0 %v2022
        %3167 = vmatmul.mubr.bf16.gmra.mrb[0].mxu0 %v2021
        %v3168 = vpop.f32.mrb[0].mxu0
        %v3169 = vadd.f32 %v2976, %v3168
        %v3170 = vpop.f32.mrb[0].mxu0
        %v3171 = vadd.f32 %v2978, %v3170
        %v3172 = vpop.f32.mrb[0].mxu0
        %v3173 = vadd.f32 %v2980, %v3172
        %v3174 = vpop.f32.mrb[0].mxu0
        %v3175 = vadd.f32 %v2982, %v3174
        %3176 = vmatprep.mubr.bf16.mxu0 %v2028
        %3177 = vmatmul.mubr.bf16.gmra.mrb[0].mxu0 %v2027
        %v3178 = vpop.f32.mrb[0].mxu0
        %v3179 = vadd.f32 %v2986, %v3178
        %v3180 = vpop.f32.mrb[0].mxu0
        %v3181 = vadd.f32 %v2988, %v3180
        %v3182 = vpop.f32.mrb[0].mxu0
        %v3183 = vadd.f32 %v2990, %v3182
        %v3184 = vpop.f32.mrb[0].mxu0
        %v3185 = vadd.f32 %v2992, %v3184
        %3186 = vdwg.mxu0
        %3187 = vmatprep.subr.bf16.mxu0 %v2674
        %3188 = vmatpush1.bf16.msra.mxu0 %v2673
        %3189 = vmatprep.subr.bf16.mxu0 %v2676
        %3190 = vmatpush1.bf16.msra.mxu0 %v2675
        %3191 = vmatprep.subr.bf16.mxu0 %v2678
        %3192 = vmatpush1.bf16.msra.mxu0 %v2677
        %3193 = vmatprep.subr.bf16.mxu0 %v2680
        %3194 = vmatpush1.bf16.msra.mxu0 %v2679
        %3195 = vmatprep.subr.bf16.mxu0 %v2682
        %3196 = vmatpush1.bf16.msra.mxu0 %v2681
        %3197 = vmatprep.subr.bf16.mxu0 %v2684
        %3198 = vmatpush1.bf16.msra.mxu0 %v2683
        %3199 = vmatprep.subr.bf16.mxu0 %v2686
        %3200 = vmatpush1.bf16.msra.mxu0 %v2685
        %3201 = vmatprep.subr.bf16.mxu0 %v2688
        %3202 = vmatpush1.bf16.msra.mxu0 %v2687
        %3203 = vmatprep.subr.bf16.mxu0 %v2690
        %3204 = vmatpush1.bf16.msra.mxu0 %v2689
        %3205 = vmatprep.subr.bf16.mxu0 %v2692
        %3206 = vmatpush1.bf16.msra.mxu0 %v2691
        %3207 = vmatprep.subr.bf16.mxu0 %v2694
        %3208 = vmatpush1.bf16.msra.mxu0 %v2693
        %3209 = vmatprep.subr.bf16.mxu0 %v2696
        %3210 = vmatpush1.bf16.msra.mxu0 %v2695
        %3211 = vmatprep.subr.bf16.mxu0 %v2698
        %3212 = vmatpush1.bf16.msra.mxu0 %v2697
        %3213 = vmatprep.subr.bf16.mxu0 %v2700
        %3214 = vmatpush1.bf16.msra.mxu0 %v2699
        %3215 = vmatprep.subr.bf16.mxu0 %v2702
        %3216 = vmatpush1.bf16.msra.mxu0 %v2701
        %3217 = vmatprep.subr.bf16.mxu0 %v2704
        %3218 = vmatpush1.bf16.msra.mxu0 %v2703
        %3219 = vmatprep.mubr.bf16.mxu0 %v1940
        %3220 = vmatmul.mubr.bf16.gmra.mrb[0].mxu0 %v1939
        %v3221 = vpop.f32.mrb[0].mxu0
        %v3222 = vadd.f32 %v3029, %v3221
        %v3223 = vpop.f32.mrb[0].mxu0
        %v3224 = vadd.f32 %v3031, %v3223
        %v3225 = vpop.f32.mrb[0].mxu0
        %v3226 = vadd.f32 %v3033, %v3225
        %v3227 = vpop.f32.mrb[0].mxu0
        %v3228 = vadd.f32 %v3035, %v3227
        %3229 = vmatprep.mubr.bf16.mxu0 %v1946
        %3230 = vmatmul.mubr.bf16.gmra.mrb[0].mxu0 %v1945
        %v3231 = vpop.f32.mrb[0].mxu0
        %v3232 = vadd.f32 %v3039, %v3231
        %v3233 = vpop.f32.mrb[0].mxu0
        %v3234 = vadd.f32 %v3041, %v3233
        %v3235 = vpop.f32.mrb[0].mxu0
        %v3236 = vadd.f32 %v3043, %v3235
        %v3237 = vpop.f32.mrb[0].mxu0
        %v3238 = vadd.f32 %v3045, %v3237
        %3239 = vmatprep.mubr.bf16.mxu0 %v1952
        %3240 = vmatmul.mubr.bf16.gmra.mrb[0].mxu0 %v1951
        %v3241 = vpop.f32.mrb[0].mxu0
        %v3242 = vadd.f32 %v3049, %v3241
        %v3243 = vpop.f32.mrb[0].mxu0
        %v3244 = vadd.f32 %v3051, %v3243
        %v3245 = vpop.f32.mrb[0].mxu0
        %v3246 = vadd.f32 %v3053, %v3245
        %v3247 = vpop.f32.mrb[0].mxu0
        %v3248 = vadd.f32 %v3055, %v3247
        %3249 = vmatprep.mubr.bf16.mxu0 %v1958
        %3250 = vmatmul.mubr.bf16.gmra.mrb[0].mxu0 %v1957
        %v3251 = vpop.f32.mrb[0].mxu0
        %v3252 = vadd.f32 %v3059, %v3251
        %v3253 = vpop.f32.mrb[0].mxu0
        %v3254 = vadd.f32 %v3061, %v3253
        %v3255 = vpop.f32.mrb[0].mxu0
        %v3256 = vadd.f32 %v3063, %v3255
        %v3257 = vpop.f32.mrb[0].mxu0
        %v3258 = vadd.f32 %v3065, %v3257
        %3259 = vmatprep.mubr.bf16.mxu0 %v1964
        %3260 = vmatmul.mubr.bf16.gmra.mrb[0].mxu0 %v1963
        %v3261 = vpop.f32.mrb[0].mxu0
        %v3262 = vadd.f32 %v3069, %v3261
        %v3263 = vpop.f32.mrb[0].mxu0
        %v3264 = vadd.f32 %v3071, %v3263
        %v3265 = vpop.f32.mrb[0].mxu0
        %v3266 = vadd.f32 %v3073, %v3265
        %v3267 = vpop.f32.mrb[0].mxu0
        %v3268 = vadd.f32 %v3075, %v3267
        %3269 = vmatprep.mubr.bf16.mxu0 %v1970
        %3270 = vmatmul.mubr.bf16.gmra.mrb[0].mxu0 %v1969
        %v3271 = vpop.f32.mrb[0].mxu0
        %v3272 = vadd.f32 %v3079, %v3271
        %v3273 = vpop.f32.mrb[0].mxu0
        %v3274 = vadd.f32 %v3081, %v3273
        %v3275 = vpop.f32.mrb[0].mxu0
        %v3276 = vadd.f32 %v3083, %v3275
        %v3277 = vpop.f32.mrb[0].mxu0
        %v3278 = vadd.f32 %v3085, %v3277
        %3279 = vmatprep.mubr.bf16.mxu0 %v1976
        %3280 = vmatmul.mubr.bf16.gmra.mrb[0].mxu0 %v1975
        %v3281 = vpop.f32.mrb[0].mxu0
        %v3282 = vadd.f32 %v3089, %v3281
        %v3283 = vpop.f32.mrb[0].mxu0
        %v3284 = vadd.f32 %v3091, %v3283
        %v3285 = vpop.f32.mrb[0].mxu0
        %v3286 = vadd.f32 %v3093, %v3285
        %v3287 = vpop.f32.mrb[0].mxu0
        %v3288 = vadd.f32 %v3095, %v3287
        %3289 = vmatprep.mubr.bf16.mxu0 %v1982
        %3290 = vmatmul.mubr.bf16.gmra.mrb[0].mxu0 %v1981
        %v3291 = vpop.f32.mrb[0].mxu0
        %v3292 = vadd.f32 %v3099, %v3291
        %v3293 = vpop.f32.mrb[0].mxu0
        %v3294 = vadd.f32 %v3101, %v3293
        %v3295 = vpop.f32.mrb[0].mxu0
        %v3296 = vadd.f32 %v3103, %v3295
        %v3297 = vpop.f32.mrb[0].mxu0
        %v3298 = vadd.f32 %v3105, %v3297
        %3299 = vmatprep.mubr.bf16.mxu0 %v1988
        %3300 = vmatmul.mubr.bf16.gmra.mrb[0].mxu0 %v1987
        %v3301 = vpop.f32.mrb[0].mxu0
        %v3302 = vadd.f32 %v3109, %v3301
        %v3303 = vpop.f32.mrb[0].mxu0
        %v3304 = vadd.f32 %v3111, %v3303
        %v3305 = vpop.f32.mrb[0].mxu0
        %v3306 = vadd.f32 %v3113, %v3305
        %v3307 = vpop.f32.mrb[0].mxu0
        %v3308 = vadd.f32 %v3115, %v3307
        %3309 = vmatprep.mubr.bf16.mxu0 %v1994
        %3310 = vmatmul.mubr.bf16.gmra.mrb[0].mxu0 %v1993
        %v3311 = vpop.f32.mrb[0].mxu0
        %v3312 = vadd.f32 %v3119, %v3311
        %v3313 = vpop.f32.mrb[0].mxu0
        %v3314 = vadd.f32 %v3121, %v3313
        %v3315 = vpop.f32.mrb[0].mxu0
        %v3316 = vadd.f32 %v3123, %v3315
        %v3317 = vpop.f32.mrb[0].mxu0
        %v3318 = vadd.f32 %v3125, %v3317
        %3319 = vmatprep.mubr.bf16.mxu0 %v2000
        %3320 = vmatmul.mubr.bf16.gmra.mrb[0].mxu0 %v1999
        %v3321 = vpop.f32.mrb[0].mxu0
        %v3322 = vadd.f32 %v3129, %v3321
        %v3323 = vpop.f32.mrb[0].mxu0
        %v3324 = vadd.f32 %v3131, %v3323
        %v3325 = vpop.f32.mrb[0].mxu0
        %v3326 = vadd.f32 %v3133, %v3325
        %v3327 = vpop.f32.mrb[0].mxu0
        %v3328 = vadd.f32 %v3135, %v3327
        %3329 = vmatprep.mubr.bf16.mxu0 %v2006
        %3330 = vmatmul.mubr.bf16.gmra.mrb[0].mxu0 %v2005
        %v3331 = vpop.f32.mrb[0].mxu0
        %v3332 = vadd.f32 %v3139, %v3331
        %v3333 = vpop.f32.mrb[0].mxu0
        %v3334 = vadd.f32 %v3141, %v3333
        %v3335 = vpop.f32.mrb[0].mxu0
        %v3336 = vadd.f32 %v3143, %v3335
        %v3337 = vpop.f32.mrb[0].mxu0
        %v3338 = vadd.f32 %v3145, %v3337
        %3339 = vmatprep.mubr.bf16.mxu0 %v2012
        %3340 = vmatmul.mubr.bf16.gmra.mrb[0].mxu0 %v2011
        %v3341 = vpop.f32.mrb[0].mxu0
        %v3342 = vadd.f32 %v3149, %v3341
        %v3343 = vpop.f32.mrb[0].mxu0
        %v3344 = vadd.f32 %v3151, %v3343
        %v3345 = vpop.f32.mrb[0].mxu0
        %v3346 = vadd.f32 %v3153, %v3345
        %v3347 = vpop.f32.mrb[0].mxu0
        %v3348 = vadd.f32 %v3155, %v3347
        %3349 = vmatprep.mubr.bf16.mxu0 %v2018
        %3350 = vmatmul.mubr.bf16.gmra.mrb[0].mxu0 %v2017
        %v3351 = vpop.f32.mrb[0].mxu0
        %v3352 = vadd.f32 %v3159, %v3351
        %v3353 = vpop.f32.mrb[0].mxu0
        %v3354 = vadd.f32 %v3161, %v3353
        %v3355 = vpop.f32.mrb[0].mxu0
        %v3356 = vadd.f32 %v3163, %v3355
        %v3357 = vpop.f32.mrb[0].mxu0
        %v3358 = vadd.f32 %v3165, %v3357
        %3359 = vmatprep.mubr.bf16.mxu0 %v2024
        %3360 = vmatmul.mubr.bf16.gmra.mrb[0].mxu0 %v2023
        %v3361 = vpop.f32.mrb[0].mxu0
        %v3362 = vadd.f32 %v3169, %v3361
        %v3363 = vpop.f32.mrb[0].mxu0
        %v3364 = vadd.f32 %v3171, %v3363
        %v3365 = vpop.f32.mrb[0].mxu0
        %v3366 = vadd.f32 %v3173, %v3365
        %v3367 = vpop.f32.mrb[0].mxu0
        %v3368 = vadd.f32 %v3175, %v3367
        %3369 = vmatprep.mubr.bf16.mxu0 %v2030
        %3370 = vmatmul.mubr.bf16.gmra.mrb[0].mxu0 %v2029
        %v3371 = vpop.f32.mrb[0].mxu0
        %v3372 = vadd.f32 %v3179, %v3371
        %v3373 = vpop.f32.mrb[0].mxu0
        %v3374 = vadd.f32 %v3181, %v3373
        %v3375 = vpop.f32.mrb[0].mxu0
        %v3376 = vadd.f32 %v3183, %v3375
        %v3377 = vpop.f32.mrb[0].mxu0
        %v3378 = vadd.f32 %v3185, %v3377
        %3379 = vdwg.mxu0
        %v3476 = vunpack.c.l.b16 %v2128
        %v3477 = vunpack.c.h.b16 %v2128
        %v3478 = vunpack.c.l.b16 %v2129
        %v3479 = vunpack.c.h.b16 %v2129
        %v3480 = vunpack.c.l.b16 %v2130
        %v3481 = vunpack.c.h.b16 %v2130
        %v3482 = vunpack.c.l.b16 %v2131
        %v3483 = vunpack.c.h.b16 %v2131
        %v3484 = vunpack.c.l.b16 %v2132
        %v3485 = vunpack.c.h.b16 %v2132
        %v3486 = vunpack.c.l.b16 %v2133
        %v3487 = vunpack.c.h.b16 %v2133
        %v3488 = vunpack.c.l.b16 %v2134
        %v3489 = vunpack.c.h.b16 %v2134
        %v3490 = vunpack.c.l.b16 %v2135
        %v3491 = vunpack.c.h.b16 %v2135
        %v3492 = vunpack.c.l.b16 %v2136
        %v3493 = vunpack.c.h.b16 %v2136
        %v3494 = vunpack.c.l.b16 %v2137
        %v3495 = vunpack.c.h.b16 %v2137
        %v3496 = vunpack.c.l.b16 %v2138
        %v3497 = vunpack.c.h.b16 %v2138
        %v3498 = vunpack.c.l.b16 %v2139
        %v3499 = vunpack.c.h.b16 %v2139
        %v3500 = vunpack.c.l.b16 %v2140
        %v3501 = vunpack.c.h.b16 %v2140
        %v3502 = vunpack.c.l.b16 %v2141
        %v3503 = vunpack.c.h.b16 %v2141
        %v3504 = vunpack.c.l.b16 %v2142
        %v3505 = vunpack.c.h.b16 %v2142
        %v3506 = vunpack.c.l.b16 %v2143
        %v3507 = vunpack.c.h.b16 %v2143
        %v3508 = vunpack.c.l.b16 %v2144
        %v3509 = vunpack.c.h.b16 %v2144
        %v3510 = vunpack.c.l.b16 %v2145
        %v3511 = vunpack.c.h.b16 %v2145
        %v3512 = vunpack.c.l.b16 %v2146
        %v3513 = vunpack.c.h.b16 %v2146
        %v3514 = vunpack.c.l.b16 %v2147
        %v3515 = vunpack.c.h.b16 %v2147
        %v3516 = vunpack.c.l.b16 %v2148
        %v3517 = vunpack.c.h.b16 %v2148
        %v3518 = vunpack.c.l.b16 %v2149
        %v3519 = vunpack.c.h.b16 %v2149
        %v3520 = vunpack.c.l.b16 %v2150
        %v3521 = vunpack.c.h.b16 %v2150
        %v3522 = vunpack.c.l.b16 %v2151
        %v3523 = vunpack.c.h.b16 %v2151
        %v3524 = vunpack.c.l.b16 %v2152
        %v3525 = vunpack.c.h.b16 %v2152
        %v3526 = vunpack.c.l.b16 %v2153
        %v3527 = vunpack.c.h.b16 %v2153
        %v3528 = vunpack.c.l.b16 %v2154
        %v3529 = vunpack.c.h.b16 %v2154
        %v3530 = vunpack.c.l.b16 %v2155
        %v3531 = vunpack.c.h.b16 %v2155
        %v3532 = vunpack.c.l.b16 %v2156
        %v3533 = vunpack.c.h.b16 %v2156
        %v3534 = vunpack.c.l.b16 %v2157
        %v3535 = vunpack.c.h.b16 %v2157
        %v3536 = vunpack.c.l.b16 %v2158
        %v3537 = vunpack.c.h.b16 %v2158
        %v3538 = vunpack.c.l.b16 %v2159
        %v3539 = vunpack.c.h.b16 %v2159
        %v3540 = vunpack.c.l.b16 %v2160
        %v3541 = vunpack.c.h.b16 %v2160
        %v3542 = vunpack.c.l.b16 %v2161
        %v3543 = vunpack.c.h.b16 %v2161
        %v3544 = vunpack.c.l.b16 %v2162
        %v3545 = vunpack.c.h.b16 %v2162
        %v3546 = vunpack.c.l.b16 %v2163
        %v3547 = vunpack.c.h.b16 %v2163
        %v3548 = vunpack.c.l.b16 %v2164
        %v3549 = vunpack.c.h.b16 %v2164
        %v3550 = vunpack.c.l.b16 %v2165
        %v3551 = vunpack.c.h.b16 %v2165
        %v3552 = vunpack.c.l.b16 %v2166
        %v3553 = vunpack.c.h.b16 %v2166
        %v3554 = vunpack.c.l.b16 %v2167
        %v3555 = vunpack.c.h.b16 %v2167
        %v3556 = vunpack.c.l.b16 %v2168
        %v3557 = vunpack.c.h.b16 %v2168
        %v3558 = vunpack.c.l.b16 %v2169
        %v3559 = vunpack.c.h.b16 %v2169
        %v3560 = vunpack.c.l.b16 %v2170
        %v3561 = vunpack.c.h.b16 %v2170
        %v3562 = vunpack.c.l.b16 %v2171
        %v3563 = vunpack.c.h.b16 %v2171
        %v3564 = vunpack.c.l.b16 %v2172
        %v3565 = vunpack.c.h.b16 %v2172
        %v3566 = vunpack.c.l.b16 %v2173
        %v3567 = vunpack.c.h.b16 %v2173
        %v3568 = vunpack.c.l.b16 %v2174
        %v3569 = vunpack.c.h.b16 %v2174
        %v3570 = vunpack.c.l.b16 %v2175
        %v3571 = vunpack.c.h.b16 %v2175
        %v3572 = vunpack.c.l.b16 %v2176
        %v3573 = vunpack.c.h.b16 %v2176
        %v3574 = vunpack.c.l.b16 %v2177
        %v3575 = vunpack.c.h.b16 %v2177
        %v3576 = vunpack.c.l.b16 %v2178
        %v3577 = vunpack.c.h.b16 %v2178
        %v3578 = vunpack.c.l.b16 %v2179
        %v3579 = vunpack.c.h.b16 %v2179
        %v3580 = vunpack.c.l.b16 %v2180
        %v3581 = vunpack.c.h.b16 %v2180
        %v3582 = vunpack.c.l.b16 %v2181
        %v3583 = vunpack.c.h.b16 %v2181
        %v3584 = vunpack.c.l.b16 %v2182
        %v3585 = vunpack.c.h.b16 %v2182
        %v3586 = vunpack.c.l.b16 %v2183
        %v3587 = vunpack.c.h.b16 %v2183
        %v3588 = vunpack.c.l.b16 %v2184
        %v3589 = vunpack.c.h.b16 %v2184
        %v3590 = vunpack.c.l.b16 %v2185
        %v3591 = vunpack.c.h.b16 %v2185
        %v3592 = vunpack.c.l.b16 %v2186
        %v3593 = vunpack.c.h.b16 %v2186
        %v3594 = vunpack.c.l.b16 %v2187
        %v3595 = vunpack.c.h.b16 %v2187
        %v3596 = vunpack.c.l.b16 %v2188
        %v3597 = vunpack.c.h.b16 %v2188
        %v3598 = vunpack.c.l.b16 %v2189
        %v3599 = vunpack.c.h.b16 %v2189
        %v3600 = vunpack.c.l.b16 %v2190
        %v3601 = vunpack.c.h.b16 %v2190
        %v3602 = vunpack.c.l.b16 %v2191
        %v3603 = vunpack.c.h.b16 %v2191
        %v3604 = vunpack.c.l.b16 %v2192
        %v3605 = vunpack.c.h.b16 %v2192
        %v3606 = vunpack.c.l.b16 %v2193
        %v3607 = vunpack.c.h.b16 %v2193
        %v3608 = vunpack.c.l.b16 %v2194
        %v3609 = vunpack.c.h.b16 %v2194
        %v3610 = vunpack.c.l.b16 %v2195
        %v3611 = vunpack.c.h.b16 %v2195
        %v3612 = vunpack.c.l.b16 %v2196
        %v3613 = vunpack.c.h.b16 %v2196
        %v3614 = vunpack.c.l.b16 %v2197
        %v3615 = vunpack.c.h.b16 %v2197
        %v3616 = vunpack.c.l.b16 %v2198
        %v3617 = vunpack.c.h.b16 %v2198
        %v3618 = vunpack.c.l.b16 %v2199
        %v3619 = vunpack.c.h.b16 %v2199
        %v3620 = vunpack.c.l.b16 %v2200
        %v3621 = vunpack.c.h.b16 %v2200
        %v3622 = vunpack.c.l.b16 %v2201
        %v3623 = vunpack.c.h.b16 %v2201
        %v3624 = vunpack.c.l.b16 %v2202
        %v3625 = vunpack.c.h.b16 %v2202
        %v3626 = vunpack.c.l.b16 %v2203
        %v3627 = vunpack.c.h.b16 %v2203
        %v3628 = vunpack.c.l.b16 %v2204
        %v3629 = vunpack.c.h.b16 %v2204
        %v3630 = vunpack.c.l.b16 %v2205
        %v3631 = vunpack.c.h.b16 %v2205
        %v3632 = vunpack.c.l.b16 %v2206
        %v3633 = vunpack.c.h.b16 %v2206
        %v3634 = vunpack.c.l.b16 %v2207
        %v3635 = vunpack.c.h.b16 %v2207
        %v3636 = vunpack.c.l.b16 %v2208
        %v3637 = vunpack.c.h.b16 %v2208
        %v3638 = vunpack.c.l.b16 %v2209
        %v3639 = vunpack.c.h.b16 %v2209
        %v3640 = vunpack.c.l.b16 %v2210
        %v3641 = vunpack.c.h.b16 %v2210
        %v3642 = vunpack.c.l.b16 %v2211
        %v3643 = vunpack.c.h.b16 %v2211
        %v3644 = vunpack.c.l.b16 %v2212
        %v3645 = vunpack.c.h.b16 %v2212
        %v3646 = vunpack.c.l.b16 %v2213
        %v3647 = vunpack.c.h.b16 %v2213
        %v3648 = vunpack.c.l.b16 %v2214
        %v3649 = vunpack.c.h.b16 %v2214
        %v3650 = vunpack.c.l.b16 %v2215
        %v3651 = vunpack.c.h.b16 %v2215
        %v3652 = vunpack.c.l.b16 %v2216
        %v3653 = vunpack.c.h.b16 %v2216
        %v3654 = vunpack.c.l.b16 %v2217
        %v3655 = vunpack.c.h.b16 %v2217
        %v3656 = vunpack.c.l.b16 %v2218
        %v3657 = vunpack.c.h.b16 %v2218
        %v3658 = vunpack.c.l.b16 %v2219
        %v3659 = vunpack.c.h.b16 %v2219
        %v3660 = vunpack.c.l.b16 %v2220
        %v3661 = vunpack.c.h.b16 %v2220
        %v3662 = vunpack.c.l.b16 %v2221
        %v3663 = vunpack.c.h.b16 %v2221
        %v3664 = vunpack.c.l.b16 %v2222
        %v3665 = vunpack.c.h.b16 %v2222
        %v3666 = vunpack.c.l.b16 %v2223
        %v3667 = vunpack.c.h.b16 %v2223
        %v3668 = vpack.c.b16 %v3478, %v3476
        %v3669 = vpack.c.b16 %v3479, %v3477
        %v3670 = vpack.c.b16 %v3482, %v3480
        %v3671 = vpack.c.b16 %v3483, %v3481
        %v3672 = vpack.c.b16 %v3486, %v3484
        %v3673 = vpack.c.b16 %v3487, %v3485
        %v3674 = vpack.c.b16 %v3490, %v3488
        %v3675 = vpack.c.b16 %v3491, %v3489
        %v3676 = vpack.c.b16 %v3494, %v3492
        %v3677 = vpack.c.b16 %v3495, %v3493
        %v3678 = vpack.c.b16 %v3498, %v3496
        %v3679 = vpack.c.b16 %v3499, %v3497
        %v3680 = vpack.c.b16 %v3502, %v3500
        %v3681 = vpack.c.b16 %v3503, %v3501
        %v3682 = vpack.c.b16 %v3506, %v3504
        %v3683 = vpack.c.b16 %v3507, %v3505
        %v3684 = vpack.c.b16 %v3510, %v3508
        %v3685 = vpack.c.b16 %v3511, %v3509
        %v3686 = vpack.c.b16 %v3514, %v3512
        %v3687 = vpack.c.b16 %v3515, %v3513
        %v3688 = vpack.c.b16 %v3518, %v3516
        %v3689 = vpack.c.b16 %v3519, %v3517
        %v3690 = vpack.c.b16 %v3522, %v3520
        %v3691 = vpack.c.b16 %v3523, %v3521
        %v3692 = vpack.c.b16 %v3526, %v3524
        %v3693 = vpack.c.b16 %v3527, %v3525
        %v3694 = vpack.c.b16 %v3530, %v3528
        %v3695 = vpack.c.b16 %v3531, %v3529
        %v3696 = vpack.c.b16 %v3534, %v3532
        %v3697 = vpack.c.b16 %v3535, %v3533
        %v3698 = vpack.c.b16 %v3538, %v3536
        %v3699 = vpack.c.b16 %v3539, %v3537
        %v3700 = vpack.c.b16 %v3542, %v3540
        %v3701 = vpack.c.b16 %v3543, %v3541
        %v3702 = vpack.c.b16 %v3546, %v3544
        %v3703 = vpack.c.b16 %v3547, %v3545
        %v3704 = vpack.c.b16 %v3550, %v3548
        %v3705 = vpack.c.b16 %v3551, %v3549
        %v3706 = vpack.c.b16 %v3554, %v3552
        %v3707 = vpack.c.b16 %v3555, %v3553
        %v3708 = vpack.c.b16 %v3558, %v3556
        %v3709 = vpack.c.b16 %v3559, %v3557
        %v3710 = vpack.c.b16 %v3562, %v3560
        %v3711 = vpack.c.b16 %v3563, %v3561
        %v3712 = vpack.c.b16 %v3566, %v3564
        %v3713 = vpack.c.b16 %v3567, %v3565
        %v3714 = vpack.c.b16 %v3570, %v3568
        %v3715 = vpack.c.b16 %v3571, %v3569
        %v3716 = vpack.c.b16 %v3574, %v3572
        %v3717 = vpack.c.b16 %v3575, %v3573
        %v3718 = vpack.c.b16 %v3578, %v3576
        %v3719 = vpack.c.b16 %v3579, %v3577
        %v3720 = vpack.c.b16 %v3582, %v3580
        %v3721 = vpack.c.b16 %v3583, %v3581
        %v3722 = vpack.c.b16 %v3586, %v3584
        %v3723 = vpack.c.b16 %v3587, %v3585
        %v3724 = vpack.c.b16 %v3590, %v3588
        %v3725 = vpack.c.b16 %v3591, %v3589
        %v3726 = vpack.c.b16 %v3594, %v3592
        %v3727 = vpack.c.b16 %v3595, %v3593
        %v3728 = vpack.c.b16 %v3598, %v3596
        %v3729 = vpack.c.b16 %v3599, %v3597
        %v3730 = vpack.c.b16 %v3602, %v3600
        %v3731 = vpack.c.b16 %v3603, %v3601
        %v3732 = vpack.c.b16 %v3606, %v3604
        %v3733 = vpack.c.b16 %v3607, %v3605
        %v3734 = vpack.c.b16 %v3610, %v3608
        %v3735 = vpack.c.b16 %v3611, %v3609
        %v3736 = vpack.c.b16 %v3614, %v3612
        %v3737 = vpack.c.b16 %v3615, %v3613
        %v3738 = vpack.c.b16 %v3618, %v3616
        %v3739 = vpack.c.b16 %v3619, %v3617
        %v3740 = vpack.c.b16 %v3622, %v3620
        %v3741 = vpack.c.b16 %v3623, %v3621
        %v3742 = vpack.c.b16 %v3626, %v3624
        %v3743 = vpack.c.b16 %v3627, %v3625
        %v3744 = vpack.c.b16 %v3630, %v3628
        %v3745 = vpack.c.b16 %v3631, %v3629
        %v3746 = vpack.c.b16 %v3634, %v3632
        %v3747 = vpack.c.b16 %v3635, %v3633
        %v3748 = vpack.c.b16 %v3638, %v3636
        %v3749 = vpack.c.b16 %v3639, %v3637
        %v3750 = vpack.c.b16 %v3642, %v3640
        %v3751 = vpack.c.b16 %v3643, %v3641
        %v3752 = vpack.c.b16 %v3646, %v3644
        %v3753 = vpack.c.b16 %v3647, %v3645
        %v3754 = vpack.c.b16 %v3650, %v3648
        %v3755 = vpack.c.b16 %v3651, %v3649
        %v3756 = vpack.c.b16 %v3654, %v3652
        %v3757 = vpack.c.b16 %v3655, %v3653
        %v3758 = vpack.c.b16 %v3658, %v3656
        %v3759 = vpack.c.b16 %v3659, %v3657
        %v3760 = vpack.c.b16 %v3662, %v3660
        %v3761 = vpack.c.b16 %v3663, %v3661
        %v3762 = vpack.c.b16 %v3666, %v3664
        %v3763 = vpack.c.b16 %v3667, %v3665
        %3860 = vmatprep.subr.bf16.mxu0 %v3669
        %3861 = vmatpush1.bf16.msra.mxu0 %v3668
        %3862 = vmatprep.subr.bf16.mxu0 %v3671
        %3863 = vmatpush1.bf16.msra.mxu0 %v3670
        %3864 = vmatprep.subr.bf16.mxu0 %v3673
        %3865 = vmatpush1.bf16.msra.mxu0 %v3672
        %3866 = vmatprep.subr.bf16.mxu0 %v3675
        %3867 = vmatpush1.bf16.msra.mxu0 %v3674
        %3868 = vmatprep.subr.bf16.mxu0 %v3677
        %3869 = vmatpush1.bf16.msra.mxu0 %v3676
        %3870 = vmatprep.subr.bf16.mxu0 %v3679
        %3871 = vmatpush1.bf16.msra.mxu0 %v3678
        %3872 = vmatprep.subr.bf16.mxu0 %v3681
        %3873 = vmatpush1.bf16.msra.mxu0 %v3680
        %3874 = vmatprep.subr.bf16.mxu0 %v3683
        %3875 = vmatpush1.bf16.msra.mxu0 %v3682
        %3876 = vmatprep.subr.bf16.mxu0 %v3685
        %3877 = vmatpush1.bf16.msra.mxu0 %v3684
        %3878 = vmatprep.subr.bf16.mxu0 %v3687
        %3879 = vmatpush1.bf16.msra.mxu0 %v3686
        %3880 = vmatprep.subr.bf16.mxu0 %v3689
        %3881 = vmatpush1.bf16.msra.mxu0 %v3688
        %3882 = vmatprep.subr.bf16.mxu0 %v3691
        %3883 = vmatpush1.bf16.msra.mxu0 %v3690
        %3884 = vmatprep.subr.bf16.mxu0 %v3693
        %3885 = vmatpush1.bf16.msra.mxu0 %v3692
        %3886 = vmatprep.subr.bf16.mxu0 %v3695
        %3887 = vmatpush1.bf16.msra.mxu0 %v3694
        %3888 = vmatprep.subr.bf16.mxu0 %v3697
        %3889 = vmatpush1.bf16.msra.mxu0 %v3696
        %3890 = vmatprep.subr.bf16.mxu0 %v3699
        %3891 = vmatpush1.bf16.msra.mxu0 %v3698
        %3892 = vmatprep.mubr.bf16.mxu0 %v1840
        %3893 = vmatmul.mubr.bf16.gmra.mrb[0].mxu0 %v1839
        %v3894 = vpop.f32.mrb[0].mxu0
        %v3895 = vadd.f32 %v3222, %v3894
        %v3896 = vpop.f32.mrb[0].mxu0
        %v3897 = vadd.f32 %v3224, %v3896
        %v3898 = vpop.f32.mrb[0].mxu0
        %v3899 = vadd.f32 %v3226, %v3898
        %v3900 = vpop.f32.mrb[0].mxu0
        %v3901 = vadd.f32 %v3228, %v3900
        %3902 = vmatprep.mubr.bf16.mxu0 %v1846
        %3903 = vmatmul.mubr.bf16.gmra.mrb[0].mxu0 %v1845
        %v3904 = vpop.f32.mrb[0].mxu0
        %v3905 = vadd.f32 %v3232, %v3904
        %v3906 = vpop.f32.mrb[0].mxu0
        %v3907 = vadd.f32 %v3234, %v3906
        %v3908 = vpop.f32.mrb[0].mxu0
        %v3909 = vadd.f32 %v3236, %v3908
        %v3910 = vpop.f32.mrb[0].mxu0
        %v3911 = vadd.f32 %v3238, %v3910
        %3912 = vmatprep.mubr.bf16.mxu0 %v1852
        %3913 = vmatmul.mubr.bf16.gmra.mrb[0].mxu0 %v1851
        %v3914 = vpop.f32.mrb[0].mxu0
        %v3915 = vadd.f32 %v3242, %v3914
        %v3916 = vpop.f32.mrb[0].mxu0
        %v3917 = vadd.f32 %v3244, %v3916
        %v3918 = vpop.f32.mrb[0].mxu0
        %v3919 = vadd.f32 %v3246, %v3918
        %v3920 = vpop.f32.mrb[0].mxu0
        %v3921 = vadd.f32 %v3248, %v3920
        %3922 = vmatprep.mubr.bf16.mxu0 %v1858
        %3923 = vmatmul.mubr.bf16.gmra.mrb[0].mxu0 %v1857
        %v3924 = vpop.f32.mrb[0].mxu0
        %v3925 = vadd.f32 %v3252, %v3924
        %v3926 = vpop.f32.mrb[0].mxu0
        %v3927 = vadd.f32 %v3254, %v3926
        %v3928 = vpop.f32.mrb[0].mxu0
        %v3929 = vadd.f32 %v3256, %v3928
        %v3930 = vpop.f32.mrb[0].mxu0
        %v3931 = vadd.f32 %v3258, %v3930
        %3932 = vmatprep.mubr.bf16.mxu0 %v1864
        %3933 = vmatmul.mubr.bf16.gmra.mrb[0].mxu0 %v1863
        %v3934 = vpop.f32.mrb[0].mxu0
        %v3935 = vadd.f32 %v3262, %v3934
        %v3936 = vpop.f32.mrb[0].mxu0
        %v3937 = vadd.f32 %v3264, %v3936
        %v3938 = vpop.f32.mrb[0].mxu0
        %v3939 = vadd.f32 %v3266, %v3938
        %v3940 = vpop.f32.mrb[0].mxu0
        %v3941 = vadd.f32 %v3268, %v3940
        %3942 = vmatprep.mubr.bf16.mxu0 %v1870
        %3943 = vmatmul.mubr.bf16.gmra.mrb[0].mxu0 %v1869
        %v3944 = vpop.f32.mrb[0].mxu0
        %v3945 = vadd.f32 %v3272, %v3944
        %v3946 = vpop.f32.mrb[0].mxu0
        %v3947 = vadd.f32 %v3274, %v3946
        %v3948 = vpop.f32.mrb[0].mxu0
        %v3949 = vadd.f32 %v3276, %v3948
        %v3950 = vpop.f32.mrb[0].mxu0
        %v3951 = vadd.f32 %v3278, %v3950
        %3952 = vmatprep.mubr.bf16.mxu0 %v1876
        %3953 = vmatmul.mubr.bf16.gmra.mrb[0].mxu0 %v1875
        %v3954 = vpop.f32.mrb[0].mxu0
        %v3955 = vadd.f32 %v3282, %v3954
        %v3956 = vpop.f32.mrb[0].mxu0
        %v3957 = vadd.f32 %v3284, %v3956
        %v3958 = vpop.f32.mrb[0].mxu0
        %v3959 = vadd.f32 %v3286, %v3958
        %v3960 = vpop.f32.mrb[0].mxu0
        %v3961 = vadd.f32 %v3288, %v3960
        %3962 = vmatprep.mubr.bf16.mxu0 %v1882
        %3963 = vmatmul.mubr.bf16.gmra.mrb[0].mxu0 %v1881
        %v3964 = vpop.f32.mrb[0].mxu0
        %v3965 = vadd.f32 %v3292, %v3964
        %v3966 = vpop.f32.mrb[0].mxu0
        %v3967 = vadd.f32 %v3294, %v3966
        %v3968 = vpop.f32.mrb[0].mxu0
        %v3969 = vadd.f32 %v3296, %v3968
        %v3970 = vpop.f32.mrb[0].mxu0
        %v3971 = vadd.f32 %v3298, %v3970
        %3972 = vmatprep.mubr.bf16.mxu0 %v1888
        %3973 = vmatmul.mubr.bf16.gmra.mrb[0].mxu0 %v1887
        %v3974 = vpop.f32.mrb[0].mxu0
        %v3975 = vadd.f32 %v3302, %v3974
        %v3976 = vpop.f32.mrb[0].mxu0
        %v3977 = vadd.f32 %v3304, %v3976
        %v3978 = vpop.f32.mrb[0].mxu0
        %v3979 = vadd.f32 %v3306, %v3978
        %v3980 = vpop.f32.mrb[0].mxu0
        %v3981 = vadd.f32 %v3308, %v3980
        %3982 = vmatprep.mubr.bf16.mxu0 %v1894
        %3983 = vmatmul.mubr.bf16.gmra.mrb[0].mxu0 %v1893
        %v3984 = vpop.f32.mrb[0].mxu0
        %v3985 = vadd.f32 %v3312, %v3984
        %v3986 = vpop.f32.mrb[0].mxu0
        %v3987 = vadd.f32 %v3314, %v3986
        %v3988 = vpop.f32.mrb[0].mxu0
        %v3989 = vadd.f32 %v3316, %v3988
        %v3990 = vpop.f32.mrb[0].mxu0
        %v3991 = vadd.f32 %v3318, %v3990
        %3992 = vmatprep.mubr.bf16.mxu0 %v1900
        %3993 = vmatmul.mubr.bf16.gmra.mrb[0].mxu0 %v1899
        %v3994 = vpop.f32.mrb[0].mxu0
        %v3995 = vadd.f32 %v3322, %v3994
        %v3996 = vpop.f32.mrb[0].mxu0
        %v3997 = vadd.f32 %v3324, %v3996
        %v3998 = vpop.f32.mrb[0].mxu0
        %v3999 = vadd.f32 %v3326, %v3998
        %v4000 = vpop.f32.mrb[0].mxu0
        %v4001 = vadd.f32 %v3328, %v4000
        %4002 = vmatprep.mubr.bf16.mxu0 %v1906
        %4003 = vmatmul.mubr.bf16.gmra.mrb[0].mxu0 %v1905
        %v4004 = vpop.f32.mrb[0].mxu0
        %v4005 = vadd.f32 %v3332, %v4004
        %v4006 = vpop.f32.mrb[0].mxu0
        %v4007 = vadd.f32 %v3334, %v4006
        %v4008 = vpop.f32.mrb[0].mxu0
        %v4009 = vadd.f32 %v3336, %v4008
        %v4010 = vpop.f32.mrb[0].mxu0
        %v4011 = vadd.f32 %v3338, %v4010
        %4012 = vmatprep.mubr.bf16.mxu0 %v1912
        %4013 = vmatmul.mubr.bf16.gmra.mrb[0].mxu0 %v1911
        %v4014 = vpop.f32.mrb[0].mxu0
        %v4015 = vadd.f32 %v3342, %v4014
        %v4016 = vpop.f32.mrb[0].mxu0
        %v4017 = vadd.f32 %v3344, %v4016
        %v4018 = vpop.f32.mrb[0].mxu0
        %v4019 = vadd.f32 %v3346, %v4018
        %v4020 = vpop.f32.mrb[0].mxu0
        %v4021 = vadd.f32 %v3348, %v4020
        %4022 = vmatprep.mubr.bf16.mxu0 %v1918
        %4023 = vmatmul.mubr.bf16.gmra.mrb[0].mxu0 %v1917
        %v4024 = vpop.f32.mrb[0].mxu0
        %v4025 = vadd.f32 %v3352, %v4024
        %v4026 = vpop.f32.mrb[0].mxu0
        %v4027 = vadd.f32 %v3354, %v4026
        %v4028 = vpop.f32.mrb[0].mxu0
        %v4029 = vadd.f32 %v3356, %v4028
        %v4030 = vpop.f32.mrb[0].mxu0
        %v4031 = vadd.f32 %v3358, %v4030
        %4032 = vmatprep.mubr.bf16.mxu0 %v1924
        %4033 = vmatmul.mubr.bf16.gmra.mrb[0].mxu0 %v1923
        %v4034 = vpop.f32.mrb[0].mxu0
        %v4035 = vadd.f32 %v3362, %v4034
        %v4036 = vpop.f32.mrb[0].mxu0
        %v4037 = vadd.f32 %v3364, %v4036
        %v4038 = vpop.f32.mrb[0].mxu0
        %v4039 = vadd.f32 %v3366, %v4038
        %v4040 = vpop.f32.mrb[0].mxu0
        %v4041 = vadd.f32 %v3368, %v4040
        %4042 = vmatprep.mubr.bf16.mxu0 %v1930
        %4043 = vmatmul.mubr.bf16.gmra.mrb[0].mxu0 %v1929
        %v4044 = vpop.f32.mrb[0].mxu0
        %v4045 = vadd.f32 %v3372, %v4044
        %v4046 = vpop.f32.mrb[0].mxu0
        %v4047 = vadd.f32 %v3374, %v4046
        %v4048 = vpop.f32.mrb[0].mxu0
        %v4049 = vadd.f32 %v3376, %v4048
        %v4050 = vpop.f32.mrb[0].mxu0
        %v4051 = vadd.f32 %v3378, %v4050
        %4052 = vdwg.mxu0
        %4053 = vmatprep.subr.bf16.mxu0 %v3701
        %4054 = vmatpush1.bf16.msra.mxu0 %v3700
        %4055 = vmatprep.subr.bf16.mxu0 %v3703
        %4056 = vmatpush1.bf16.msra.mxu0 %v3702
        %4057 = vmatprep.subr.bf16.mxu0 %v3705
        %4058 = vmatpush1.bf16.msra.mxu0 %v3704
        %4059 = vmatprep.subr.bf16.mxu0 %v3707
        %4060 = vmatpush1.bf16.msra.mxu0 %v3706
        %4061 = vmatprep.subr.bf16.mxu0 %v3709
        %4062 = vmatpush1.bf16.msra.mxu0 %v3708
        %4063 = vmatprep.subr.bf16.mxu0 %v3711
        %4064 = vmatpush1.bf16.msra.mxu0 %v3710
        %4065 = vmatprep.subr.bf16.mxu0 %v3713
        %4066 = vmatpush1.bf16.msra.mxu0 %v3712
        %4067 = vmatprep.subr.bf16.mxu0 %v3715
        %4068 = vmatpush1.bf16.msra.mxu0 %v3714
        %4069 = vmatprep.subr.bf16.mxu0 %v3717
        %4070 = vmatpush1.bf16.msra.mxu0 %v3716
        %4071 = vmatprep.subr.bf16.mxu0 %v3719
        %4072 = vmatpush1.bf16.msra.mxu0 %v3718
        %4073 = vmatprep.subr.bf16.mxu0 %v3721
        %4074 = vmatpush1.bf16.msra.mxu0 %v3720
        %4075 = vmatprep.subr.bf16.mxu0 %v3723
        %4076 = vmatpush1.bf16.msra.mxu0 %v3722
        %4077 = vmatprep.subr.bf16.mxu0 %v3725
        %4078 = vmatpush1.bf16.msra.mxu0 %v3724
        %4079 = vmatprep.subr.bf16.mxu0 %v3727
        %4080 = vmatpush1.bf16.msra.mxu0 %v3726
        %4081 = vmatprep.subr.bf16.mxu0 %v3729
        %4082 = vmatpush1.bf16.msra.mxu0 %v3728
        %4083 = vmatprep.subr.bf16.mxu0 %v3731
        %4084 = vmatpush1.bf16.msra.mxu0 %v3730
        %4085 = vmatprep.mubr.bf16.mxu0 %v1842
        %4086 = vmatmul.mubr.bf16.gmra.mrb[0].mxu0 %v1841
        %v4087 = vpop.f32.mrb[0].mxu0
        %v4088 = vadd.f32 %v3895, %v4087
        %v4089 = vpop.f32.mrb[0].mxu0
        %v4090 = vadd.f32 %v3897, %v4089
        %v4091 = vpop.f32.mrb[0].mxu0
        %v4092 = vadd.f32 %v3899, %v4091
        %v4093 = vpop.f32.mrb[0].mxu0
        %v4094 = vadd.f32 %v3901, %v4093
        %4095 = vmatprep.mubr.bf16.mxu0 %v1848
        %4096 = vmatmul.mubr.bf16.gmra.mrb[0].mxu0 %v1847
        %v4097 = vpop.f32.mrb[0].mxu0
        %v4098 = vadd.f32 %v3905, %v4097
        %v4099 = vpop.f32.mrb[0].mxu0
        %v4100 = vadd.f32 %v3907, %v4099
        %v4101 = vpop.f32.mrb[0].mxu0
        %v4102 = vadd.f32 %v3909, %v4101
        %v4103 = vpop.f32.mrb[0].mxu0
        %v4104 = vadd.f32 %v3911, %v4103
        %4105 = vmatprep.mubr.bf16.mxu0 %v1854
        %4106 = vmatmul.mubr.bf16.gmra.mrb[0].mxu0 %v1853
        %v4107 = vpop.f32.mrb[0].mxu0
        %v4108 = vadd.f32 %v3915, %v4107
        %v4109 = vpop.f32.mrb[0].mxu0
        %v4110 = vadd.f32 %v3917, %v4109
        %v4111 = vpop.f32.mrb[0].mxu0
        %v4112 = vadd.f32 %v3919, %v4111
        %v4113 = vpop.f32.mrb[0].mxu0
        %v4114 = vadd.f32 %v3921, %v4113
        %4115 = vmatprep.mubr.bf16.mxu0 %v1860
        %4116 = vmatmul.mubr.bf16.gmra.mrb[0].mxu0 %v1859
        %v4117 = vpop.f32.mrb[0].mxu0
        %v4118 = vadd.f32 %v3925, %v4117
        %v4119 = vpop.f32.mrb[0].mxu0
        %v4120 = vadd.f32 %v3927, %v4119
        %v4121 = vpop.f32.mrb[0].mxu0
        %v4122 = vadd.f32 %v3929, %v4121
        %v4123 = vpop.f32.mrb[0].mxu0
        %v4124 = vadd.f32 %v3931, %v4123
        %4125 = vmatprep.mubr.bf16.mxu0 %v1866
        %4126 = vmatmul.mubr.bf16.gmra.mrb[0].mxu0 %v1865
        %v4127 = vpop.f32.mrb[0].mxu0
        %v4128 = vadd.f32 %v3935, %v4127
        %v4129 = vpop.f32.mrb[0].mxu0
        %v4130 = vadd.f32 %v3937, %v4129
        %v4131 = vpop.f32.mrb[0].mxu0
        %v4132 = vadd.f32 %v3939, %v4131
        %v4133 = vpop.f32.mrb[0].mxu0
        %v4134 = vadd.f32 %v3941, %v4133
        %4135 = vmatprep.mubr.bf16.mxu0 %v1872
        %4136 = vmatmul.mubr.bf16.gmra.mrb[0].mxu0 %v1871
        %v4137 = vpop.f32.mrb[0].mxu0
        %v4138 = vadd.f32 %v3945, %v4137
        %v4139 = vpop.f32.mrb[0].mxu0
        %v4140 = vadd.f32 %v3947, %v4139
        %v4141 = vpop.f32.mrb[0].mxu0
        %v4142 = vadd.f32 %v3949, %v4141
        %v4143 = vpop.f32.mrb[0].mxu0
        %v4144 = vadd.f32 %v3951, %v4143
        %4145 = vmatprep.mubr.bf16.mxu0 %v1878
        %4146 = vmatmul.mubr.bf16.gmra.mrb[0].mxu0 %v1877
        %v4147 = vpop.f32.mrb[0].mxu0
        %v4148 = vadd.f32 %v3955, %v4147
        %v4149 = vpop.f32.mrb[0].mxu0
        %v4150 = vadd.f32 %v3957, %v4149
        %v4151 = vpop.f32.mrb[0].mxu0
        %v4152 = vadd.f32 %v3959, %v4151
        %v4153 = vpop.f32.mrb[0].mxu0
        %v4154 = vadd.f32 %v3961, %v4153
        %4155 = vmatprep.mubr.bf16.mxu0 %v1884
        %4156 = vmatmul.mubr.bf16.gmra.mrb[0].mxu0 %v1883
        %v4157 = vpop.f32.mrb[0].mxu0
        %v4158 = vadd.f32 %v3965, %v4157
        %v4159 = vpop.f32.mrb[0].mxu0
        %v4160 = vadd.f32 %v3967, %v4159
        %v4161 = vpop.f32.mrb[0].mxu0
        %v4162 = vadd.f32 %v3969, %v4161
        %v4163 = vpop.f32.mrb[0].mxu0
        %v4164 = vadd.f32 %v3971, %v4163
        %4165 = vmatprep.mubr.bf16.mxu0 %v1890
        %4166 = vmatmul.mubr.bf16.gmra.mrb[0].mxu0 %v1889
        %v4167 = vpop.f32.mrb[0].mxu0
        %v4168 = vadd.f32 %v3975, %v4167
        %v4169 = vpop.f32.mrb[0].mxu0
        %v4170 = vadd.f32 %v3977, %v4169
        %v4171 = vpop.f32.mrb[0].mxu0
        %v4172 = vadd.f32 %v3979, %v4171
        %v4173 = vpop.f32.mrb[0].mxu0
        %v4174 = vadd.f32 %v3981, %v4173
        %4175 = vmatprep.mubr.bf16.mxu0 %v1896
        %4176 = vmatmul.mubr.bf16.gmra.mrb[0].mxu0 %v1895
        %v4177 = vpop.f32.mrb[0].mxu0
        %v4178 = vadd.f32 %v3985, %v4177
        %v4179 = vpop.f32.mrb[0].mxu0
        %v4180 = vadd.f32 %v3987, %v4179
        %v4181 = vpop.f32.mrb[0].mxu0
        %v4182 = vadd.f32 %v3989, %v4181
        %v4183 = vpop.f32.mrb[0].mxu0
        %v4184 = vadd.f32 %v3991, %v4183
        %4185 = vmatprep.mubr.bf16.mxu0 %v1902
        %4186 = vmatmul.mubr.bf16.gmra.mrb[0].mxu0 %v1901
        %v4187 = vpop.f32.mrb[0].mxu0
        %v4188 = vadd.f32 %v3995, %v4187
        %v4189 = vpop.f32.mrb[0].mxu0
        %v4190 = vadd.f32 %v3997, %v4189
        %v4191 = vpop.f32.mrb[0].mxu0
        %v4192 = vadd.f32 %v3999, %v4191
        %v4193 = vpop.f32.mrb[0].mxu0
        %v4194 = vadd.f32 %v4001, %v4193
        %4195 = vmatprep.mubr.bf16.mxu0 %v1908
        %4196 = vmatmul.mubr.bf16.gmra.mrb[0].mxu0 %v1907
        %v4197 = vpop.f32.mrb[0].mxu0
        %v4198 = vadd.f32 %v4005, %v4197
        %v4199 = vpop.f32.mrb[0].mxu0
        %v4200 = vadd.f32 %v4007, %v4199
        %v4201 = vpop.f32.mrb[0].mxu0
        %v4202 = vadd.f32 %v4009, %v4201
        %v4203 = vpop.f32.mrb[0].mxu0
        %v4204 = vadd.f32 %v4011, %v4203
        %4205 = vmatprep.mubr.bf16.mxu0 %v1914
        %4206 = vmatmul.mubr.bf16.gmra.mrb[0].mxu0 %v1913
        %v4207 = vpop.f32.mrb[0].mxu0
        %v4208 = vadd.f32 %v4015, %v4207
        %v4209 = vpop.f32.mrb[0].mxu0
        %v4210 = vadd.f32 %v4017, %v4209
        %v4211 = vpop.f32.mrb[0].mxu0
        %v4212 = vadd.f32 %v4019, %v4211
        %v4213 = vpop.f32.mrb[0].mxu0
        %v4214 = vadd.f32 %v4021, %v4213
        %4215 = vmatprep.mubr.bf16.mxu0 %v1920
        %4216 = vmatmul.mubr.bf16.gmra.mrb[0].mxu0 %v1919
        %v4217 = vpop.f32.mrb[0].mxu0
        %v4218 = vadd.f32 %v4025, %v4217
        %v4219 = vpop.f32.mrb[0].mxu0
        %v4220 = vadd.f32 %v4027, %v4219
        %v4221 = vpop.f32.mrb[0].mxu0
        %v4222 = vadd.f32 %v4029, %v4221
        %v4223 = vpop.f32.mrb[0].mxu0
        %v4224 = vadd.f32 %v4031, %v4223
        %4225 = vmatprep.mubr.bf16.mxu0 %v1926
        %4226 = vmatmul.mubr.bf16.gmra.mrb[0].mxu0 %v1925
        %v4227 = vpop.f32.mrb[0].mxu0
        %v4228 = vadd.f32 %v4035, %v4227
        %v4229 = vpop.f32.mrb[0].mxu0
        %v4230 = vadd.f32 %v4037, %v4229
        %v4231 = vpop.f32.mrb[0].mxu0
        %v4232 = vadd.f32 %v4039, %v4231
        %v4233 = vpop.f32.mrb[0].mxu0
        %v4234 = vadd.f32 %v4041, %v4233
        %4235 = vmatprep.mubr.bf16.mxu0 %v1932
        %4236 = vmatmul.mubr.bf16.gmra.mrb[0].mxu0 %v1931
        %v4237 = vpop.f32.mrb[0].mxu0
        %v4238 = vadd.f32 %v4045, %v4237
        %v4239 = vpop.f32.mrb[0].mxu0
        %v4240 = vadd.f32 %v4047, %v4239
        %v4241 = vpop.f32.mrb[0].mxu0
        %v4242 = vadd.f32 %v4049, %v4241
        %v4243 = vpop.f32.mrb[0].mxu0
        %v4244 = vadd.f32 %v4051, %v4243
        %4245 = vdwg.mxu0
        %4246 = vmatprep.subr.bf16.mxu0 %v3733
        %4247 = vmatpush1.bf16.msra.mxu0 %v3732
        %4248 = vmatprep.subr.bf16.mxu0 %v3735
        %4249 = vmatpush1.bf16.msra.mxu0 %v3734
        %4250 = vmatprep.subr.bf16.mxu0 %v3737
        %4251 = vmatpush1.bf16.msra.mxu0 %v3736
        %4252 = vmatprep.subr.bf16.mxu0 %v3739
        %4253 = vmatpush1.bf16.msra.mxu0 %v3738
        %4254 = vmatprep.subr.bf16.mxu0 %v3741
        %4255 = vmatpush1.bf16.msra.mxu0 %v3740
        %4256 = vmatprep.subr.bf16.mxu0 %v3743
        %4257 = vmatpush1.bf16.msra.mxu0 %v3742
        %4258 = vmatprep.subr.bf16.mxu0 %v3745
        %4259 = vmatpush1.bf16.msra.mxu0 %v3744
        %4260 = vmatprep.subr.bf16.mxu0 %v3747
        %4261 = vmatpush1.bf16.msra.mxu0 %v3746
        %4262 = vmatprep.subr.bf16.mxu0 %v3749
        %4263 = vmatpush1.bf16.msra.mxu0 %v3748
        %4264 = vmatprep.subr.bf16.mxu0 %v3751
        %4265 = vmatpush1.bf16.msra.mxu0 %v3750
        %4266 = vmatprep.subr.bf16.mxu0 %v3753
        %4267 = vmatpush1.bf16.msra.mxu0 %v3752
        %4268 = vmatprep.subr.bf16.mxu0 %v3755
        %4269 = vmatpush1.bf16.msra.mxu0 %v3754
        %4270 = vmatprep.subr.bf16.mxu0 %v3757
        %4271 = vmatpush1.bf16.msra.mxu0 %v3756
        %4272 = vmatprep.subr.bf16.mxu0 %v3759
        %4273 = vmatpush1.bf16.msra.mxu0 %v3758
        %4274 = vmatprep.subr.bf16.mxu0 %v3761
        %4275 = vmatpush1.bf16.msra.mxu0 %v3760
        %4276 = vmatprep.subr.bf16.mxu0 %v3763
        %4277 = vmatpush1.bf16.msra.mxu0 %v3762
        %4278 = vmatprep.mubr.bf16.mxu0 %v1844
        %4279 = vmatmul.mubr.bf16.gmra.mrb[0].mxu0 %v1843
        %v4280 = vpop.f32.mrb[0].mxu0
        %v4281 = vadd.f32 %v4088, %v4280
        %v4282 = vpop.f32.mrb[0].mxu0
        %v4283 = vadd.f32 %v4090, %v4282
        %v4284 = vpop.f32.mrb[0].mxu0
        %v4285 = vadd.f32 %v4092, %v4284
        %v4286 = vpop.f32.mrb[0].mxu0
        %v4287 = vadd.f32 %v4094, %v4286
        %4288 = vmatprep.mubr.bf16.mxu0 %v1850
        %4289 = vmatmul.mubr.bf16.gmra.mrb[0].mxu0 %v1849
        %v4290 = vpop.f32.mrb[0].mxu0
        %v4291 = vadd.f32 %v4098, %v4290
        %v4292 = vpop.f32.mrb[0].mxu0
        %v4293 = vadd.f32 %v4100, %v4292
        %v4294 = vpop.f32.mrb[0].mxu0
        %v4295 = vadd.f32 %v4102, %v4294
        %v4296 = vpop.f32.mrb[0].mxu0
        %v4297 = vadd.f32 %v4104, %v4296
        %4298 = vmatprep.mubr.bf16.mxu0 %v1856
        %4299 = vmatmul.mubr.bf16.gmra.mrb[0].mxu0 %v1855
        %v4300 = vpop.f32.mrb[0].mxu0
        %v4301 = vadd.f32 %v4108, %v4300
        %v4302 = vpop.f32.mrb[0].mxu0
        %v4303 = vadd.f32 %v4110, %v4302
        %v4304 = vpop.f32.mrb[0].mxu0
        %v4305 = vadd.f32 %v4112, %v4304
        %v4306 = vpop.f32.mrb[0].mxu0
        %v4307 = vadd.f32 %v4114, %v4306
        %4308 = vmatprep.mubr.bf16.mxu0 %v1862
        %4309 = vmatmul.mubr.bf16.gmra.mrb[0].mxu0 %v1861
        %v4310 = vpop.f32.mrb[0].mxu0
        %v4311 = vadd.f32 %v4118, %v4310
        %v4312 = vpop.f32.mrb[0].mxu0
        %v4313 = vadd.f32 %v4120, %v4312
        %v4314 = vpop.f32.mrb[0].mxu0
        %v4315 = vadd.f32 %v4122, %v4314
        %v4316 = vpop.f32.mrb[0].mxu0
        %v4317 = vadd.f32 %v4124, %v4316
        %4318 = vmatprep.mubr.bf16.mxu0 %v1868
        %4319 = vmatmul.mubr.bf16.gmra.mrb[0].mxu0 %v1867
        %v4320 = vpop.f32.mrb[0].mxu0
        %v4321 = vadd.f32 %v4128, %v4320
        %v4322 = vpop.f32.mrb[0].mxu0
        %v4323 = vadd.f32 %v4130, %v4322
        %v4324 = vpop.f32.mrb[0].mxu0
        %v4325 = vadd.f32 %v4132, %v4324
        %v4326 = vpop.f32.mrb[0].mxu0
        %v4327 = vadd.f32 %v4134, %v4326
        %4328 = vmatprep.mubr.bf16.mxu0 %v1874
        %4329 = vmatmul.mubr.bf16.gmra.mrb[0].mxu0 %v1873
        %v4330 = vpop.f32.mrb[0].mxu0
        %v4331 = vadd.f32 %v4138, %v4330
        %v4332 = vpop.f32.mrb[0].mxu0
        %v4333 = vadd.f32 %v4140, %v4332
        %v4334 = vpop.f32.mrb[0].mxu0
        %v4335 = vadd.f32 %v4142, %v4334
        %v4336 = vpop.f32.mrb[0].mxu0
        %v4337 = vadd.f32 %v4144, %v4336
        %4338 = vmatprep.mubr.bf16.mxu0 %v1880
        %4339 = vmatmul.mubr.bf16.gmra.mrb[0].mxu0 %v1879
        %v4340 = vpop.f32.mrb[0].mxu0
        %v4341 = vadd.f32 %v4148, %v4340
        %v4342 = vpop.f32.mrb[0].mxu0
        %v4343 = vadd.f32 %v4150, %v4342
        %v4344 = vpop.f32.mrb[0].mxu0
        %v4345 = vadd.f32 %v4152, %v4344
        %v4346 = vpop.f32.mrb[0].mxu0
        %v4347 = vadd.f32 %v4154, %v4346
        %4348 = vmatprep.mubr.bf16.mxu0 %v1886
        %4349 = vmatmul.mubr.bf16.gmra.mrb[0].mxu0 %v1885
        %v4350 = vpop.f32.mrb[0].mxu0
        %v4351 = vadd.f32 %v4158, %v4350
        %v4352 = vpop.f32.mrb[0].mxu0
        %v4353 = vadd.f32 %v4160, %v4352
        %v4354 = vpop.f32.mrb[0].mxu0
        %v4355 = vadd.f32 %v4162, %v4354
        %v4356 = vpop.f32.mrb[0].mxu0
        %v4357 = vadd.f32 %v4164, %v4356
        %4358 = vmatprep.mubr.bf16.mxu0 %v1892
        %4359 = vmatmul.mubr.bf16.gmra.mrb[0].mxu0 %v1891
        %v4360 = vpop.f32.mrb[0].mxu0
        %v4361 = vadd.f32 %v4168, %v4360
        %v4362 = vpop.f32.mrb[0].mxu0
        %v4363 = vadd.f32 %v4170, %v4362
        %v4364 = vpop.f32.mrb[0].mxu0
        %v4365 = vadd.f32 %v4172, %v4364
        %v4366 = vpop.f32.mrb[0].mxu0
        %v4367 = vadd.f32 %v4174, %v4366
        %4368 = vmatprep.mubr.bf16.mxu0 %v1898
        %4369 = vmatmul.mubr.bf16.gmra.mrb[0].mxu0 %v1897
        %v4370 = vpop.f32.mrb[0].mxu0
        %v4371 = vadd.f32 %v4178, %v4370
        %v4372 = vpop.f32.mrb[0].mxu0
        %v4373 = vadd.f32 %v4180, %v4372
        %v4374 = vpop.f32.mrb[0].mxu0
        %v4375 = vadd.f32 %v4182, %v4374
        %v4376 = vpop.f32.mrb[0].mxu0
        %v4377 = vadd.f32 %v4184, %v4376
        %4378 = vmatprep.mubr.bf16.mxu0 %v1904
        %4379 = vmatmul.mubr.bf16.gmra.mrb[0].mxu0 %v1903
        %v4380 = vpop.f32.mrb[0].mxu0
        %v4381 = vadd.f32 %v4188, %v4380
        %v4382 = vpop.f32.mrb[0].mxu0
        %v4383 = vadd.f32 %v4190, %v4382
        %v4384 = vpop.f32.mrb[0].mxu0
        %v4385 = vadd.f32 %v4192, %v4384
        %v4386 = vpop.f32.mrb[0].mxu0
        %v4387 = vadd.f32 %v4194, %v4386
        %4388 = vmatprep.mubr.bf16.mxu0 %v1910
        %4389 = vmatmul.mubr.bf16.gmra.mrb[0].mxu0 %v1909
        %v4390 = vpop.f32.mrb[0].mxu0
        %v4391 = vadd.f32 %v4198, %v4390
        %v4392 = vpop.f32.mrb[0].mxu0
        %v4393 = vadd.f32 %v4200, %v4392
        %v4394 = vpop.f32.mrb[0].mxu0
        %v4395 = vadd.f32 %v4202, %v4394
        %v4396 = vpop.f32.mrb[0].mxu0
        %v4397 = vadd.f32 %v4204, %v4396
        %4398 = vmatprep.mubr.bf16.mxu0 %v1916
        %4399 = vmatmul.mubr.bf16.gmra.mrb[0].mxu0 %v1915
        %v4400 = vpop.f32.mrb[0].mxu0
        %v4401 = vadd.f32 %v4208, %v4400
        %v4402 = vpop.f32.mrb[0].mxu0
        %v4403 = vadd.f32 %v4210, %v4402
        %v4404 = vpop.f32.mrb[0].mxu0
        %v4405 = vadd.f32 %v4212, %v4404
        %v4406 = vpop.f32.mrb[0].mxu0
        %v4407 = vadd.f32 %v4214, %v4406
        %4408 = vmatprep.mubr.bf16.mxu0 %v1922
        %4409 = vmatmul.mubr.bf16.gmra.mrb[0].mxu0 %v1921
        %v4410 = vpop.f32.mrb[0].mxu0
        %v4411 = vadd.f32 %v4218, %v4410
        %v4412 = vpop.f32.mrb[0].mxu0
        %v4413 = vadd.f32 %v4220, %v4412
        %v4414 = vpop.f32.mrb[0].mxu0
        %v4415 = vadd.f32 %v4222, %v4414
        %v4416 = vpop.f32.mrb[0].mxu0
        %v4417 = vadd.f32 %v4224, %v4416
        %4418 = vmatprep.mubr.bf16.mxu0 %v1928
        %4419 = vmatmul.mubr.bf16.gmra.mrb[0].mxu0 %v1927
        %v4420 = vpop.f32.mrb[0].mxu0
        %v4421 = vadd.f32 %v4228, %v4420
        %v4422 = vpop.f32.mrb[0].mxu0
        %v4423 = vadd.f32 %v4230, %v4422
        %v4424 = vpop.f32.mrb[0].mxu0
        %v4425 = vadd.f32 %v4232, %v4424
        %v4426 = vpop.f32.mrb[0].mxu0
        %v4427 = vadd.f32 %v4234, %v4426
        %4428 = vmatprep.mubr.bf16.mxu0 %v1934
        %4429 = vmatmul.mubr.bf16.gmra.mrb[0].mxu0 %v1933
        %v4430 = vpop.f32.mrb[0].mxu0
        %v4431 = vadd.f32 %v4238, %v4430
        %v4432 = vpop.f32.mrb[0].mxu0
        %v4433 = vadd.f32 %v4240, %v4432
        %v4434 = vpop.f32.mrb[0].mxu0
        %v4435 = vadd.f32 %v4242, %v4434
        %v4436 = vpop.f32.mrb[0].mxu0
        %v4437 = vadd.f32 %v4244, %v4436
        %4438 = vdwg.mxu0
        %s4439 = scalar_lea.vmem %s2, 1536
        %v4440 = vld [vmem:[%s4439] sm:$0xff]
        %v4441 = vld [vmem:[%s4439 + $0x8] sm:$0xff]
        %v4442 = vld [vmem:[%s4439 + $0x10] sm:$0xff]
        %v4443 = vld [vmem:[%s4439 + $0x18] sm:$0xff]
        %v4444 = vld [vmem:[%s4439 + $0x20] sm:$0xff]
        %v4445 = vld [vmem:[%s4439 + $0x28] sm:$0xff]
        %v4446 = vld [vmem:[%s4439 + $0x30] sm:$0xff]
        %v4447 = vld [vmem:[%s4439 + $0x38] sm:$0xff]
        %v4448 = vld [vmem:[%s4439 + $0x40] sm:$0xff]
        %v4449 = vld [vmem:[%s4439 + $0x48] sm:$0xff]
        %v4450 = vld [vmem:[%s4439 + $0x50] sm:$0xff]
        %v4451 = vld [vmem:[%s4439 + $0x58] sm:$0xff]
        %v4452 = vld [vmem:[%s4439 + $0x60] sm:$0xff]
        %v4453 = vld [vmem:[%s4439 + $0x68] sm:$0xff]
        %v4454 = vld [vmem:[%s4439 + $0x70] sm:$0xff]
        %v4455 = vld [vmem:[%s4439 + $0x78] sm:$0xff]
        %v4456 = vld [vmem:[%s4439 + $0x80] sm:$0xff]
        %v4457 = vld [vmem:[%s4439 + $0x88] sm:$0xff]
        %v4458 = vld [vmem:[%s4439 + $0x90] sm:$0xff]
        %v4459 = vld [vmem:[%s4439 + $0x98] sm:$0xff]
        %v4460 = vld [vmem:[%s4439 + $0xa0] sm:$0xff]
        %v4461 = vld [vmem:[%s4439 + $0xa8] sm:$0xff]
        %v4462 = vld [vmem:[%s4439 + $0xb0] sm:$0xff]
        %v4463 = vld [vmem:[%s4439 + $0xb8] sm:$0xff]
        %v4464 = vld [vmem:[%s4439 + $0xc0] sm:$0xff]
        %v4465 = vld [vmem:[%s4439 + $0xc8] sm:$0xff]
        %v4466 = vld [vmem:[%s4439 + $0xd0] sm:$0xff]
        %v4467 = vld [vmem:[%s4439 + $0xd8] sm:$0xff]
        %v4468 = vld [vmem:[%s4439 + $0xe0] sm:$0xff]
        %v4469 = vld [vmem:[%s4439 + $0xe8] sm:$0xff]
        %v4470 = vld [vmem:[%s4439 + $0xf0] sm:$0xff]
        %v4471 = vld [vmem:[%s4439 + $0xf8] sm:$0xff]
        %v4472 = vld [vmem:[%s4439 + $0x100] sm:$0xff]
        %v4473 = vld [vmem:[%s4439 + $0x108] sm:$0xff]
        %v4474 = vld [vmem:[%s4439 + $0x110] sm:$0xff]
        %v4475 = vld [vmem:[%s4439 + $0x118] sm:$0xff]
        %v4476 = vld [vmem:[%s4439 + $0x120] sm:$0xff]
        %v4477 = vld [vmem:[%s4439 + $0x128] sm:$0xff]
        %v4478 = vld [vmem:[%s4439 + $0x130] sm:$0xff]
        %v4479 = vld [vmem:[%s4439 + $0x138] sm:$0xff]
        %v4480 = vld [vmem:[%s4439 + $0x140] sm:$0xff]
        %v4481 = vld [vmem:[%s4439 + $0x148] sm:$0xff]
        %v4482 = vld [vmem:[%s4439 + $0x150] sm:$0xff]
        %v4483 = vld [vmem:[%s4439 + $0x158] sm:$0xff]
        %v4484 = vld [vmem:[%s4439 + $0x160] sm:$0xff]
        %v4485 = vld [vmem:[%s4439 + $0x168] sm:$0xff]
        %v4486 = vld [vmem:[%s4439 + $0x170] sm:$0xff]
        %v4487 = vld [vmem:[%s4439 + $0x178] sm:$0xff]
        %v4488 = vld [vmem:[%s4439 + $0x180] sm:$0xff]
        %v4489 = vld [vmem:[%s4439 + $0x188] sm:$0xff]
        %v4490 = vld [vmem:[%s4439 + $0x190] sm:$0xff]
        %v4491 = vld [vmem:[%s4439 + $0x198] sm:$0xff]
        %v4492 = vld [vmem:[%s4439 + $0x1a0] sm:$0xff]
        %v4493 = vld [vmem:[%s4439 + $0x1a8] sm:$0xff]
        %v4494 = vld [vmem:[%s4439 + $0x1b0] sm:$0xff]
        %v4495 = vld [vmem:[%s4439 + $0x1b8] sm:$0xff]
        %v4496 = vld [vmem:[%s4439 + $0x1c0] sm:$0xff]
        %v4497 = vld [vmem:[%s4439 + $0x1c8] sm:$0xff]
        %v4498 = vld [vmem:[%s4439 + $0x1d0] sm:$0xff]
        %v4499 = vld [vmem:[%s4439 + $0x1d8] sm:$0xff]
        %v4500 = vld [vmem:[%s4439 + $0x1e0] sm:$0xff]
        %v4501 = vld [vmem:[%s4439 + $0x1e8] sm:$0xff]
        %v4502 = vld [vmem:[%s4439 + $0x1f0] sm:$0xff]
        %v4503 = vld [vmem:[%s4439 + $0x1f8] sm:$0xff]
        %v4504 = vld [vmem:[%s4439 + $0x200] sm:$0xff]
        %v4505 = vld [vmem:[%s4439 + $0x208] sm:$0xff]
        %v4506 = vld [vmem:[%s4439 + $0x210] sm:$0xff]
        %v4507 = vld [vmem:[%s4439 + $0x218] sm:$0xff]
        %v4508 = vld [vmem:[%s4439 + $0x220] sm:$0xff]
        %v4509 = vld [vmem:[%s4439 + $0x228] sm:$0xff]
        %v4510 = vld [vmem:[%s4439 + $0x230] sm:$0xff]
        %v4511 = vld [vmem:[%s4439 + $0x238] sm:$0xff]
        %v4512 = vld [vmem:[%s4439 + $0x240] sm:$0xff]
        %v4513 = vld [vmem:[%s4439 + $0x248] sm:$0xff]
        %v4514 = vld [vmem:[%s4439 + $0x250] sm:$0xff]
        %v4515 = vld [vmem:[%s4439 + $0x258] sm:$0xff]
        %v4516 = vld [vmem:[%s4439 + $0x260] sm:$0xff]
        %v4517 = vld [vmem:[%s4439 + $0x268] sm:$0xff]
        %v4518 = vld [vmem:[%s4439 + $0x270] sm:$0xff]
        %v4519 = vld [vmem:[%s4439 + $0x278] sm:$0xff]
        %v4520 = vld [vmem:[%s4439 + $0x280] sm:$0xff]
        %v4521 = vld [vmem:[%s4439 + $0x288] sm:$0xff]
        %v4522 = vld [vmem:[%s4439 + $0x290] sm:$0xff]
        %v4523 = vld [vmem:[%s4439 + $0x298] sm:$0xff]
        %v4524 = vld [vmem:[%s4439 + $0x2a0] sm:$0xff]
        %v4525 = vld [vmem:[%s4439 + $0x2a8] sm:$0xff]
        %v4526 = vld [vmem:[%s4439 + $0x2b0] sm:$0xff]
        %v4527 = vld [vmem:[%s4439 + $0x2b8] sm:$0xff]
        %v4528 = vld [vmem:[%s4439 + $0x2c0] sm:$0xff]
        %v4529 = vld [vmem:[%s4439 + $0x2c8] sm:$0xff]
        %v4530 = vld [vmem:[%s4439 + $0x2d0] sm:$0xff]
        %v4531 = vld [vmem:[%s4439 + $0x2d8] sm:$0xff]
        %v4532 = vld [vmem:[%s4439 + $0x2e0] sm:$0xff]
        %v4533 = vld [vmem:[%s4439 + $0x2e8] sm:$0xff]
        %v4534 = vld [vmem:[%s4439 + $0x2f0] sm:$0xff]
        %v4535 = vld [vmem:[%s4439 + $0x2f8] sm:$0xff]
        %v4632 = vunpack.c.l.b16 %v4440
        %v4633 = vunpack.c.h.b16 %v4440
        %v4634 = vunpack.c.l.b16 %v4441
        %v4635 = vunpack.c.h.b16 %v4441
        %v4636 = vunpack.c.l.b16 %v4442
        %v4637 = vunpack.c.h.b16 %v4442
        %v4638 = vunpack.c.l.b16 %v4443
        %v4639 = vunpack.c.h.b16 %v4443
        %v4640 = vunpack.c.l.b16 %v4444
        %v4641 = vunpack.c.h.b16 %v4444
        %v4642 = vunpack.c.l.b16 %v4445
        %v4643 = vunpack.c.h.b16 %v4445
        %v4644 = vunpack.c.l.b16 %v4446
        %v4645 = vunpack.c.h.b16 %v4446
        %v4646 = vunpack.c.l.b16 %v4447
        %v4647 = vunpack.c.h.b16 %v4447
        %v4648 = vunpack.c.l.b16 %v4448
        %v4649 = vunpack.c.h.b16 %v4448
        %v4650 = vunpack.c.l.b16 %v4449
        %v4651 = vunpack.c.h.b16 %v4449
        %v4652 = vunpack.c.l.b16 %v4450
        %v4653 = vunpack.c.h.b16 %v4450
        %v4654 = vunpack.c.l.b16 %v4451
        %v4655 = vunpack.c.h.b16 %v4451
        %v4656 = vunpack.c.l.b16 %v4452
        %v4657 = vunpack.c.h.b16 %v4452
        %v4658 = vunpack.c.l.b16 %v4453
        %v4659 = vunpack.c.h.b16 %v4453
        %v4660 = vunpack.c.l.b16 %v4454
        %v4661 = vunpack.c.h.b16 %v4454
        %v4662 = vunpack.c.l.b16 %v4455
        %v4663 = vunpack.c.h.b16 %v4455
        %v4664 = vunpack.c.l.b16 %v4456
        %v4665 = vunpack.c.h.b16 %v4456
        %v4666 = vunpack.c.l.b16 %v4457
        %v4667 = vunpack.c.h.b16 %v4457
        %v4668 = vunpack.c.l.b16 %v4458
        %v4669 = vunpack.c.h.b16 %v4458
        %v4670 = vunpack.c.l.b16 %v4459
        %v4671 = vunpack.c.h.b16 %v4459
        %v4672 = vunpack.c.l.b16 %v4460
        %v4673 = vunpack.c.h.b16 %v4460
        %v4674 = vunpack.c.l.b16 %v4461
        %v4675 = vunpack.c.h.b16 %v4461
        %v4676 = vunpack.c.l.b16 %v4462
        %v4677 = vunpack.c.h.b16 %v4462
        %v4678 = vunpack.c.l.b16 %v4463
        %v4679 = vunpack.c.h.b16 %v4463
        %v4680 = vunpack.c.l.b16 %v4464
        %v4681 = vunpack.c.h.b16 %v4464
        %v4682 = vunpack.c.l.b16 %v4465
        %v4683 = vunpack.c.h.b16 %v4465
        %v4684 = vunpack.c.l.b16 %v4466
        %v4685 = vunpack.c.h.b16 %v4466
        %v4686 = vunpack.c.l.b16 %v4467
        %v4687 = vunpack.c.h.b16 %v4467
        %v4688 = vunpack.c.l.b16 %v4468
        %v4689 = vunpack.c.h.b16 %v4468
        %v4690 = vunpack.c.l.b16 %v4469
        %v4691 = vunpack.c.h.b16 %v4469
        %v4692 = vunpack.c.l.b16 %v4470
        %v4693 = vunpack.c.h.b16 %v4470
        %v4694 = vunpack.c.l.b16 %v4471
        %v4695 = vunpack.c.h.b16 %v4471
        %v4696 = vunpack.c.l.b16 %v4472
        %v4697 = vunpack.c.h.b16 %v4472
        %v4698 = vunpack.c.l.b16 %v4473
        %v4699 = vunpack.c.h.b16 %v4473
        %v4700 = vunpack.c.l.b16 %v4474
        %v4701 = vunpack.c.h.b16 %v4474
        %v4702 = vunpack.c.l.b16 %v4475
        %v4703 = vunpack.c.h.b16 %v4475
        %v4704 = vunpack.c.l.b16 %v4476
        %v4705 = vunpack.c.h.b16 %v4476
        %v4706 = vunpack.c.l.b16 %v4477
        %v4707 = vunpack.c.h.b16 %v4477
        %v4708 = vunpack.c.l.b16 %v4478
        %v4709 = vunpack.c.h.b16 %v4478
        %v4710 = vunpack.c.l.b16 %v4479
        %v4711 = vunpack.c.h.b16 %v4479
        %v4712 = vunpack.c.l.b16 %v4480
        %v4713 = vunpack.c.h.b16 %v4480
        %v4714 = vunpack.c.l.b16 %v4481
        %v4715 = vunpack.c.h.b16 %v4481
        %v4716 = vunpack.c.l.b16 %v4482
        %v4717 = vunpack.c.h.b16 %v4482
        %v4718 = vunpack.c.l.b16 %v4483
        %v4719 = vunpack.c.h.b16 %v4483
        %v4720 = vunpack.c.l.b16 %v4484
        %v4721 = vunpack.c.h.b16 %v4484
        %v4722 = vunpack.c.l.b16 %v4485
        %v4723 = vunpack.c.h.b16 %v4485
        %v4724 = vunpack.c.l.b16 %v4486
        %v4725 = vunpack.c.h.b16 %v4486
        %v4726 = vunpack.c.l.b16 %v4487
        %v4727 = vunpack.c.h.b16 %v4487
        %v4728 = vunpack.c.l.b16 %v4488
        %v4729 = vunpack.c.h.b16 %v4488
        %v4730 = vunpack.c.l.b16 %v4489
        %v4731 = vunpack.c.h.b16 %v4489
        %v4732 = vunpack.c.l.b16 %v4490
        %v4733 = vunpack.c.h.b16 %v4490
        %v4734 = vunpack.c.l.b16 %v4491
        %v4735 = vunpack.c.h.b16 %v4491
        %v4736 = vunpack.c.l.b16 %v4492
        %v4737 = vunpack.c.h.b16 %v4492
        %v4738 = vunpack.c.l.b16 %v4493
        %v4739 = vunpack.c.h.b16 %v4493
        %v4740 = vunpack.c.l.b16 %v4494
        %v4741 = vunpack.c.h.b16 %v4494
        %v4742 = vunpack.c.l.b16 %v4495
        %v4743 = vunpack.c.h.b16 %v4495
        %v4744 = vunpack.c.l.b16 %v4496
        %v4745 = vunpack.c.h.b16 %v4496
        %v4746 = vunpack.c.l.b16 %v4497
        %v4747 = vunpack.c.h.b16 %v4497
        %v4748 = vunpack.c.l.b16 %v4498
        %v4749 = vunpack.c.h.b16 %v4498
        %v4750 = vunpack.c.l.b16 %v4499
        %v4751 = vunpack.c.h.b16 %v4499
        %v4752 = vunpack.c.l.b16 %v4500
        %v4753 = vunpack.c.h.b16 %v4500
        %v4754 = vunpack.c.l.b16 %v4501
        %v4755 = vunpack.c.h.b16 %v4501
        %v4756 = vunpack.c.l.b16 %v4502
        %v4757 = vunpack.c.h.b16 %v4502
        %v4758 = vunpack.c.l.b16 %v4503
        %v4759 = vunpack.c.h.b16 %v4503
        %v4760 = vunpack.c.l.b16 %v4504
        %v4761 = vunpack.c.h.b16 %v4504
        %v4762 = vunpack.c.l.b16 %v4505
        %v4763 = vunpack.c.h.b16 %v4505
        %v4764 = vunpack.c.l.b16 %v4506
        %v4765 = vunpack.c.h.b16 %v4506
        %v4766 = vunpack.c.l.b16 %v4507
        %v4767 = vunpack.c.h.b16 %v4507
        %v4768 = vunpack.c.l.b16 %v4508
        %v4769 = vunpack.c.h.b16 %v4508
        %v4770 = vunpack.c.l.b16 %v4509
        %v4771 = vunpack.c.h.b16 %v4509
        %v4772 = vunpack.c.l.b16 %v4510
        %v4773 = vunpack.c.h.b16 %v4510
        %v4774 = vunpack.c.l.b16 %v4511
        %v4775 = vunpack.c.h.b16 %v4511
        %v4776 = vunpack.c.l.b16 %v4512
        %v4777 = vunpack.c.h.b16 %v4512
        %v4778 = vunpack.c.l.b16 %v4513
        %v4779 = vunpack.c.h.b16 %v4513
        %v4780 = vunpack.c.l.b16 %v4514
        %v4781 = vunpack.c.h.b16 %v4514
        %v4782 = vunpack.c.l.b16 %v4515
        %v4783 = vunpack.c.h.b16 %v4515
        %v4784 = vunpack.c.l.b16 %v4516
        %v4785 = vunpack.c.h.b16 %v4516
        %v4786 = vunpack.c.l.b16 %v4517
        %v4787 = vunpack.c.h.b16 %v4517
        %v4788 = vunpack.c.l.b16 %v4518
        %v4789 = vunpack.c.h.b16 %v4518
        %v4790 = vunpack.c.l.b16 %v4519
        %v4791 = vunpack.c.h.b16 %v4519
        %v4792 = vunpack.c.l.b16 %v4520
        %v4793 = vunpack.c.h.b16 %v4520
        %v4794 = vunpack.c.l.b16 %v4521
        %v4795 = vunpack.c.h.b16 %v4521
        %v4796 = vunpack.c.l.b16 %v4522
        %v4797 = vunpack.c.h.b16 %v4522
        %v4798 = vunpack.c.l.b16 %v4523
        %v4799 = vunpack.c.h.b16 %v4523
        %v4800 = vunpack.c.l.b16 %v4524
        %v4801 = vunpack.c.h.b16 %v4524
        %v4802 = vunpack.c.l.b16 %v4525
        %v4803 = vunpack.c.h.b16 %v4525
        %v4804 = vunpack.c.l.b16 %v4526
        %v4805 = vunpack.c.h.b16 %v4526
        %v4806 = vunpack.c.l.b16 %v4527
        %v4807 = vunpack.c.h.b16 %v4527
        %v4808 = vunpack.c.l.b16 %v4528
        %v4809 = vunpack.c.h.b16 %v4528
        %v4810 = vunpack.c.l.b16 %v4529
        %v4811 = vunpack.c.h.b16 %v4529
        %v4812 = vunpack.c.l.b16 %v4530
        %v4813 = vunpack.c.h.b16 %v4530
        %v4814 = vunpack.c.l.b16 %v4531
        %v4815 = vunpack.c.h.b16 %v4531
        %v4816 = vunpack.c.l.b16 %v4532
        %v4817 = vunpack.c.h.b16 %v4532
        %v4818 = vunpack.c.l.b16 %v4533
        %v4819 = vunpack.c.h.b16 %v4533
        %v4820 = vunpack.c.l.b16 %v4534
        %v4821 = vunpack.c.h.b16 %v4534
        %v4822 = vunpack.c.l.b16 %v4535
        %v4823 = vunpack.c.h.b16 %v4535
        %v4824 = vpack.c.b16 %v4634, %v4632
        %v4825 = vpack.c.b16 %v4635, %v4633
        %v4826 = vpack.c.b16 %v4638, %v4636
        %v4827 = vpack.c.b16 %v4639, %v4637
        %v4828 = vpack.c.b16 %v4642, %v4640
        %v4829 = vpack.c.b16 %v4643, %v4641
        %v4830 = vpack.c.b16 %v4646, %v4644
        %v4831 = vpack.c.b16 %v4647, %v4645
        %v4832 = vpack.c.b16 %v4650, %v4648
        %v4833 = vpack.c.b16 %v4651, %v4649
        %v4834 = vpack.c.b16 %v4654, %v4652
        %v4835 = vpack.c.b16 %v4655, %v4653
        %v4836 = vpack.c.b16 %v4658, %v4656
        %v4837 = vpack.c.b16 %v4659, %v4657
        %v4838 = vpack.c.b16 %v4662, %v4660
        %v4839 = vpack.c.b16 %v4663, %v4661
        %v4840 = vpack.c.b16 %v4666, %v4664
        %v4841 = vpack.c.b16 %v4667, %v4665
        %v4842 = vpack.c.b16 %v4670, %v4668
        %v4843 = vpack.c.b16 %v4671, %v4669
        %v4844 = vpack.c.b16 %v4674, %v4672
        %v4845 = vpack.c.b16 %v4675, %v4673
        %v4846 = vpack.c.b16 %v4678, %v4676
        %v4847 = vpack.c.b16 %v4679, %v4677
        %v4848 = vpack.c.b16 %v4682, %v4680
        %v4849 = vpack.c.b16 %v4683, %v4681
        %v4850 = vpack.c.b16 %v4686, %v4684
        %v4851 = vpack.c.b16 %v4687, %v4685
        %v4852 = vpack.c.b16 %v4690, %v4688
        %v4853 = vpack.c.b16 %v4691, %v4689
        %v4854 = vpack.c.b16 %v4694, %v4692
        %v4855 = vpack.c.b16 %v4695, %v4693
        %v4856 = vpack.c.b16 %v4698, %v4696
        %v4857 = vpack.c.b16 %v4699, %v4697
        %v4858 = vpack.c.b16 %v4702, %v4700
        %v4859 = vpack.c.b16 %v4703, %v4701
        %v4860 = vpack.c.b16 %v4706, %v4704
        %v4861 = vpack.c.b16 %v4707, %v4705
        %v4862 = vpack.c.b16 %v4710, %v4708
        %v4863 = vpack.c.b16 %v4711, %v4709
        %v4864 = vpack.c.b16 %v4714, %v4712
        %v4865 = vpack.c.b16 %v4715, %v4713
        %v4866 = vpack.c.b16 %v4718, %v4716
        %v4867 = vpack.c.b16 %v4719, %v4717
        %v4868 = vpack.c.b16 %v4722, %v4720
        %v4869 = vpack.c.b16 %v4723, %v4721
        %v4870 = vpack.c.b16 %v4726, %v4724
        %v4871 = vpack.c.b16 %v4727, %v4725
        %v4872 = vpack.c.b16 %v4730, %v4728
        %v4873 = vpack.c.b16 %v4731, %v4729
        %v4874 = vpack.c.b16 %v4734, %v4732
        %v4875 = vpack.c.b16 %v4735, %v4733
        %v4876 = vpack.c.b16 %v4738, %v4736
        %v4877 = vpack.c.b16 %v4739, %v4737
        %v4878 = vpack.c.b16 %v4742, %v4740
        %v4879 = vpack.c.b16 %v4743, %v4741
        %v4880 = vpack.c.b16 %v4746, %v4744
        %v4881 = vpack.c.b16 %v4747, %v4745
        %v4882 = vpack.c.b16 %v4750, %v4748
        %v4883 = vpack.c.b16 %v4751, %v4749
        %v4884 = vpack.c.b16 %v4754, %v4752
        %v4885 = vpack.c.b16 %v4755, %v4753
        %v4886 = vpack.c.b16 %v4758, %v4756
        %v4887 = vpack.c.b16 %v4759, %v4757
        %v4888 = vpack.c.b16 %v4762, %v4760
        %v4889 = vpack.c.b16 %v4763, %v4761
        %v4890 = vpack.c.b16 %v4766, %v4764
        %v4891 = vpack.c.b16 %v4767, %v4765
        %v4892 = vpack.c.b16 %v4770, %v4768
        %v4893 = vpack.c.b16 %v4771, %v4769
        %v4894 = vpack.c.b16 %v4774, %v4772
        %v4895 = vpack.c.b16 %v4775, %v4773
        %v4896 = vpack.c.b16 %v4778, %v4776
        %v4897 = vpack.c.b16 %v4779, %v4777
        %v4898 = vpack.c.b16 %v4782, %v4780
        %v4899 = vpack.c.b16 %v4783, %v4781
        %v4900 = vpack.c.b16 %v4786, %v4784
        %v4901 = vpack.c.b16 %v4787, %v4785
        %v4902 = vpack.c.b16 %v4790, %v4788
        %v4903 = vpack.c.b16 %v4791, %v4789
        %v4904 = vpack.c.b16 %v4794, %v4792
        %v4905 = vpack.c.b16 %v4795, %v4793
        %v4906 = vpack.c.b16 %v4798, %v4796
        %v4907 = vpack.c.b16 %v4799, %v4797
        %v4908 = vpack.c.b16 %v4802, %v4800
        %v4909 = vpack.c.b16 %v4803, %v4801
        %v4910 = vpack.c.b16 %v4806, %v4804
        %v4911 = vpack.c.b16 %v4807, %v4805
        %v4912 = vpack.c.b16 %v4810, %v4808
        %v4913 = vpack.c.b16 %v4811, %v4809
        %v4914 = vpack.c.b16 %v4814, %v4812
        %v4915 = vpack.c.b16 %v4815, %v4813
        %v4916 = vpack.c.b16 %v4818, %v4816
        %v4917 = vpack.c.b16 %v4819, %v4817
        %v4918 = vpack.c.b16 %v4822, %v4820
        %v4919 = vpack.c.b16 %v4823, %v4821
        %5016 = vmatprep.subr.bf16.mxu0 %v4825
        %5017 = vmatpush1.bf16.msra.mxu0 %v4824
        %5018 = vmatprep.subr.bf16.mxu0 %v4827
        %5019 = vmatpush1.bf16.msra.mxu0 %v4826
        %5020 = vmatprep.subr.bf16.mxu0 %v4829
        %5021 = vmatpush1.bf16.msra.mxu0 %v4828
        %5022 = vmatprep.subr.bf16.mxu0 %v4831
        %5023 = vmatpush1.bf16.msra.mxu0 %v4830
        %5024 = vmatprep.subr.bf16.mxu0 %v4833
        %5025 = vmatpush1.bf16.msra.mxu0 %v4832
        %5026 = vmatprep.subr.bf16.mxu0 %v4835
        %5027 = vmatpush1.bf16.msra.mxu0 %v4834
        %5028 = vmatprep.subr.bf16.mxu0 %v4837
        %5029 = vmatpush1.bf16.msra.mxu0 %v4836
        %5030 = vmatprep.subr.bf16.mxu0 %v4839
        %5031 = vmatpush1.bf16.msra.mxu0 %v4838
        %5032 = vmatprep.subr.bf16.mxu0 %v4841
        %5033 = vmatpush1.bf16.msra.mxu0 %v4840
        %5034 = vmatprep.subr.bf16.mxu0 %v4843
        %5035 = vmatpush1.bf16.msra.mxu0 %v4842
        %5036 = vmatprep.subr.bf16.mxu0 %v4845
        %5037 = vmatpush1.bf16.msra.mxu0 %v4844
        %5038 = vmatprep.subr.bf16.mxu0 %v4847
        %5039 = vmatpush1.bf16.msra.mxu0 %v4846
        %5040 = vmatprep.subr.bf16.mxu0 %v4849
        %5041 = vmatpush1.bf16.msra.mxu0 %v4848
        %5042 = vmatprep.subr.bf16.mxu0 %v4851
        %5043 = vmatpush1.bf16.msra.mxu0 %v4850
        %5044 = vmatprep.subr.bf16.mxu0 %v4853
        %5045 = vmatpush1.bf16.msra.mxu0 %v4852
        %5046 = vmatprep.subr.bf16.mxu0 %v4855
        %5047 = vmatpush1.bf16.msra.mxu0 %v4854
        %5048 = vmatprep.mubr.bf16.mxu0 %v2033
        %5049 = vmatmul.mubr.bf16.gmra.mrb[0].mxu0 %v2032
        %v5050 = vpop.f32.mrb[0].mxu0
        %v5051 = vadd.f32 0.0, %v5050
        %v5052 = vpop.f32.mrb[0].mxu0
        %v5053 = vadd.f32 0.0, %v5052
        %v5054 = vpop.f32.mrb[0].mxu0
        %v5055 = vadd.f32 0.0, %v5054
        %v5056 = vpop.f32.mrb[0].mxu0
        %v5057 = vadd.f32 0.0, %v5056
        %5058 = vmatprep.mubr.bf16.mxu0 %v2039
        %5059 = vmatmul.mubr.bf16.gmra.mrb[0].mxu0 %v2038
        %v5060 = vpop.f32.mrb[0].mxu0
        %v5061 = vadd.f32 0.0, %v5060
        %v5062 = vpop.f32.mrb[0].mxu0
        %v5063 = vadd.f32 0.0, %v5062
        %v5064 = vpop.f32.mrb[0].mxu0
        %v5065 = vadd.f32 0.0, %v5064
        %v5066 = vpop.f32.mrb[0].mxu0
        %v5067 = vadd.f32 0.0, %v5066
        %5068 = vmatprep.mubr.bf16.mxu0 %v2045
        %5069 = vmatmul.mubr.bf16.gmra.mrb[0].mxu0 %v2044
        %v5070 = vpop.f32.mrb[0].mxu0
        %v5071 = vadd.f32 0.0, %v5070
        %v5072 = vpop.f32.mrb[0].mxu0
        %v5073 = vadd.f32 0.0, %v5072
        %v5074 = vpop.f32.mrb[0].mxu0
        %v5075 = vadd.f32 0.0, %v5074
        %v5076 = vpop.f32.mrb[0].mxu0
        %v5077 = vadd.f32 0.0, %v5076
        %5078 = vmatprep.mubr.bf16.mxu0 %v2051
        %5079 = vmatmul.mubr.bf16.gmra.mrb[0].mxu0 %v2050
        %v5080 = vpop.f32.mrb[0].mxu0
        %v5081 = vadd.f32 0.0, %v5080
        %v5082 = vpop.f32.mrb[0].mxu0
        %v5083 = vadd.f32 0.0, %v5082
        %v5084 = vpop.f32.mrb[0].mxu0
        %v5085 = vadd.f32 0.0, %v5084
        %v5086 = vpop.f32.mrb[0].mxu0
        %v5087 = vadd.f32 0.0, %v5086
        %5088 = vmatprep.mubr.bf16.mxu0 %v2057
        %5089 = vmatmul.mubr.bf16.gmra.mrb[0].mxu0 %v2056
        %v5090 = vpop.f32.mrb[0].mxu0
        %v5091 = vadd.f32 0.0, %v5090
        %v5092 = vpop.f32.mrb[0].mxu0
        %v5093 = vadd.f32 0.0, %v5092
        %v5094 = vpop.f32.mrb[0].mxu0
        %v5095 = vadd.f32 0.0, %v5094
        %v5096 = vpop.f32.mrb[0].mxu0
        %v5097 = vadd.f32 0.0, %v5096
        %5098 = vmatprep.mubr.bf16.mxu0 %v2063
        %5099 = vmatmul.mubr.bf16.gmra.mrb[0].mxu0 %v2062
        %v5100 = vpop.f32.mrb[0].mxu0
        %v5101 = vadd.f32 0.0, %v5100
        %v5102 = vpop.f32.mrb[0].mxu0
        %v5103 = vadd.f32 0.0, %v5102
        %v5104 = vpop.f32.mrb[0].mxu0
        %v5105 = vadd.f32 0.0, %v5104
        %v5106 = vpop.f32.mrb[0].mxu0
        %v5107 = vadd.f32 0.0, %v5106
        %5108 = vmatprep.mubr.bf16.mxu0 %v2069
        %5109 = vmatmul.mubr.bf16.gmra.mrb[0].mxu0 %v2068
        %v5110 = vpop.f32.mrb[0].mxu0
        %v5111 = vadd.f32 0.0, %v5110
        %v5112 = vpop.f32.mrb[0].mxu0
        %v5113 = vadd.f32 0.0, %v5112
        %v5114 = vpop.f32.mrb[0].mxu0
        %v5115 = vadd.f32 0.0, %v5114
        %v5116 = vpop.f32.mrb[0].mxu0
        %v5117 = vadd.f32 0.0, %v5116
        %5118 = vmatprep.mubr.bf16.mxu0 %v2075
        %5119 = vmatmul.mubr.bf16.gmra.mrb[0].mxu0 %v2074
        %v5120 = vpop.f32.mrb[0].mxu0
        %v5121 = vadd.f32 0.0, %v5120
        %v5122 = vpop.f32.mrb[0].mxu0
        %v5123 = vadd.f32 0.0, %v5122
        %v5124 = vpop.f32.mrb[0].mxu0
        %v5125 = vadd.f32 0.0, %v5124
        %v5126 = vpop.f32.mrb[0].mxu0
        %v5127 = vadd.f32 0.0, %v5126
        %5128 = vmatprep.mubr.bf16.mxu0 %v2081
        %5129 = vmatmul.mubr.bf16.gmra.mrb[0].mxu0 %v2080
        %v5130 = vpop.f32.mrb[0].mxu0
        %v5131 = vadd.f32 0.0, %v5130
        %v5132 = vpop.f32.mrb[0].mxu0
        %v5133 = vadd.f32 0.0, %v5132
        %v5134 = vpop.f32.mrb[0].mxu0
        %v5135 = vadd.f32 0.0, %v5134
        %v5136 = vpop.f32.mrb[0].mxu0
        %v5137 = vadd.f32 0.0, %v5136
        %5138 = vmatprep.mubr.bf16.mxu0 %v2087
        %5139 = vmatmul.mubr.bf16.gmra.mrb[0].mxu0 %v2086
        %v5140 = vpop.f32.mrb[0].mxu0
        %v5141 = vadd.f32 0.0, %v5140
        %v5142 = vpop.f32.mrb[0].mxu0
        %v5143 = vadd.f32 0.0, %v5142
        %v5144 = vpop.f32.mrb[0].mxu0
        %v5145 = vadd.f32 0.0, %v5144
        %v5146 = vpop.f32.mrb[0].mxu0
        %v5147 = vadd.f32 0.0, %v5146
        %5148 = vmatprep.mubr.bf16.mxu0 %v2093
        %5149 = vmatmul.mubr.bf16.gmra.mrb[0].mxu0 %v2092
        %v5150 = vpop.f32.mrb[0].mxu0
        %v5151 = vadd.f32 0.0, %v5150
        %v5152 = vpop.f32.mrb[0].mxu0
        %v5153 = vadd.f32 0.0, %v5152
        %v5154 = vpop.f32.mrb[0].mxu0
        %v5155 = vadd.f32 0.0, %v5154
        %v5156 = vpop.f32.mrb[0].mxu0
        %v5157 = vadd.f32 0.0, %v5156
        %5158 = vmatprep.mubr.bf16.mxu0 %v2099
        %5159 = vmatmul.mubr.bf16.gmra.mrb[0].mxu0 %v2098
        %v5160 = vpop.f32.mrb[0].mxu0
        %v5161 = vadd.f32 0.0, %v5160
        %v5162 = vpop.f32.mrb[0].mxu0
        %v5163 = vadd.f32 0.0, %v5162
        %v5164 = vpop.f32.mrb[0].mxu0
        %v5165 = vadd.f32 0.0, %v5164
        %v5166 = vpop.f32.mrb[0].mxu0
        %v5167 = vadd.f32 0.0, %v5166
        %5168 = vmatprep.mubr.bf16.mxu0 %v2105
        %5169 = vmatmul.mubr.bf16.gmra.mrb[0].mxu0 %v2104
        %v5170 = vpop.f32.mrb[0].mxu0
        %v5171 = vadd.f32 0.0, %v5170
        %v5172 = vpop.f32.mrb[0].mxu0
        %v5173 = vadd.f32 0.0, %v5172
        %v5174 = vpop.f32.mrb[0].mxu0
        %v5175 = vadd.f32 0.0, %v5174
        %v5176 = vpop.f32.mrb[0].mxu0
        %v5177 = vadd.f32 0.0, %v5176
        %5178 = vmatprep.mubr.bf16.mxu0 %v2111
        %5179 = vmatmul.mubr.bf16.gmra.mrb[0].mxu0 %v2110
        %v5180 = vpop.f32.mrb[0].mxu0
        %v5181 = vadd.f32 0.0, %v5180
        %v5182 = vpop.f32.mrb[0].mxu0
        %v5183 = vadd.f32 0.0, %v5182
        %v5184 = vpop.f32.mrb[0].mxu0
        %v5185 = vadd.f32 0.0, %v5184
        %v5186 = vpop.f32.mrb[0].mxu0
        %v5187 = vadd.f32 0.0, %v5186
        %5188 = vmatprep.mubr.bf16.mxu0 %v2117
        %5189 = vmatmul.mubr.bf16.gmra.mrb[0].mxu0 %v2116
        %v5190 = vpop.f32.mrb[0].mxu0
        %v5191 = vadd.f32 0.0, %v5190
        %v5192 = vpop.f32.mrb[0].mxu0
        %v5193 = vadd.f32 0.0, %v5192
        %v5194 = vpop.f32.mrb[0].mxu0
        %v5195 = vadd.f32 0.0, %v5194
        %v5196 = vpop.f32.mrb[0].mxu0
        %v5197 = vadd.f32 0.0, %v5196
        %5198 = vmatprep.mubr.bf16.mxu0 %v2123
        %5199 = vmatmul.mubr.bf16.gmra.mrb[0].mxu0 %v2122
        %v5200 = vpop.f32.mrb[0].mxu0
        %v5201 = vadd.f32 0.0, %v5200
        %v5202 = vpop.f32.mrb[0].mxu0
        %v5203 = vadd.f32 0.0, %v5202
        %v5204 = vpop.f32.mrb[0].mxu0
        %v5205 = vadd.f32 0.0, %v5204
        %v5206 = vpop.f32.mrb[0].mxu0
        %v5207 = vadd.f32 0.0, %v5206
        %5208 = vdwg.mxu0
        %5209 = vmatprep.subr.bf16.mxu0 %v4857
        %5210 = vmatpush1.bf16.msra.mxu0 %v4856
        %5211 = vmatprep.subr.bf16.mxu0 %v4859
        %5212 = vmatpush1.bf16.msra.mxu0 %v4858
        %5213 = vmatprep.subr.bf16.mxu0 %v4861
        %5214 = vmatpush1.bf16.msra.mxu0 %v4860
        %5215 = vmatprep.subr.bf16.mxu0 %v4863
        %5216 = vmatpush1.bf16.msra.mxu0 %v4862
        %5217 = vmatprep.subr.bf16.mxu0 %v4865
        %5218 = vmatpush1.bf16.msra.mxu0 %v4864
        %5219 = vmatprep.subr.bf16.mxu0 %v4867
        %5220 = vmatpush1.bf16.msra.mxu0 %v4866
        %5221 = vmatprep.subr.bf16.mxu0 %v4869
        %5222 = vmatpush1.bf16.msra.mxu0 %v4868
        %5223 = vmatprep.subr.bf16.mxu0 %v4871
        %5224 = vmatpush1.bf16.msra.mxu0 %v4870
        %5225 = vmatprep.subr.bf16.mxu0 %v4873
        %5226 = vmatpush1.bf16.msra.mxu0 %v4872
        %5227 = vmatprep.subr.bf16.mxu0 %v4875
        %5228 = vmatpush1.bf16.msra.mxu0 %v4874
        %5229 = vmatprep.subr.bf16.mxu0 %v4877
        %5230 = vmatpush1.bf16.msra.mxu0 %v4876
        %5231 = vmatprep.subr.bf16.mxu0 %v4879
        %5232 = vmatpush1.bf16.msra.mxu0 %v4878
        %5233 = vmatprep.subr.bf16.mxu0 %v4881
        %5234 = vmatpush1.bf16.msra.mxu0 %v4880
        %5235 = vmatprep.subr.bf16.mxu0 %v4883
        %5236 = vmatpush1.bf16.msra.mxu0 %v4882
        %5237 = vmatprep.subr.bf16.mxu0 %v4885
        %5238 = vmatpush1.bf16.msra.mxu0 %v4884
        %5239 = vmatprep.subr.bf16.mxu0 %v4887
        %5240 = vmatpush1.bf16.msra.mxu0 %v4886
        %5241 = vmatprep.mubr.bf16.mxu0 %v2035
        %5242 = vmatmul.mubr.bf16.gmra.mrb[0].mxu0 %v2034
        %v5243 = vpop.f32.mrb[0].mxu0
        %v5244 = vadd.f32 %v5051, %v5243
        %v5245 = vpop.f32.mrb[0].mxu0
        %v5246 = vadd.f32 %v5053, %v5245
        %v5247 = vpop.f32.mrb[0].mxu0
        %v5248 = vadd.f32 %v5055, %v5247
        %v5249 = vpop.f32.mrb[0].mxu0
        %v5250 = vadd.f32 %v5057, %v5249
        %5251 = vmatprep.mubr.bf16.mxu0 %v2041
        %5252 = vmatmul.mubr.bf16.gmra.mrb[0].mxu0 %v2040
        %v5253 = vpop.f32.mrb[0].mxu0
        %v5254 = vadd.f32 %v5061, %v5253
        %v5255 = vpop.f32.mrb[0].mxu0
        %v5256 = vadd.f32 %v5063, %v5255
        %v5257 = vpop.f32.mrb[0].mxu0
        %v5258 = vadd.f32 %v5065, %v5257
        %v5259 = vpop.f32.mrb[0].mxu0
        %v5260 = vadd.f32 %v5067, %v5259
        %5261 = vmatprep.mubr.bf16.mxu0 %v2047
        %5262 = vmatmul.mubr.bf16.gmra.mrb[0].mxu0 %v2046
        %v5263 = vpop.f32.mrb[0].mxu0
        %v5264 = vadd.f32 %v5071, %v5263
        %v5265 = vpop.f32.mrb[0].mxu0
        %v5266 = vadd.f32 %v5073, %v5265
        %v5267 = vpop.f32.mrb[0].mxu0
        %v5268 = vadd.f32 %v5075, %v5267
        %v5269 = vpop.f32.mrb[0].mxu0
        %v5270 = vadd.f32 %v5077, %v5269
        %5271 = vmatprep.mubr.bf16.mxu0 %v2053
        %5272 = vmatmul.mubr.bf16.gmra.mrb[0].mxu0 %v2052
        %v5273 = vpop.f32.mrb[0].mxu0
        %v5274 = vadd.f32 %v5081, %v5273
        %v5275 = vpop.f32.mrb[0].mxu0
        %v5276 = vadd.f32 %v5083, %v5275
        %v5277 = vpop.f32.mrb[0].mxu0
        %v5278 = vadd.f32 %v5085, %v5277
        %v5279 = vpop.f32.mrb[0].mxu0
        %v5280 = vadd.f32 %v5087, %v5279
        %5281 = vmatprep.mubr.bf16.mxu0 %v2059
        %5282 = vmatmul.mubr.bf16.gmra.mrb[0].mxu0 %v2058
        %v5283 = vpop.f32.mrb[0].mxu0
        %v5284 = vadd.f32 %v5091, %v5283
        %v5285 = vpop.f32.mrb[0].mxu0
        %v5286 = vadd.f32 %v5093, %v5285
        %v5287 = vpop.f32.mrb[0].mxu0
        %v5288 = vadd.f32 %v5095, %v5287
        %v5289 = vpop.f32.mrb[0].mxu0
        %v5290 = vadd.f32 %v5097, %v5289
        %5291 = vmatprep.mubr.bf16.mxu0 %v2065
        %5292 = vmatmul.mubr.bf16.gmra.mrb[0].mxu0 %v2064
        %v5293 = vpop.f32.mrb[0].mxu0
        %v5294 = vadd.f32 %v5101, %v5293
        %v5295 = vpop.f32.mrb[0].mxu0
        %v5296 = vadd.f32 %v5103, %v5295
        %v5297 = vpop.f32.mrb[0].mxu0
        %v5298 = vadd.f32 %v5105, %v5297
        %v5299 = vpop.f32.mrb[0].mxu0
        %v5300 = vadd.f32 %v5107, %v5299
        %5301 = vmatprep.mubr.bf16.mxu0 %v2071
        %5302 = vmatmul.mubr.bf16.gmra.mrb[0].mxu0 %v2070
        %v5303 = vpop.f32.mrb[0].mxu0
        %v5304 = vadd.f32 %v5111, %v5303
        %v5305 = vpop.f32.mrb[0].mxu0
        %v5306 = vadd.f32 %v5113, %v5305
        %v5307 = vpop.f32.mrb[0].mxu0
        %v5308 = vadd.f32 %v5115, %v5307
        %v5309 = vpop.f32.mrb[0].mxu0
        %v5310 = vadd.f32 %v5117, %v5309
        %5311 = vmatprep.mubr.bf16.mxu0 %v2077
        %5312 = vmatmul.mubr.bf16.gmra.mrb[0].mxu0 %v2076
        %v5313 = vpop.f32.mrb[0].mxu0
        %v5314 = vadd.f32 %v5121, %v5313
        %v5315 = vpop.f32.mrb[0].mxu0
        %v5316 = vadd.f32 %v5123, %v5315
        %v5317 = vpop.f32.mrb[0].mxu0
        %v5318 = vadd.f32 %v5125, %v5317
        %v5319 = vpop.f32.mrb[0].mxu0
        %v5320 = vadd.f32 %v5127, %v5319
        %5321 = vmatprep.mubr.bf16.mxu0 %v2083
        %5322 = vmatmul.mubr.bf16.gmra.mrb[0].mxu0 %v2082
        %v5323 = vpop.f32.mrb[0].mxu0
        %v5324 = vadd.f32 %v5131, %v5323
        %v5325 = vpop.f32.mrb[0].mxu0
        %v5326 = vadd.f32 %v5133, %v5325
        %v5327 = vpop.f32.mrb[0].mxu0
        %v5328 = vadd.f32 %v5135, %v5327
        %v5329 = vpop.f32.mrb[0].mxu0
        %v5330 = vadd.f32 %v5137, %v5329
        %5331 = vmatprep.mubr.bf16.mxu0 %v2089
        %5332 = vmatmul.mubr.bf16.gmra.mrb[0].mxu0 %v2088
        %v5333 = vpop.f32.mrb[0].mxu0
        %v5334 = vadd.f32 %v5141, %v5333
        %v5335 = vpop.f32.mrb[0].mxu0
        %v5336 = vadd.f32 %v5143, %v5335
        %v5337 = vpop.f32.mrb[0].mxu0
        %v5338 = vadd.f32 %v5145, %v5337
        %v5339 = vpop.f32.mrb[0].mxu0
        %v5340 = vadd.f32 %v5147, %v5339
        %5341 = vmatprep.mubr.bf16.mxu0 %v2095
        %5342 = vmatmul.mubr.bf16.gmra.mrb[0].mxu0 %v2094
        %v5343 = vpop.f32.mrb[0].mxu0
        %v5344 = vadd.f32 %v5151, %v5343
        %v5345 = vpop.f32.mrb[0].mxu0
        %v5346 = vadd.f32 %v5153, %v5345
        %v5347 = vpop.f32.mrb[0].mxu0
        %v5348 = vadd.f32 %v5155, %v5347
        %v5349 = vpop.f32.mrb[0].mxu0
        %v5350 = vadd.f32 %v5157, %v5349
        %5351 = vmatprep.mubr.bf16.mxu0 %v2101
        %5352 = vmatmul.mubr.bf16.gmra.mrb[0].mxu0 %v2100
        %v5353 = vpop.f32.mrb[0].mxu0
        %v5354 = vadd.f32 %v5161, %v5353
        %v5355 = vpop.f32.mrb[0].mxu0
        %v5356 = vadd.f32 %v5163, %v5355
        %v5357 = vpop.f32.mrb[0].mxu0
        %v5358 = vadd.f32 %v5165, %v5357
        %v5359 = vpop.f32.mrb[0].mxu0
        %v5360 = vadd.f32 %v5167, %v5359
        %5361 = vmatprep.mubr.bf16.mxu0 %v2107
        %5362 = vmatmul.mubr.bf16.gmra.mrb[0].mxu0 %v2106
        %v5363 = vpop.f32.mrb[0].mxu0
        %v5364 = vadd.f32 %v5171, %v5363
        %v5365 = vpop.f32.mrb[0].mxu0
        %v5366 = vadd.f32 %v5173, %v5365
        %v5367 = vpop.f32.mrb[0].mxu0
        %v5368 = vadd.f32 %v5175, %v5367
        %v5369 = vpop.f32.mrb[0].mxu0
        %v5370 = vadd.f32 %v5177, %v5369
        %5371 = vmatprep.mubr.bf16.mxu0 %v2113
        %5372 = vmatmul.mubr.bf16.gmra.mrb[0].mxu0 %v2112
        %v5373 = vpop.f32.mrb[0].mxu0
        %v5374 = vadd.f32 %v5181, %v5373
        %v5375 = vpop.f32.mrb[0].mxu0
        %v5376 = vadd.f32 %v5183, %v5375
        %v5377 = vpop.f32.mrb[0].mxu0
        %v5378 = vadd.f32 %v5185, %v5377
        %v5379 = vpop.f32.mrb[0].mxu0
        %v5380 = vadd.f32 %v5187, %v5379
        %5381 = vmatprep.mubr.bf16.mxu0 %v2119
        %5382 = vmatmul.mubr.bf16.gmra.mrb[0].mxu0 %v2118
        %v5383 = vpop.f32.mrb[0].mxu0
        %v5384 = vadd.f32 %v5191, %v5383
        %v5385 = vpop.f32.mrb[0].mxu0
        %v5386 = vadd.f32 %v5193, %v5385
        %v5387 = vpop.f32.mrb[0].mxu0
        %v5388 = vadd.f32 %v5195, %v5387
        %v5389 = vpop.f32.mrb[0].mxu0
        %v5390 = vadd.f32 %v5197, %v5389
        %5391 = vmatprep.mubr.bf16.mxu0 %v2125
        %5392 = vmatmul.mubr.bf16.gmra.mrb[0].mxu0 %v2124
        %v5393 = vpop.f32.mrb[0].mxu0
        %v5394 = vadd.f32 %v5201, %v5393
        %v5395 = vpop.f32.mrb[0].mxu0
        %v5396 = vadd.f32 %v5203, %v5395
        %v5397 = vpop.f32.mrb[0].mxu0
        %v5398 = vadd.f32 %v5205, %v5397
        %v5399 = vpop.f32.mrb[0].mxu0
        %v5400 = vadd.f32 %v5207, %v5399
        %5401 = vdwg.mxu0
        %5402 = vmatprep.subr.bf16.mxu0 %v4889
        %5403 = vmatpush1.bf16.msra.mxu0 %v4888
        %5404 = vmatprep.subr.bf16.mxu0 %v4891
        %5405 = vmatpush1.bf16.msra.mxu0 %v4890
        %5406 = vmatprep.subr.bf16.mxu0 %v4893
        %5407 = vmatpush1.bf16.msra.mxu0 %v4892
        %5408 = vmatprep.subr.bf16.mxu0 %v4895
        %5409 = vmatpush1.bf16.msra.mxu0 %v4894
        %5410 = vmatprep.subr.bf16.mxu0 %v4897
        %5411 = vmatpush1.bf16.msra.mxu0 %v4896
        %5412 = vmatprep.subr.bf16.mxu0 %v4899
        %5413 = vmatpush1.bf16.msra.mxu0 %v4898
        %5414 = vmatprep.subr.bf16.mxu0 %v4901
        %5415 = vmatpush1.bf16.msra.mxu0 %v4900
        %5416 = vmatprep.subr.bf16.mxu0 %v4903
        %5417 = vmatpush1.bf16.msra.mxu0 %v4902
        %5418 = vmatprep.subr.bf16.mxu0 %v4905
        %5419 = vmatpush1.bf16.msra.mxu0 %v4904
        %5420 = vmatprep.subr.bf16.mxu0 %v4907
        %5421 = vmatpush1.bf16.msra.mxu0 %v4906
        %5422 = vmatprep.subr.bf16.mxu0 %v4909
        %5423 = vmatpush1.bf16.msra.mxu0 %v4908
        %5424 = vmatprep.subr.bf16.mxu0 %v4911
        %5425 = vmatpush1.bf16.msra.mxu0 %v4910
        %5426 = vmatprep.subr.bf16.mxu0 %v4913
        %5427 = vmatpush1.bf16.msra.mxu0 %v4912
        %5428 = vmatprep.subr.bf16.mxu0 %v4915
        %5429 = vmatpush1.bf16.msra.mxu0 %v4914
        %5430 = vmatprep.subr.bf16.mxu0 %v4917
        %5431 = vmatpush1.bf16.msra.mxu0 %v4916
        %5432 = vmatprep.subr.bf16.mxu0 %v4919
        %5433 = vmatpush1.bf16.msra.mxu0 %v4918
        %5434 = vmatprep.mubr.bf16.mxu0 %v2037
        %5435 = vmatmul.mubr.bf16.gmra.mrb[0].mxu0 %v2036
        %v5436 = vpop.f32.mrb[0].mxu0
        %v5437 = vadd.f32 %v5244, %v5436
        %v5438 = vpop.f32.mrb[0].mxu0
        %v5439 = vadd.f32 %v5246, %v5438
        %v5440 = vpop.f32.mrb[0].mxu0
        %v5441 = vadd.f32 %v5248, %v5440
        %v5442 = vpop.f32.mrb[0].mxu0
        %v5443 = vadd.f32 %v5250, %v5442
        %5444 = vmatprep.mubr.bf16.mxu0 %v2043
        %5445 = vmatmul.mubr.bf16.gmra.mrb[0].mxu0 %v2042
        %v5446 = vpop.f32.mrb[0].mxu0
        %v5447 = vadd.f32 %v5254, %v5446
        %v5448 = vpop.f32.mrb[0].mxu0
        %v5449 = vadd.f32 %v5256, %v5448
        %v5450 = vpop.f32.mrb[0].mxu0
        %v5451 = vadd.f32 %v5258, %v5450
        %v5452 = vpop.f32.mrb[0].mxu0
        %v5453 = vadd.f32 %v5260, %v5452
        %5454 = vmatprep.mubr.bf16.mxu0 %v2049
        %5455 = vmatmul.mubr.bf16.gmra.mrb[0].mxu0 %v2048
        %v5456 = vpop.f32.mrb[0].mxu0
        %v5457 = vadd.f32 %v5264, %v5456
        %v5458 = vpop.f32.mrb[0].mxu0
        %v5459 = vadd.f32 %v5266, %v5458
        %v5460 = vpop.f32.mrb[0].mxu0
        %v5461 = vadd.f32 %v5268, %v5460
        %v5462 = vpop.f32.mrb[0].mxu0
        %v5463 = vadd.f32 %v5270, %v5462
        %5464 = vmatprep.mubr.bf16.mxu0 %v2055
        %5465 = vmatmul.mubr.bf16.gmra.mrb[0].mxu0 %v2054
        %v5466 = vpop.f32.mrb[0].mxu0
        %v5467 = vadd.f32 %v5274, %v5466
        %v5468 = vpop.f32.mrb[0].mxu0
        %v5469 = vadd.f32 %v5276, %v5468
        %v5470 = vpop.f32.mrb[0].mxu0
        %v5471 = vadd.f32 %v5278, %v5470
        %v5472 = vpop.f32.mrb[0].mxu0
        %v5473 = vadd.f32 %v5280, %v5472
        %5474 = vmatprep.mubr.bf16.mxu0 %v2061
        %5475 = vmatmul.mubr.bf16.gmra.mrb[0].mxu0 %v2060
        %v5476 = vpop.f32.mrb[0].mxu0
        %v5477 = vadd.f32 %v5284, %v5476
        %v5478 = vpop.f32.mrb[0].mxu0
        %v5479 = vadd.f32 %v5286, %v5478
        %v5480 = vpop.f32.mrb[0].mxu0
        %v5481 = vadd.f32 %v5288, %v5480
        %v5482 = vpop.f32.mrb[0].mxu0
        %v5483 = vadd.f32 %v5290, %v5482
        %5484 = vmatprep.mubr.bf16.mxu0 %v2067
        %5485 = vmatmul.mubr.bf16.gmra.mrb[0].mxu0 %v2066
        %v5486 = vpop.f32.mrb[0].mxu0
        %v5487 = vadd.f32 %v5294, %v5486
        %v5488 = vpop.f32.mrb[0].mxu0
        %v5489 = vadd.f32 %v5296, %v5488
        %v5490 = vpop.f32.mrb[0].mxu0
        %v5491 = vadd.f32 %v5298, %v5490
        %v5492 = vpop.f32.mrb[0].mxu0
        %v5493 = vadd.f32 %v5300, %v5492
        %5494 = vmatprep.mubr.bf16.mxu0 %v2073
        %5495 = vmatmul.mubr.bf16.gmra.mrb[0].mxu0 %v2072
        %v5496 = vpop.f32.mrb[0].mxu0
        %v5497 = vadd.f32 %v5304, %v5496
        %v5498 = vpop.f32.mrb[0].mxu0
        %v5499 = vadd.f32 %v5306, %v5498
        %v5500 = vpop.f32.mrb[0].mxu0
        %v5501 = vadd.f32 %v5308, %v5500
        %v5502 = vpop.f32.mrb[0].mxu0
        %v5503 = vadd.f32 %v5310, %v5502
        %5504 = vmatprep.mubr.bf16.mxu0 %v2079
        %5505 = vmatmul.mubr.bf16.gmra.mrb[0].mxu0 %v2078
        %v5506 = vpop.f32.mrb[0].mxu0
        %v5507 = vadd.f32 %v5314, %v5506
        %v5508 = vpop.f32.mrb[0].mxu0
        %v5509 = vadd.f32 %v5316, %v5508
        %v5510 = vpop.f32.mrb[0].mxu0
        %v5511 = vadd.f32 %v5318, %v5510
        %v5512 = vpop.f32.mrb[0].mxu0
        %v5513 = vadd.f32 %v5320, %v5512
        %5514 = vmatprep.mubr.bf16.mxu0 %v2085
        %5515 = vmatmul.mubr.bf16.gmra.mrb[0].mxu0 %v2084
        %v5516 = vpop.f32.mrb[0].mxu0
        %v5517 = vadd.f32 %v5324, %v5516
        %v5518 = vpop.f32.mrb[0].mxu0
        %v5519 = vadd.f32 %v5326, %v5518
        %v5520 = vpop.f32.mrb[0].mxu0
        %v5521 = vadd.f32 %v5328, %v5520
        %v5522 = vpop.f32.mrb[0].mxu0
        %v5523 = vadd.f32 %v5330, %v5522
        %5524 = vmatprep.mubr.bf16.mxu0 %v2091
        %5525 = vmatmul.mubr.bf16.gmra.mrb[0].mxu0 %v2090
        %v5526 = vpop.f32.mrb[0].mxu0
        %v5527 = vadd.f32 %v5334, %v5526
        %v5528 = vpop.f32.mrb[0].mxu0
        %v5529 = vadd.f32 %v5336, %v5528
        %v5530 = vpop.f32.mrb[0].mxu0
        %v5531 = vadd.f32 %v5338, %v5530
        %v5532 = vpop.f32.mrb[0].mxu0
        %v5533 = vadd.f32 %v5340, %v5532
        %5534 = vmatprep.mubr.bf16.mxu0 %v2097
        %5535 = vmatmul.mubr.bf16.gmra.mrb[0].mxu0 %v2096
        %v5536 = vpop.f32.mrb[0].mxu0
        %v5537 = vadd.f32 %v5344, %v5536
        %v5538 = vpop.f32.mrb[0].mxu0
        %v5539 = vadd.f32 %v5346, %v5538
        %v5540 = vpop.f32.mrb[0].mxu0
        %v5541 = vadd.f32 %v5348, %v5540
        %v5542 = vpop.f32.mrb[0].mxu0
        %v5543 = vadd.f32 %v5350, %v5542
        %5544 = vmatprep.mubr.bf16.mxu0 %v2103
        %5545 = vmatmul.mubr.bf16.gmra.mrb[0].mxu0 %v2102
        %v5546 = vpop.f32.mrb[0].mxu0
        %v5547 = vadd.f32 %v5354, %v5546
        %v5548 = vpop.f32.mrb[0].mxu0
        %v5549 = vadd.f32 %v5356, %v5548
        %v5550 = vpop.f32.mrb[0].mxu0
        %v5551 = vadd.f32 %v5358, %v5550
        %v5552 = vpop.f32.mrb[0].mxu0
        %v5553 = vadd.f32 %v5360, %v5552
        %5554 = vmatprep.mubr.bf16.mxu0 %v2109
        %5555 = vmatmul.mubr.bf16.gmra.mrb[0].mxu0 %v2108
        %v5556 = vpop.f32.mrb[0].mxu0
        %v5557 = vadd.f32 %v5364, %v5556
        %v5558 = vpop.f32.mrb[0].mxu0
        %v5559 = vadd.f32 %v5366, %v5558
        %v5560 = vpop.f32.mrb[0].mxu0
        %v5561 = vadd.f32 %v5368, %v5560
        %v5562 = vpop.f32.mrb[0].mxu0
        %v5563 = vadd.f32 %v5370, %v5562
        %5564 = vmatprep.mubr.bf16.mxu0 %v2115
        %5565 = vmatmul.mubr.bf16.gmra.mrb[0].mxu0 %v2114
        %v5566 = vpop.f32.mrb[0].mxu0
        %v5567 = vadd.f32 %v5374, %v5566
        %v5568 = vpop.f32.mrb[0].mxu0
        %v5569 = vadd.f32 %v5376, %v5568
        %v5570 = vpop.f32.mrb[0].mxu0
        %v5571 = vadd.f32 %v5378, %v5570
        %v5572 = vpop.f32.mrb[0].mxu0
        %v5573 = vadd.f32 %v5380, %v5572
        %5574 = vmatprep.mubr.bf16.mxu0 %v2121
        %5575 = vmatmul.mubr.bf16.gmra.mrb[0].mxu0 %v2120
        %v5576 = vpop.f32.mrb[0].mxu0
        %v5577 = vadd.f32 %v5384, %v5576
        %v5578 = vpop.f32.mrb[0].mxu0
        %v5579 = vadd.f32 %v5386, %v5578
        %v5580 = vpop.f32.mrb[0].mxu0
        %v5581 = vadd.f32 %v5388, %v5580
        %v5582 = vpop.f32.mrb[0].mxu0
        %v5583 = vadd.f32 %v5390, %v5582
        %5584 = vmatprep.mubr.bf16.mxu0 %v2127
        %5585 = vmatmul.mubr.bf16.gmra.mrb[0].mxu0 %v2126
        %v5586 = vpop.f32.mrb[0].mxu0
        %v5587 = vadd.f32 %v5394, %v5586
        %v5588 = vpop.f32.mrb[0].mxu0
        %v5589 = vadd.f32 %v5396, %v5588
        %v5590 = vpop.f32.mrb[0].mxu0
        %v5591 = vadd.f32 %v5398, %v5590
        %v5592 = vpop.f32.mrb[0].mxu0
        %v5593 = vadd.f32 %v5400, %v5592
        %5594 = vdwg.mxu0
        %v5595 = vadd.f32 %v4281, %v5437
        %v5596 = vadd.f32 %v4283, %v5439
        %v5597 = vadd.f32 %v4285, %v5441
        %v5598 = vadd.f32 %v4287, %v5443
        %v5599 = vadd.f32 %v4291, %v5447
        %v5600 = vadd.f32 %v4293, %v5449
        %v5601 = vadd.f32 %v4295, %v5451
        %v5602 = vadd.f32 %v4297, %v5453
        %v5603 = vadd.f32 %v4301, %v5457
        %v5604 = vadd.f32 %v4303, %v5459
        %v5605 = vadd.f32 %v4305, %v5461
        %v5606 = vadd.f32 %v4307, %v5463
        %v5607 = vadd.f32 %v4311, %v5467
        %v5608 = vadd.f32 %v4313, %v5469
        %v5609 = vadd.f32 %v4315, %v5471
        %v5610 = vadd.f32 %v4317, %v5473
        %v5611 = vadd.f32 %v4321, %v5477
        %v5612 = vadd.f32 %v4323, %v5479
        %v5613 = vadd.f32 %v4325, %v5481
        %v5614 = vadd.f32 %v4327, %v5483
        %v5615 = vadd.f32 %v4331, %v5487
        %v5616 = vadd.f32 %v4333, %v5489
        %v5617 = vadd.f32 %v4335, %v5491
        %v5618 = vadd.f32 %v4337, %v5493
        %v5619 = vadd.f32 %v4341, %v5497
        %v5620 = vadd.f32 %v4343, %v5499
        %v5621 = vadd.f32 %v4345, %v5501
        %v5622 = vadd.f32 %v4347, %v5503
        %v5623 = vadd.f32 %v4351, %v5507
        %v5624 = vadd.f32 %v4353, %v5509
        %v5625 = vadd.f32 %v4355, %v5511
        %v5626 = vadd.f32 %v4357, %v5513
        %v5627 = vadd.f32 %v4361, %v5517
        %v5628 = vadd.f32 %v4363, %v5519
        %v5629 = vadd.f32 %v4365, %v5521
        %v5630 = vadd.f32 %v4367, %v5523
        %v5631 = vadd.f32 %v4371, %v5527
        %v5632 = vadd.f32 %v4373, %v5529
        %v5633 = vadd.f32 %v4375, %v5531
        %v5634 = vadd.f32 %v4377, %v5533
        %v5635 = vadd.f32 %v4381, %v5537
        %v5636 = vadd.f32 %v4383, %v5539
        %v5637 = vadd.f32 %v4385, %v5541
        %v5638 = vadd.f32 %v4387, %v5543
        %v5639 = vadd.f32 %v4391, %v5547
        %v5640 = vadd.f32 %v4393, %v5549
        %v5641 = vadd.f32 %v4395, %v5551
        %v5642 = vadd.f32 %v4397, %v5553
        %v5643 = vadd.f32 %v4401, %v5557
        %v5644 = vadd.f32 %v4403, %v5559
        %v5645 = vadd.f32 %v4405, %v5561
        %v5646 = vadd.f32 %v4407, %v5563
        %v5647 = vadd.f32 %v4411, %v5567
        %v5648 = vadd.f32 %v4413, %v5569
        %v5649 = vadd.f32 %v4415, %v5571
        %v5650 = vadd.f32 %v4417, %v5573
        %v5651 = vadd.f32 %v4421, %v5577
        %v5652 = vadd.f32 %v4423, %v5579
        %v5653 = vadd.f32 %v4425, %v5581
        %v5654 = vadd.f32 %v4427, %v5583
        %v5655 = vadd.f32 %v4431, %v5587
        %v5656 = vadd.f32 %v4433, %v5589
        %v5657 = vadd.f32 %v4435, %v5591
        %v5658 = vadd.f32 %v4437, %v5593
        %v5659 = vld [vmem:[%s3] sm:$0x3]
        %v5661 = vlaneseq
        %v5662 = vshrl.u32 %v5661, 7
        %v5663 = vsub.s32 0, %v5662
        %v5664 = vrot.slane %v5659, %v5663
        %v5665 = vlaneseq
        %v5666 = vshrl.u32 %v5665, 7
        %v5667 = vsub.s32 1, %v5666
        %v5668 = vrot.slane %v5659, %v5667
        %v5671 = vadd.f32 %v5595, %v5664
        %v5672 = vadd.f32 %v5596, %v5668
        %v5673 = vadd.f32 %v5597, %v5664
        %v5674 = vadd.f32 %v5598, %v5668
        %v5675 = vadd.f32 %v5599, %v5664
        %v5676 = vadd.f32 %v5600, %v5668
        %v5677 = vadd.f32 %v5601, %v5664
        %v5678 = vadd.f32 %v5602, %v5668
        %v5679 = vadd.f32 %v5603, %v5664
        %v5680 = vadd.f32 %v5604, %v5668
        %v5681 = vadd.f32 %v5605, %v5664
        %v5682 = vadd.f32 %v5606, %v5668
        %v5683 = vadd.f32 %v5607, %v5664
        %v5684 = vadd.f32 %v5608, %v5668
        %v5685 = vadd.f32 %v5609, %v5664
        %v5686 = vadd.f32 %v5610, %v5668
        %v5687 = vadd.f32 %v5611, %v5664
        %v5688 = vadd.f32 %v5612, %v5668
        %v5689 = vadd.f32 %v5613, %v5664
        %v5690 = vadd.f32 %v5614, %v5668
        %v5691 = vadd.f32 %v5615, %v5664
        %v5692 = vadd.f32 %v5616, %v5668
        %v5693 = vadd.f32 %v5617, %v5664
        %v5694 = vadd.f32 %v5618, %v5668
        %v5695 = vadd.f32 %v5619, %v5664
        %v5696 = vadd.f32 %v5620, %v5668
        %v5697 = vadd.f32 %v5621, %v5664
        %v5698 = vadd.f32 %v5622, %v5668
        %v5699 = vadd.f32 %v5623, %v5664
        %v5700 = vadd.f32 %v5624, %v5668
        %v5701 = vadd.f32 %v5625, %v5664
        %v5702 = vadd.f32 %v5626, %v5668
        %v5703 = vadd.f32 %v5627, %v5664
        %v5704 = vadd.f32 %v5628, %v5668
        %v5705 = vadd.f32 %v5629, %v5664
        %v5706 = vadd.f32 %v5630, %v5668
        %v5707 = vadd.f32 %v5631, %v5664
        %v5708 = vadd.f32 %v5632, %v5668
        %v5709 = vadd.f32 %v5633, %v5664
        %v5710 = vadd.f32 %v5634, %v5668
        %v5711 = vadd.f32 %v5635, %v5664
        %v5712 = vadd.f32 %v5636, %v5668
        %v5713 = vadd.f32 %v5637, %v5664
        %v5714 = vadd.f32 %v5638, %v5668
        %v5715 = vadd.f32 %v5639, %v5664
        %v5716 = vadd.f32 %v5640, %v5668
        %v5717 = vadd.f32 %v5641, %v5664
        %v5718 = vadd.f32 %v5642, %v5668
        %v5719 = vadd.f32 %v5643, %v5664
        %v5720 = vadd.f32 %v5644, %v5668
        %v5721 = vadd.f32 %v5645, %v5664
        %v5722 = vadd.f32 %v5646, %v5668
        %v5723 = vadd.f32 %v5647, %v5664
        %v5724 = vadd.f32 %v5648, %v5668
        %v5725 = vadd.f32 %v5649, %v5664
        %v5726 = vadd.f32 %v5650, %v5668
        %v5727 = vadd.f32 %v5651, %v5664
        %v5728 = vadd.f32 %v5652, %v5668
        %v5729 = vadd.f32 %v5653, %v5664
        %v5730 = vadd.f32 %v5654, %v5668
        %v5731 = vadd.f32 %v5655, %v5664
        %v5732 = vadd.f32 %v5656, %v5668
        %v5733 = vadd.f32 %v5657, %v5664
        %v5734 = vadd.f32 %v5658, %v5668
        %5735 = vst [vmem:[%s242] sm:$0xff] %v5671
        %5736 = vst [vmem:[%s242 + $0x8] sm:$0xff] %v5672
        %5737 = vst [vmem:[%s242 + $0x10] sm:$0xff] %v5673
        %5738 = vst [vmem:[%s242 + $0x18] sm:$0xff] %v5674
        %5739 = vst [vmem:[%s242 + $0x20] sm:$0xff] %v5675
        %5740 = vst [vmem:[%s242 + $0x28] sm:$0xff] %v5676
        %5741 = vst [vmem:[%s242 + $0x30] sm:$0xff] %v5677
        %5742 = vst [vmem:[%s242 + $0x38] sm:$0xff] %v5678
        %5743 = vst [vmem:[%s242 + $0x40] sm:$0xff] %v5679
        %5744 = vst [vmem:[%s242 + $0x48] sm:$0xff] %v5680
        %5745 = vst [vmem:[%s242 + $0x50] sm:$0xff] %v5681
        %5746 = vst [vmem:[%s242 + $0x58] sm:$0xff] %v5682
        %5747 = vst [vmem:[%s242 + $0x60] sm:$0xff] %v5683
        %5748 = vst [vmem:[%s242 + $0x68] sm:$0xff] %v5684
        %5749 = vst [vmem:[%s242 + $0x70] sm:$0xff] %v5685
        %5750 = vst [vmem:[%s242 + $0x78] sm:$0xff] %v5686
        %5751 = vst [vmem:[%s242 + $0x80] sm:$0xff] %v5687
        %5752 = vst [vmem:[%s242 + $0x88] sm:$0xff] %v5688
        %5753 = vst [vmem:[%s242 + $0x90] sm:$0xff] %v5689
        %5754 = vst [vmem:[%s242 + $0x98] sm:$0xff] %v5690
        %5755 = vst [vmem:[%s242 + $0xa0] sm:$0xff] %v5691
        %5756 = vst [vmem:[%s242 + $0xa8] sm:$0xff] %v5692
        %5757 = vst [vmem:[%s242 + $0xb0] sm:$0xff] %v5693
        %5758 = vst [vmem:[%s242 + $0xb8] sm:$0xff] %v5694
        %5759 = vst [vmem:[%s242 + $0xc0] sm:$0xff] %v5695
        %5760 = vst [vmem:[%s242 + $0xc8] sm:$0xff] %v5696
        %5761 = vst [vmem:[%s242 + $0xd0] sm:$0xff] %v5697
        %5762 = vst [vmem:[%s242 + $0xd8] sm:$0xff] %v5698
        %5763 = vst [vmem:[%s242 + $0xe0] sm:$0xff] %v5699
        %5764 = vst [vmem:[%s242 + $0xe8] sm:$0xff] %v5700
        %5765 = vst [vmem:[%s242 + $0xf0] sm:$0xff] %v5701
        %5766 = vst [vmem:[%s242 + $0xf8] sm:$0xff] %v5702
        %5767 = vst [vmem:[%s242 + $0x100] sm:$0xff] %v5703
        %5768 = vst [vmem:[%s242 + $0x108] sm:$0xff] %v5704
        %5769 = vst [vmem:[%s242 + $0x110] sm:$0xff] %v5705
        %5770 = vst [vmem:[%s242 + $0x118] sm:$0xff] %v5706
        %5771 = vst [vmem:[%s242 + $0x120] sm:$0xff] %v5707
        %5772 = vst [vmem:[%s242 + $0x128] sm:$0xff] %v5708
        %5773 = vst [vmem:[%s242 + $0x130] sm:$0xff] %v5709
        %5774 = vst [vmem:[%s242 + $0x138] sm:$0xff] %v5710
        %5775 = vst [vmem:[%s242 + $0x140] sm:$0xff] %v5711
        %5776 = vst [vmem:[%s242 + $0x148] sm:$0xff] %v5712
        %5777 = vst [vmem:[%s242 + $0x150] sm:$0xff] %v5713
        %5778 = vst [vmem:[%s242 + $0x158] sm:$0xff] %v5714
        %5779 = vst [vmem:[%s242 + $0x160] sm:$0xff] %v5715
        %5780 = vst [vmem:[%s242 + $0x168] sm:$0xff] %v5716
        %5781 = vst [vmem:[%s242 + $0x170] sm:$0xff] %v5717
        %5782 = vst [vmem:[%s242 + $0x178] sm:$0xff] %v5718
        %5783 = vst [vmem:[%s242 + $0x180] sm:$0xff] %v5719
        %5784 = vst [vmem:[%s242 + $0x188] sm:$0xff] %v5720
        %5785 = vst [vmem:[%s242 + $0x190] sm:$0xff] %v5721
        %5786 = vst [vmem:[%s242 + $0x198] sm:$0xff] %v5722
        %5787 = vst [vmem:[%s242 + $0x1a0] sm:$0xff] %v5723
        %5788 = vst [vmem:[%s242 + $0x1a8] sm:$0xff] %v5724
        %5789 = vst [vmem:[%s242 + $0x1b0] sm:$0xff] %v5725
        %5790 = vst [vmem:[%s242 + $0x1b8] sm:$0xff] %v5726
        %5791 = vst [vmem:[%s242 + $0x1c0] sm:$0xff] %v5727
        %5792 = vst [vmem:[%s242 + $0x1c8] sm:$0xff] %v5728
        %5793 = vst [vmem:[%s242 + $0x1d0] sm:$0xff] %v5729
        %5794 = vst [vmem:[%s242 + $0x1d8] sm:$0xff] %v5730
        %5795 = vst [vmem:[%s242 + $0x1e0] sm:$0xff] %v5731
        %5796 = vst [vmem:[%s242 + $0x1e8] sm:$0xff] %v5732
        %5797 = vst [vmem:[%s242 + $0x1f0] sm:$0xff] %v5733
        %5798 = vst [vmem:[%s242 + $0x1f8] sm:$0xff] %v5734
        %s5799 = sand.u32 %s138, 1
        %s5800 = scalar_lea.sflag [#allocation4], %s5799
        %s5801 = sand.u32 %s138, 1
        %s5802 = smul.addr %s5801, 512
        %s5803 = scalar_lea.vmem [#allocation3], %s5802
        // Predicated region
        $region37: #{custom_conv_block.1} parent=35 // pred_check
          %p5804 = pneg %p148
        $region38: #{custom_conv_block.1} parent=35 // pred_check_branch
          %5806 = sbr.rel (%p5804) target = $region40
        $region39: #{custom_conv_block.1} parent=35 // pred_region
          %s5807 = smul.u32 16, %s23
          %s5809 = ssub.s32 8192, 8192
          %5810 = vsyncadd %s5800, %s5809
          %s5811 = smul.addr %s5807, 4
          %s5812 = smul.addr %s22, 64
          %s5813 = sadd.s32 %s5811, %s5812
          %s5814 = smul.addr %s5813, 128
          %s5815 = scalar_lea.hbm %s4, %s5814
          %s5816 = sshll.u32 %s5803, 4
          %s5817 = int_to_ptr.vmem [resolvable:$true] %s5816
          %5822 = dma.vmem_to_hbm [thread:$0]  %s5817, 8192, %s5815, %s5800, 256, 256, 16
        $region40: #{custom_conv_block.1} parent=35 // pred_fallthru
          _
      $region36: #{custom_conv_block.1} parent=5 // pred_fallthru
        _
      %p5823 = scmp.le.s32.totalorder 2, %s13
      // Predicated region
      $region41: #{custom_conv_block.1} parent=5 // pred_check
        %p5824 = pneg %p5823
      $region42: #{custom_conv_block.1} parent=5 // pred_check_branch
        %5826 = sbr.rel (%p5824) target = $region44
      $region43: #{custom_conv_block.1} parent=5 // pred_region
        %s5827 = ssub.s32 %s13, 2
        // Predicated region
        $region45: #{custom_conv_block.1} parent=43 // pred_check
          %p5828 = pneg %p154
        $region46: #{custom_conv_block.1} parent=43 // pred_check_branch
          %5830 = sbr.rel (%p5828) target = $region48
        $region47: #{custom_conv_block.1} parent=43 // pred_region
          %s5831 = sand.u32 %s139, 1
          %s5832 = scalar_lea.sflag [#allocation4], %s5831
          %s5833 = sand.u32 %s139, 1
          %s5834 = smul.addr %s5833, 512
          %s5835 = scalar_lea.vmem [#allocation3], %s5834
          %5836 = dma.done %s5832, 8192
        $region48: #{custom_conv_block.1} parent=43 // pred_fallthru
          _
      $region44: #{custom_conv_block.1} parent=5 // pred_fallthru
        _
    $region6: #{custom_conv_block.1} parent=1 // loop_footer
      %s17 = sadd.s32 1, %s13
    $region7: #{custom_conv_block.1} parent=1 // loop_footer_branch
      %12 = sbr.rel target = $region3
    $region8: #{custom_conv_block.1} parent=1 // loop_exit
      _
    %5837 = vsyncpa [#allocation4], 1
    %s5838 = scalar_lea.sflag [#allocation4], 1
    %5839 = vsyncpa %s5838, 1

</llo_original>
